<compile_context>
chip_gen: v5e
topology: v5e:2x2
jax: 0.10.0
libtpu: 0.0.40
codegen_flags: <defaults>
</compile_context>

<pallas_src>
import math
import functools

import jax
import jax.numpy as jnp
from jax import lax
from jax.experimental import pallas as pl
from jax.experimental.pallas import tpu as pltpu

DROPOUT_P = 0.2
DROPOUT_SCALE = 1.0 / (1.0 - DROPOUT_P)
DROPOUT_THRESH = int(round(DROPOUT_P * (1 << 32)))   # keep iff bits >= thresh
GELU_C = math.sqrt(2.0 / math.pi)


def _round_up(x, m):
    return ((x + m - 1) // m) * m


def _mix32(x):
    # lowbias32 full-avalanche 32-bit mixer; pure int VPU ops (wraps mod 2**32),
    # lowers on TPU Mosaic and in interpret mode alike.
    x = x ^ (x >> 16)
    x = x * jnp.uint32(0x7FEB352D)
    x = x ^ (x >> 15)
    x = x * jnp.uint32(0x846CA68B)
    x = x ^ (x >> 16)
    return x


def _mlp_kernel(seed_ref, x_ref, wfc_ref, wproj_ref, o_ref, *, training):
    # x_ref:     (bm, C)  bf16 row tile
    # wfc_ref:   (C, 4C)  bf16, full (transposed) fc weight
    # wproj_ref: (4C, C)  bf16, full (transposed) proj weight
    # c_fc: bf16 x bf16 -> f32 accumulation on the MXU
    h = jnp.dot(x_ref[...], wfc_ref[...], preferred_element_type=jnp.float32)

    # new_gelu (tanh approximation, identical to the PyTorch reference), in f32.
    h = 0.5 * h * (1.0 + jnp.tanh(GELU_C * (h + 0.044715 * (h * h * h))))

    # c_proj: cast activation to bf16 for the MXU, accumulate in f32.
    y = jnp.dot(h.astype(wproj_ref.dtype), wproj_ref[...],
                preferred_element_type=jnp.float32)

    if training:
        # Inverted dropout. Counter-based hash PRNG keyed on (seed, global
        # element index): deterministic, unique stream per element/tile.
        bm, C = y.shape
        row = lax.broadcasted_iota(jnp.int32, (bm, C), 0) + pl.program_id(0) * bm
        col = lax.broadcasted_iota(jnp.int32, (bm, C), 1)
        idx = (row * C + col).astype(jnp.uint32)
        salt = _mix32(seed_ref[0].astype(jnp.uint32) ^ jnp.uint32(0x9E3779B9))
        bits = _mix32((idx * jnp.uint32(0x9E3779B9)) ^ salt)
        keep = bits >= jnp.uint32(DROPOUT_THRESH)       # P(keep) = 1 - p
        y = jnp.where(keep, y * DROPOUT_SCALE, 0.0)

    o_ref[...] = y.astype(o_ref.dtype)


def mlp_forward(x, w_fc, w_proj, *, seed=0, training=True, block_rows=256):
    """x: (B, T, C) f32.  w_fc: (4C, C), w_proj: (C, 4C) in PyTorch (out, in) layout."""
    B, T, C = x.shape
    H = w_fc.shape[0]                     # 4 * n_embed
    M = B * T

    # Row tile: as large as possible, never larger than (padded) row count,
    # multiple of 8 for the (8, 128) sublane constraint. Pad rows if ragged.
    bm = _round_up(min(block_rows, M), 8)
    M_pad = _round_up(M, bm)
    grid_m = M_pad // bm

    x2 = x.reshape(M, C).astype(jnp.bfloat16)
    if M_pad != M:
        x2 = jnp.pad(x2, ((0, M_pad - M), (0, 0)))

    wfc_t = jnp.transpose(w_fc).astype(jnp.bfloat16)      # (C, H)
    wproj_t = jnp.transpose(w_proj).astype(jnp.bfloat16)  # (H, C)
    seed_arr = jnp.array([seed], dtype=jnp.int32)

    kernel = functools.partial(_mlp_kernel, training=training)

    cost = pl.CostEstimate(
        flops=4 * M_pad * C * H,              # two matmuls, 2 flops per MAC
        transcendentals=M_pad * H,            # tanh in new_gelu
        bytes_accessed=(M_pad * C * 2         # x (bf16)
                        + 2 * C * H * 2       # both weights (bf16)
                        + M_pad * C * 4),     # output (f32)
    )

    # TODO(synk): for very large C on v7x (64 MiB VMEM), tile the hidden dim
    # (K-grid over H with an f32 accumulator) instead of keeping full weights
    # and the full (bm, 4C) activation resident.
    out = pl.pallas_call(
        kernel,
        out_shape=jax.ShapeDtypeStruct((M_pad, C), x.dtype),
        grid_spec=pltpu.PrefetchScalarGridSpec(
            num_scalar_prefetch=1,                               # seed -> SMEM
            grid=(grid_m,),
            in_specs=[
                pl.BlockSpec((bm, C), lambda i, seed: (i, 0)),   # x row tile
                pl.BlockSpec((C, H), lambda i, seed: (0, 0)),    # full fc weight
                pl.BlockSpec((H, C), lambda i, seed: (0, 0)),    # full proj weight
            ],
            out_specs=pl.BlockSpec((bm, C), lambda i, seed: (i, 0)),
        ),
        compiler_params=pltpu.CompilerParams(
            dimension_semantics=("parallel",),    # independent row tiles -> megacore
            vmem_limit_bytes=64 * 1024 * 1024,
        ),
        cost_estimate=cost,
    )(seed_arr, x2, wfc_t, wproj_t)

    return out[:M].reshape(B, T, C)


def _ref_eval(x, w_fc, w_proj):
    # Pure-JAX f32 reference (dropout disabled) for a correctness sanity check.
    h = jnp.einsum("btc,hc->bth", x, w_fc)
    h = 0.5 * h * (1.0 + jnp.tanh(GELU_C * (h + 0.044715 * h**3)))
    return jnp.einsum("bth,ch->btc", h, w_proj)


if __name__ == "__main__":
    # Small shapes consistent with the module: batch=2, seq=8, n_embed=384.
    B, T, C = 2, 8, 384
    H = 4 * C

    key = jax.random.PRNGKey(0)
    kx, kfc, kproj = jax.random.split(key, 3)

    x = jax.random.normal(kx, (B, T, C), dtype=jnp.float32)
    # Deterministic init matching nn.Linear's U(-1/sqrt(in), 1/sqrt(in)) scheme.
    w_fc = jax.random.uniform(kfc, (H, C), jnp.float32,
                              minval=-1.0 / math.sqrt(C), maxval=1.0 / math.sqrt(C))
    w_proj = jax.random.uniform(kproj, (C, H), jnp.float32,
                                minval=-1.0 / math.sqrt(H), maxval=1.0 / math.sqrt(H))

    # Eval-mode (dropout off) correctness check. bf16 MXU inputs with f32
    # accumulation vs a pure-f32 reference -> loosened tolerance.
    y_eval = jax.block_until_ready(mlp_forward(x, w_fc, w_proj, training=False))
    y_ref = _ref_eval(x, w_fc, w_proj)
    assert jnp.allclose(y_eval, y_ref, atol=3e-2, rtol=3e-2), "mismatch vs reference"

    # Training-mode run (in-kernel inverted dropout).
    y_train = jax.block_until_ready(mlp_forward(x, w_fc, w_proj, seed=123, training=True))
    assert y_train.shape == (B, T, C)
    drop_frac = float(jnp.mean(y_train == 0.0))
    assert 0.05 < drop_frac < 0.40, f"dropout fraction looks wrong: {drop_frac}"

    print("KERNEL_OK")
</pallas_src>

<mosaic_0001>
module attributes {stable_mosaic.version = 11 : i64} {
  func.func @_mlp_kernel(%arg0: i32, %arg1: memref<1xi32, #tpu.memory_space<smem>>, %arg2: memref<16x384xbf16, #tpu.memory_space<vmem>>, %arg3: memref<384x1536xbf16, #tpu.memory_space<vmem>>, %arg4: memref<1536x384xbf16, #tpu.memory_space<vmem>>, %arg5: memref<16x384xf32, #tpu.memory_space<vmem>>) attributes {dimension_semantics = [#tpu.dimension_semantics<parallel>], iteration_bounds = array<i64: 1>, scalar_prefetch = 1 : i64, scratch_operands = 0 : i64, tpu.core_type = #tpu.core_type<tc>, window_params = [{transform_indices = @transform_0, window_bounds = array<i64: 16, 384>}, {pipeline_mode = #tpu.pipeline_mode<synchronous>, transform_indices = @transform_1, window_bounds = array<i64: 384, 1536>}, {pipeline_mode = #tpu.pipeline_mode<synchronous>, transform_indices = @transform_2, window_bounds = array<i64: 1536, 384>}, {transform_indices = @transform_3, window_bounds = array<i64: 16, 384>}]} {
    %c0 = arith.constant 0 : index
    %c0_0 = arith.constant 0 : index
    %0 = vector.load %arg2[%c0, %c0_0] : memref<16x384xbf16, #tpu.memory_space<vmem>>, vector<16x384xbf16>
    %c0_1 = arith.constant 0 : index
    %c0_2 = arith.constant 0 : index
    %1 = vector.load %arg3[%c0_1, %c0_2] : memref<384x1536xbf16, #tpu.memory_space<vmem>>, vector<384x1536xbf16>
    %cst = arith.constant dense<0.000000e+00> : vector<16x1536xf32>
    %2 = tpu.matmul %0, %1, %cst {dimension_numbers = #tpu.dot_dimension_numbers<[1], [0], [0], [1], [0, 0, 1, 1], [], []>} : vector<16x384xbf16>, vector<384x1536xbf16>, vector<16x1536xf32> -> vector<16x1536xf32>
    %cst_3 = arith.constant 5.000000e-01 : f32
    %3 = vector.broadcast %cst_3 : f32 to vector<16x1536xf32>
    %4 = arith.mulf %3, %2 : vector<16x1536xf32>
    %5 = arith.mulf %2, %2 : vector<16x1536xf32>
    %6 = arith.mulf %5, %2 : vector<16x1536xf32>
    %cst_4 = arith.constant 4.471500e-02 : f32
    %7 = vector.broadcast %cst_4 : f32 to vector<16x1536xf32>
    %8 = arith.mulf %7, %6 : vector<16x1536xf32>
    %9 = arith.addf %2, %8 : vector<16x1536xf32>
    %cst_5 = arith.constant 0.797884583 : f32
    %10 = vector.broadcast %cst_5 : f32 to vector<16x1536xf32>
    %11 = arith.mulf %10, %9 : vector<16x1536xf32>
    %12 = math.tanh %11 : vector<16x1536xf32>
    %cst_6 = arith.constant 1.000000e+00 : f32
    %13 = vector.broadcast %cst_6 : f32 to vector<16x1536xf32>
    %14 = arith.addf %13, %12 : vector<16x1536xf32>
    %15 = arith.mulf %4, %14 : vector<16x1536xf32>
    %16 = arith.truncf %15 : vector<16x1536xf32> to vector<16x1536xbf16>
    %c0_7 = arith.constant 0 : index
    %c0_8 = arith.constant 0 : index
    %17 = vector.load %arg4[%c0_7, %c0_8] : memref<1536x384xbf16, #tpu.memory_space<vmem>>, vector<1536x384xbf16>
    %cst_9 = arith.constant dense<0.000000e+00> : vector<16x384xf32>
    %18 = tpu.matmul %16, %17, %cst_9 {dimension_numbers = #tpu.dot_dimension_numbers<[1], [0], [0], [1], [0, 0, 1, 1], [], []>} : vector<16x1536xbf16>, vector<1536x384xbf16>, vector<16x384xf32> -> vector<16x384xf32>
    %c0_10 = arith.constant 0 : index
    %c0_11 = arith.constant 0 : index
    %19 = vector.load %arg5[%c0_10, %c0_11] : memref<16x384xf32, #tpu.memory_space<vmem>>, vector<16x384xf32>
    tpu.vector_store %arg5[%c0_10, %c0_11], %18 {strides = array<i32>} : memref<16x384xf32, #tpu.memory_space<vmem>>, vector<16x384xf32>,
    return
  }
  func.func @transform_0(%arg0: i32, %arg1: memref<1xi32, #tpu.memory_space<smem>>) -> (i32, i32) {
    %c0_i32 = arith.constant 0 : i32
    %c0_i32_0 = arith.constant 0 : i32
    return %arg0, %c0_i32 : i32, i32
  }
  func.func @transform_1(%arg0: i32, %arg1: memref<1xi32, #tpu.memory_space<smem>>) -> (i32, i32) {
    %c0_i32 = arith.constant 0 : i32
    %c0_i32_0 = arith.constant 0 : i32
    %c0_i32_1 = arith.constant 0 : i32
    return %c0_i32, %c0_i32_0 : i32, i32
  }
  func.func @transform_2(%arg0: i32, %arg1: memref<1xi32, #tpu.memory_space<smem>>) -> (i32, i32) {
    %c0_i32 = arith.constant 0 : i32
    %c0_i32_0 = arith.constant 0 : i32
    %c0_i32_1 = arith.constant 0 : i32
    return %c0_i32, %c0_i32_0 : i32, i32
  }
  func.func @transform_3(%arg0: i32, %arg1: memref<1xi32, #tpu.memory_space<smem>>) -> (i32, i32) {
    %c0_i32 = arith.constant 0 : i32
    %c0_i32_0 = arith.constant 0 : i32
    return %arg0, %c0_i32 : i32, i32
  }
}

</mosaic_0001>

<llo_original>
// kernel: tpu_custom_call.1
$region0: #{tpu_custom_call.1}
  #allocation0 [shape = 'u32[]', space=smem, size = 0x4, offset = 0x4, fixed_abs, tag = 'smem constant byte address 0x4 - core index']
  #allocation1 [shape = 'u32[72,128]{1,0:T(1,128)}', space=vmem, size = 0x9000, scoped, tag = 'internal scratch']
  #allocation2 [shape = 's32[1]{0}', space=sflag, size = 0x4, scoped, tag = 'scoped memory for tpu_custom_call.1']
  #allocation3 [shape = 's32[1]{0:T(128)S(6)}', space=smem, size = 0x200, scoped, tag = 'prefetched SMEM operand 0']
  %s0 = inlined_call_operand.<no memory space> [shape: s32[1], index: 0, kind: input, shape index: {}]
  %s1 = inlined_call_operand.hbm [shape: bf16[16,384], index: 1, kind: input, shape index: {}]
  %s2 = inlined_call_operand.hbm [shape: bf16[384,1536], index: 2, kind: input, shape index: {}]
  %s3 = inlined_call_operand.hbm [shape: bf16[1536,384], index: 3, kind: input, shape index: {}]
  %s4 = inlined_call_operand.hbm [shape: f32[16,384], index: 4, kind: output, shape index: {}]
  %s5 = sld [smem:[#allocation0]]
  $region34: #{tpu_custom_call.1} parent=0
    _
  %s7 = ssub.s32 1, %s5
  %s8 = scalar_select 0, %s7, %s5
  %9 = sst [smem:[#allocation3]] %s0
  $region1: #{tpu_custom_call.1} parent=0
    #allocation4 [shape = 'u8[12288]{0}', space=vmem, size = 0x3000, scoped, tag = 'input window, operand 1, single buffered']
    #allocation5 [shape = 's32[1]{0}', space=sflag, size = 0x4, scoped, tag = 'scoped memory for tpu_custom_call.1']
    #allocation6 [shape = 's32[1]{0}', space=sflag, size = 0x4, scoped, tag = 'scoped memory for tpu_custom_call.1']
    #allocation7 [shape = 'u8[1179648]{0}', space=vmem, size = 0x120000, scoped, tag = 'input window, operand 2, single buffered']
    #allocation8 [shape = 's32[1]{0}', space=sflag, size = 0x4, scoped, tag = 'scoped memory for tpu_custom_call.1']
    #allocation9 [shape = 'u8[1179648]{0}', space=vmem, size = 0x120000, scoped, tag = 'input window, operand 3, single buffered']
    #allocation10 [shape = 'u8[24576]{0}', space=vmem, size = 0x6000, scoped, tag = 'output window, operand 0, single buffered']
    %10 = vsyncpa [#allocation5], 0
    %11 = vsyncpa [#allocation8], 0
    %12 = vsyncpa [#allocation6], 0
    // Predicated region
    $region2: #{tpu_custom_call.1} parent=1 // pred_check
      _
    $region3: #{tpu_custom_call.1} parent=1 // pred_check_branch
      %14 = sbr.rel (0) target = $region5
    $region4: #{tpu_custom_call.1} parent=1 // pred_region
      %16 = vsyncadd [#allocation5], 0
      %s17 = sshll.u32 %s1, 4
      %s18 = int_to_ptr.hbm [resolvable:$true] %s17
      %s19 = sshll.u32 [#allocation4], 4
      %s20 = int_to_ptr.vmem [resolvable:$true] %s19
      %25 = dma.hbm_to_vmem [thread:$0]  %s18, 384, %s20, [#allocation5], 192, 192, 12
    $region5: #{tpu_custom_call.1} parent=1 // pred_fallthru
      _
    // Predicated region
    $region6: #{tpu_custom_call.1} parent=1 // pred_check
      _
    $region7: #{tpu_custom_call.1} parent=1 // pred_check_branch
      %27 = sbr.rel (0) target = $region9
    $region8: #{tpu_custom_call.1} parent=1 // pred_region
      %29 = vsyncadd [#allocation8], 0
      %s30 = sshll.u32 %s2, 4
      %s31 = int_to_ptr.hbm [resolvable:$true] %s30
      %s32 = sshll.u32 [#allocation7], 4
      %s33 = int_to_ptr.vmem [resolvable:$true] %s32
      %38 = dma.hbm_to_vmem [thread:$0]  %s31, 36864, %s33, [#allocation8], 768, 768, 48
    $region9: #{tpu_custom_call.1} parent=1 // pred_fallthru
      _
    // Predicated region
    $region10: #{tpu_custom_call.1} parent=1 // pred_check
      _
    $region11: #{tpu_custom_call.1} parent=1 // pred_check_branch
      %40 = sbr.rel (0) target = $region13
    $region12: #{tpu_custom_call.1} parent=1 // pred_region
      %42 = vsyncadd [#allocation8], 0
      %s43 = sshll.u32 %s3, 4
      %s44 = int_to_ptr.hbm [resolvable:$true] %s43
      %s45 = sshll.u32 [#allocation9], 4
      %s46 = int_to_ptr.vmem [resolvable:$true] %s45
      %51 = dma.hbm_to_vmem [thread:$0]  %s44, 36864, %s46, [#allocation8], 192, 192, 12
    $region13: #{tpu_custom_call.1} parent=1 // pred_fallthru
      _
    // Predicated region
    $region14: #{tpu_custom_call.1} parent=1 // pred_check
      _
    $region15: #{tpu_custom_call.1} parent=1 // pred_check_branch
      %53 = sbr.rel (0) target = $region17
    $region16: #{tpu_custom_call.1} parent=1 // pred_region
      %55 = dma.done [#allocation5], 384
    $region17: #{tpu_custom_call.1} parent=1 // pred_fallthru
      _
    // Predicated region
    $region18: #{tpu_custom_call.1} parent=1 // pred_check
      _
    $region19: #{tpu_custom_call.1} parent=1 // pred_check_branch
      %57 = sbr.rel (0) target = $region21
    $region20: #{tpu_custom_call.1} parent=1 // pred_region
      %59 = dma.done [#allocation8], 36864
    $region21: #{tpu_custom_call.1} parent=1 // pred_fallthru
      _
    // Predicated region
    $region22: #{tpu_custom_call.1} parent=1 // pred_check
      _
    $region23: #{tpu_custom_call.1} parent=1 // pred_check_branch
      %61 = sbr.rel (0) target = $region25
    $region24: #{tpu_custom_call.1} parent=1 // pred_region
      %63 = dma.done [#allocation8], 36864
    $region25: #{tpu_custom_call.1} parent=1 // pred_fallthru
      _
    %v64 = vld [vmem:[#allocation4] sm:$0xff]
    %v65 = vld [vmem:[#allocation4 + $0x8] sm:$0xf]
    %v66 = vld [vmem:[#allocation4 + $0xc] sm:$0xff]
    %v67 = vld [vmem:[#allocation4 + $0x14] sm:$0xf]
    %v68 = vld [vmem:[#allocation7] sm:$0xff]
    %v69 = vld [vmem:[#allocation7 + $0x8] sm:$0xff]
    %v70 = vld [vmem:[#allocation7 + $0x10] sm:$0xff]
    %v71 = vld [vmem:[#allocation7 + $0x18] sm:$0xff]
    %v72 = vld [vmem:[#allocation7 + $0x20] sm:$0xff]
    %v73 = vld [vmem:[#allocation7 + $0x28] sm:$0xff]
    %v74 = vld [vmem:[#allocation7 + $0x30] sm:$0xff]
    %v75 = vld [vmem:[#allocation7 + $0x38] sm:$0xff]
    %v76 = vld [vmem:[#allocation7 + $0x40] sm:$0xff]
    %v77 = vld [vmem:[#allocation7 + $0x48] sm:$0xff]
    %v78 = vld [vmem:[#allocation7 + $0x50] sm:$0xff]
    %v79 = vld [vmem:[#allocation7 + $0x58] sm:$0xff]
    %v80 = vld [vmem:[#allocation7 + $0x60] sm:$0xff]
    %v81 = vld [vmem:[#allocation7 + $0x68] sm:$0xff]
    %v82 = vld [vmem:[#allocation7 + $0x70] sm:$0xff]
    %v83 = vld [vmem:[#allocation7 + $0x78] sm:$0xff]
    %v84 = vld [vmem:[#allocation7 + $0x80] sm:$0xff]
    %v85 = vld [vmem:[#allocation7 + $0x88] sm:$0xff]
    %v86 = vld [vmem:[#allocation7 + $0x90] sm:$0xff]
    %v87 = vld [vmem:[#allocation7 + $0x98] sm:$0xff]
    %v88 = vld [vmem:[#allocation7 + $0xa0] sm:$0xff]
    %v89 = vld [vmem:[#allocation7 + $0xa8] sm:$0xff]
    %v90 = vld [vmem:[#allocation7 + $0xb0] sm:$0xff]
    %v91 = vld [vmem:[#allocation7 + $0xb8] sm:$0xff]
    %v92 = vld [vmem:[#allocation7 + $0xc0] sm:$0xff]
    %v93 = vld [vmem:[#allocation7 + $0xc8] sm:$0xff]
    %v94 = vld [vmem:[#allocation7 + $0xd0] sm:$0xff]
    %v95 = vld [vmem:[#allocation7 + $0xd8] sm:$0xff]
    %v96 = vld [vmem:[#allocation7 + $0xe0] sm:$0xff]
    %v97 = vld [vmem:[#allocation7 + $0xe8] sm:$0xff]
    %v98 = vld [vmem:[#allocation7 + $0xf0] sm:$0xff]
    %v99 = vld [vmem:[#allocation7 + $0xf8] sm:$0xff]
    %v100 = vld [vmem:[#allocation7 + $0x100] sm:$0xff]
    %v101 = vld [vmem:[#allocation7 + $0x108] sm:$0xff]
    %v102 = vld [vmem:[#allocation7 + $0x110] sm:$0xff]
    %v103 = vld [vmem:[#allocation7 + $0x118] sm:$0xff]
    %v104 = vld [vmem:[#allocation7 + $0x120] sm:$0xff]
    %v105 = vld [vmem:[#allocation7 + $0x128] sm:$0xff]
    %v106 = vld [vmem:[#allocation7 + $0x130] sm:$0xff]
    %v107 = vld [vmem:[#allocation7 + $0x138] sm:$0xff]
    %v108 = vld [vmem:[#allocation7 + $0x140] sm:$0xff]
    %v109 = vld [vmem:[#allocation7 + $0x148] sm:$0xff]
    %v110 = vld [vmem:[#allocation7 + $0x150] sm:$0xff]
    %v111 = vld [vmem:[#allocation7 + $0x158] sm:$0xff]
    %v112 = vld [vmem:[#allocation7 + $0x160] sm:$0xff]
    %v113 = vld [vmem:[#allocation7 + $0x168] sm:$0xff]
    %v114 = vld [vmem:[#allocation7 + $0x170] sm:$0xff]
    %v115 = vld [vmem:[#allocation7 + $0x178] sm:$0xff]
    %v116 = vld [vmem:[#allocation7 + $0x180] sm:$0xff]
    %v117 = vld [vmem:[#allocation7 + $0x188] sm:$0xff]
    %v118 = vld [vmem:[#allocation7 + $0x190] sm:$0xff]
    %v119 = vld [vmem:[#allocation7 + $0x198] sm:$0xff]
    %v120 = vld [vmem:[#allocation7 + $0x1a0] sm:$0xff]
    %v121 = vld [vmem:[#allocation7 + $0x1a8] sm:$0xff]
    %v122 = vld [vmem:[#allocation7 + $0x1b0] sm:$0xff]
    %v123 = vld [vmem:[#allocation7 + $0x1b8] sm:$0xff]
    %v124 = vld [vmem:[#allocation7 + $0x1c0] sm:$0xff]
    %v125 = vld [vmem:[#allocation7 + $0x1c8] sm:$0xff]
    %v126 = vld [vmem:[#allocation7 + $0x1d0] sm:$0xff]
    %v127 = vld [vmem:[#allocation7 + $0x1d8] sm:$0xff]
    %v128 = vld [vmem:[#allocation7 + $0x1e0] sm:$0xff]
    %v129 = vld [vmem:[#allocation7 + $0x1e8] sm:$0xff]
    %v130 = vld [vmem:[#allocation7 + $0x1f0] sm:$0xff]
    %v131 = vld [vmem:[#allocation7 + $0x1f8] sm:$0xff]
    %v132 = vld [vmem:[#allocation7 + $0x200] sm:$0xff]
    %v133 = vld [vmem:[#allocation7 + $0x208] sm:$0xff]
    %v134 = vld [vmem:[#allocation7 + $0x210] sm:$0xff]
    %v135 = vld [vmem:[#allocation7 + $0x218] sm:$0xff]
    %v136 = vld [vmem:[#allocation7 + $0x220] sm:$0xff]
    %v137 = vld [vmem:[#allocation7 + $0x228] sm:$0xff]
    %v138 = vld [vmem:[#allocation7 + $0x230] sm:$0xff]
    %v139 = vld [vmem:[#allocation7 + $0x238] sm:$0xff]
    %v140 = vld [vmem:[#allocation7 + $0x240] sm:$0xff]
    %v141 = vld [vmem:[#allocation7 + $0x248] sm:$0xff]
    %v142 = vld [vmem:[#allocation7 + $0x250] sm:$0xff]
    %v143 = vld [vmem:[#allocation7 + $0x258] sm:$0xff]
    %v144 = vld [vmem:[#allocation7 + $0x260] sm:$0xff]
    %v145 = vld [vmem:[#allocation7 + $0x268] sm:$0xff]
    %v146 = vld [vmem:[#allocation7 + $0x270] sm:$0xff]
    %v147 = vld [vmem:[#allocation7 + $0x278] sm:$0xff]
    %v148 = vld [vmem:[#allocation7 + $0x280] sm:$0xff]
    %v149 = vld [vmem:[#allocation7 + $0x288] sm:$0xff]
    %v150 = vld [vmem:[#allocation7 + $0x290] sm:$0xff]
    %v151 = vld [vmem:[#allocation7 + $0x298] sm:$0xff]
    %v152 = vld [vmem:[#allocation7 + $0x2a0] sm:$0xff]
    %v153 = vld [vmem:[#allocation7 + $0x2a8] sm:$0xff]
    %v154 = vld [vmem:[#allocation7 + $0x2b0] sm:$0xff]
    %v155 = vld [vmem:[#allocation7 + $0x2b8] sm:$0xff]
    %v156 = vld [vmem:[#allocation7 + $0x2c0] sm:$0xff]
    %v157 = vld [vmem:[#allocation7 + $0x2c8] sm:$0xff]
    %v158 = vld [vmem:[#allocation7 + $0x2d0] sm:$0xff]
    %v159 = vld [vmem:[#allocation7 + $0x2d8] sm:$0xff]
    %v160 = vld [vmem:[#allocation7 + $0x2e0] sm:$0xff]
    %v161 = vld [vmem:[#allocation7 + $0x2e8] sm:$0xff]
    %v162 = vld [vmem:[#allocation7 + $0x2f0] sm:$0xff]
    %v163 = vld [vmem:[#allocation7 + $0x2f8] sm:$0xff]
    %v164 = vld [vmem:[#allocation7 + $0x300] sm:$0xff]
    %v165 = vld [vmem:[#allocation7 + $0x308] sm:$0xff]
    %v166 = vld [vmem:[#allocation7 + $0x310] sm:$0xff]
    %v167 = vld [vmem:[#allocation7 + $0x318] sm:$0xff]
    %v168 = vld [vmem:[#allocation7 + $0x320] sm:$0xff]
    %v169 = vld [vmem:[#allocation7 + $0x328] sm:$0xff]
    %v170 = vld [vmem:[#allocation7 + $0x330] sm:$0xff]
    %v171 = vld [vmem:[#allocation7 + $0x338] sm:$0xff]
    %v172 = vld [vmem:[#allocation7 + $0x340] sm:$0xff]
    %v173 = vld [vmem:[#allocation7 + $0x348] sm:$0xff]
    %v174 = vld [vmem:[#allocation7 + $0x350] sm:$0xff]
    %v175 = vld [vmem:[#allocation7 + $0x358] sm:$0xff]
    %v176 = vld [vmem:[#allocation7 + $0x360] sm:$0xff]
    %v177 = vld [vmem:[#allocation7 + $0x368] sm:$0xff]
    %v178 = vld [vmem:[#allocation7 + $0x370] sm:$0xff]
    %v179 = vld [vmem:[#allocation7 + $0x378] sm:$0xff]
    %v180 = vld [vmem:[#allocation7 + $0x380] sm:$0xff]
    %v181 = vld [vmem:[#allocation7 + $0x388] sm:$0xff]
    %v182 = vld [vmem:[#allocation7 + $0x390] sm:$0xff]
    %v183 = vld [vmem:[#allocation7 + $0x398] sm:$0xff]
    %v184 = vld [vmem:[#allocation7 + $0x3a0] sm:$0xff]
    %v185 = vld [vmem:[#allocation7 + $0x3a8] sm:$0xff]
    %v186 = vld [vmem:[#allocation7 + $0x3b0] sm:$0xff]
    %v187 = vld [vmem:[#allocation7 + $0x3b8] sm:$0xff]
    %v188 = vld [vmem:[#allocation7 + $0x3c0] sm:$0xff]
    %v189 = vld [vmem:[#allocation7 + $0x3c8] sm:$0xff]
    %v190 = vld [vmem:[#allocation7 + $0x3d0] sm:$0xff]
    %v191 = vld [vmem:[#allocation7 + $0x3d8] sm:$0xff]
    %v192 = vld [vmem:[#allocation7 + $0x3e0] sm:$0xff]
    %v193 = vld [vmem:[#allocation7 + $0x3e8] sm:$0xff]
    %v194 = vld [vmem:[#allocation7 + $0x3f0] sm:$0xff]
    %v195 = vld [vmem:[#allocation7 + $0x3f8] sm:$0xff]
    %v196 = vld [vmem:[#allocation7 + $0x400] sm:$0xff]
    %v197 = vld [vmem:[#allocation7 + $0x408] sm:$0xff]
    %v198 = vld [vmem:[#allocation7 + $0x410] sm:$0xff]
    %v199 = vld [vmem:[#allocation7 + $0x418] sm:$0xff]
    %v200 = vld [vmem:[#allocation7 + $0x420] sm:$0xff]
    %v201 = vld [vmem:[#allocation7 + $0x428] sm:$0xff]
    %v202 = vld [vmem:[#allocation7 + $0x430] sm:$0xff]
    %v203 = vld [vmem:[#allocation7 + $0x438] sm:$0xff]
    %v204 = vld [vmem:[#allocation7 + $0x440] sm:$0xff]
    %v205 = vld [vmem:[#allocation7 + $0x448] sm:$0xff]
    %v206 = vld [vmem:[#allocation7 + $0x450] sm:$0xff]
    %v207 = vld [vmem:[#allocation7 + $0x458] sm:$0xff]
    %v208 = vld [vmem:[#allocation7 + $0x460] sm:$0xff]
    %v209 = vld [vmem:[#allocation7 + $0x468] sm:$0xff]
    %v210 = vld [vmem:[#allocation7 + $0x470] sm:$0xff]
    %v211 = vld [vmem:[#allocation7 + $0x478] sm:$0xff]
    %v212 = vld [vmem:[#allocation7 + $0x480] sm:$0xff]
    %v213 = vld [vmem:[#allocation7 + $0x488] sm:$0xff]
    %v214 = vld [vmem:[#allocation7 + $0x490] sm:$0xff]
    %v215 = vld [vmem:[#allocation7 + $0x498] sm:$0xff]
    %v216 = vld [vmem:[#allocation7 + $0x4a0] sm:$0xff]
    %v217 = vld [vmem:[#allocation7 + $0x4a8] sm:$0xff]
    %v218 = vld [vmem:[#allocation7 + $0x4b0] sm:$0xff]
    %v219 = vld [vmem:[#allocation7 + $0x4b8] sm:$0xff]
    %v220 = vld [vmem:[#allocation7 + $0x4c0] sm:$0xff]
    %v221 = vld [vmem:[#allocation7 + $0x4c8] sm:$0xff]
    %v222 = vld [vmem:[#allocation7 + $0x4d0] sm:$0xff]
    %v223 = vld [vmem:[#allocation7 + $0x4d8] sm:$0xff]
    %v224 = vld [vmem:[#allocation7 + $0x4e0] sm:$0xff]
    %v225 = vld [vmem:[#allocation7 + $0x4e8] sm:$0xff]
    %v226 = vld [vmem:[#allocation7 + $0x4f0] sm:$0xff]
    %v227 = vld [vmem:[#allocation7 + $0x4f8] sm:$0xff]
    %v228 = vld [vmem:[#allocation7 + $0x500] sm:$0xff]
    %v229 = vld [vmem:[#allocation7 + $0x508] sm:$0xff]
    %v230 = vld [vmem:[#allocation7 + $0x510] sm:$0xff]
    %v231 = vld [vmem:[#allocation7 + $0x518] sm:$0xff]
    %v232 = vld [vmem:[#allocation7 + $0x520] sm:$0xff]
    %v233 = vld [vmem:[#allocation7 + $0x528] sm:$0xff]
    %v234 = vld [vmem:[#allocation7 + $0x530] sm:$0xff]
    %v235 = vld [vmem:[#allocation7 + $0x538] sm:$0xff]
    %v236 = vld [vmem:[#allocation7 + $0x540] sm:$0xff]
    %v237 = vld [vmem:[#allocation7 + $0x548] sm:$0xff]
    %v238 = vld [vmem:[#allocation7 + $0x550] sm:$0xff]
    %v239 = vld [vmem:[#allocation7 + $0x558] sm:$0xff]
    %v240 = vld [vmem:[#allocation7 + $0x560] sm:$0xff]
    %v241 = vld [vmem:[#allocation7 + $0x568] sm:$0xff]
    %v242 = vld [vmem:[#allocation7 + $0x570] sm:$0xff]
    %v243 = vld [vmem:[#allocation7 + $0x578] sm:$0xff]
    %v244 = vld [vmem:[#allocation7 + $0x580] sm:$0xff]
    %v245 = vld [vmem:[#allocation7 + $0x588] sm:$0xff]
    %v246 = vld [vmem:[#allocation7 + $0x590] sm:$0xff]
    %v247 = vld [vmem:[#allocation7 + $0x598] sm:$0xff]
    %v248 = vld [vmem:[#allocation7 + $0x5a0] sm:$0xff]
    %v249 = vld [vmem:[#allocation7 + $0x5a8] sm:$0xff]
    %v250 = vld [vmem:[#allocation7 + $0x5b0] sm:$0xff]
    %v251 = vld [vmem:[#allocation7 + $0x5b8] sm:$0xff]
    %v252 = vld [vmem:[#allocation7 + $0x5c0] sm:$0xff]
    %v253 = vld [vmem:[#allocation7 + $0x5c8] sm:$0xff]
    %v254 = vld [vmem:[#allocation7 + $0x5d0] sm:$0xff]
    %v255 = vld [vmem:[#allocation7 + $0x5d8] sm:$0xff]
    %v256 = vld [vmem:[#allocation7 + $0x5e0] sm:$0xff]
    %v257 = vld [vmem:[#allocation7 + $0x5e8] sm:$0xff]
    %v258 = vld [vmem:[#allocation7 + $0x5f0] sm:$0xff]
    %v259 = vld [vmem:[#allocation7 + $0x5f8] sm:$0xff]
    %v260 = vld [vmem:[#allocation7 + $0x600] sm:$0xff]
    %v261 = vld [vmem:[#allocation7 + $0x608] sm:$0xff]
    %v262 = vld [vmem:[#allocation7 + $0x610] sm:$0xff]
    %v263 = vld [vmem:[#allocation7 + $0x618] sm:$0xff]
    %v264 = vld [vmem:[#allocation7 + $0x620] sm:$0xff]
    %v265 = vld [vmem:[#allocation7 + $0x628] sm:$0xff]
    %v266 = vld [vmem:[#allocation7 + $0x630] sm:$0xff]
    %v267 = vld [vmem:[#allocation7 + $0x638] sm:$0xff]
    %v268 = vld [vmem:[#allocation7 + $0x640] sm:$0xff]
    %v269 = vld [vmem:[#allocation7 + $0x648] sm:$0xff]
    %v270 = vld [vmem:[#allocation7 + $0x650] sm:$0xff]
    %v271 = vld [vmem:[#allocation7 + $0x658] sm:$0xff]
    %v272 = vld [vmem:[#allocation7 + $0x660] sm:$0xff]
    %v273 = vld [vmem:[#allocation7 + $0x668] sm:$0xff]
    %v274 = vld [vmem:[#allocation7 + $0x670] sm:$0xff]
    %v275 = vld [vmem:[#allocation7 + $0x678] sm:$0xff]
    %v276 = vld [vmem:[#allocation7 + $0x680] sm:$0xff]
    %v277 = vld [vmem:[#allocation7 + $0x688] sm:$0xff]
    %v278 = vld [vmem:[#allocation7 + $0x690] sm:$0xff]
    %v279 = vld [vmem:[#allocation7 + $0x698] sm:$0xff]
    %v280 = vld [vmem:[#allocation7 + $0x6a0] sm:$0xff]
    %v281 = vld [vmem:[#allocation7 + $0x6a8] sm:$0xff]
    %v282 = vld [vmem:[#allocation7 + $0x6b0] sm:$0xff]
    %v283 = vld [vmem:[#allocation7 + $0x6b8] sm:$0xff]
    %v284 = vld [vmem:[#allocation7 + $0x6c0] sm:$0xff]
    %v285 = vld [vmem:[#allocation7 + $0x6c8] sm:$0xff]
    %v286 = vld [vmem:[#allocation7 + $0x6d0] sm:$0xff]
    %v287 = vld [vmem:[#allocation7 + $0x6d8] sm:$0xff]
    %v288 = vld [vmem:[#allocation7 + $0x6e0] sm:$0xff]
    %v289 = vld [vmem:[#allocation7 + $0x6e8] sm:$0xff]
    %v290 = vld [vmem:[#allocation7 + $0x6f0] sm:$0xff]
    %v291 = vld [vmem:[#allocation7 + $0x6f8] sm:$0xff]
    %v292 = vld [vmem:[#allocation7 + $0x700] sm:$0xff]
    %v293 = vld [vmem:[#allocation7 + $0x708] sm:$0xff]
    %v294 = vld [vmem:[#allocation7 + $0x710] sm:$0xff]
    %v295 = vld [vmem:[#allocation7 + $0x718] sm:$0xff]
    %v296 = vld [vmem:[#allocation7 + $0x720] sm:$0xff]
    %v297 = vld [vmem:[#allocation7 + $0x728] sm:$0xff]
    %v298 = vld [vmem:[#allocation7 + $0x730] sm:$0xff]
    %v299 = vld [vmem:[#allocation7 + $0x738] sm:$0xff]
    %v300 = vld [vmem:[#allocation7 + $0x740] sm:$0xff]
    %v301 = vld [vmem:[#allocation7 + $0x748] sm:$0xff]
    %v302 = vld [vmem:[#allocation7 + $0x750] sm:$0xff]
    %v303 = vld [vmem:[#allocation7 + $0x758] sm:$0xff]
    %v304 = vld [vmem:[#allocation7 + $0x760] sm:$0xff]
    %v305 = vld [vmem:[#allocation7 + $0x768] sm:$0xff]
    %v306 = vld [vmem:[#allocation7 + $0x770] sm:$0xff]
    %v307 = vld [vmem:[#allocation7 + $0x778] sm:$0xff]
    %v308 = vld [vmem:[#allocation7 + $0x780] sm:$0xff]
    %v309 = vld [vmem:[#allocation7 + $0x788] sm:$0xff]
    %v310 = vld [vmem:[#allocation7 + $0x790] sm:$0xff]
    %v311 = vld [vmem:[#allocation7 + $0x798] sm:$0xff]
    %v312 = vld [vmem:[#allocation7 + $0x7a0] sm:$0xff]
    %v313 = vld [vmem:[#allocation7 + $0x7a8] sm:$0xff]
    %v314 = vld [vmem:[#allocation7 + $0x7b0] sm:$0xff]
    %v315 = vld [vmem:[#allocation7 + $0x7b8] sm:$0xff]
    %v316 = vld [vmem:[#allocation7 + $0x7c0] sm:$0xff]
    %v317 = vld [vmem:[#allocation7 + $0x7c8] sm:$0xff]
    %v318 = vld [vmem:[#allocation7 + $0x7d0] sm:$0xff]
    %v319 = vld [vmem:[#allocation7 + $0x7d8] sm:$0xff]
    %v320 = vld [vmem:[#allocation7 + $0x7e0] sm:$0xff]
    %v321 = vld [vmem:[#allocation7 + $0x7e8] sm:$0xff]
    %v322 = vld [vmem:[#allocation7 + $0x7f0] sm:$0xff]
    %v323 = vld [vmem:[#allocation7 + $0x7f8] sm:$0xff]
    %v324 = vld [vmem:[#allocation7 + $0x800] sm:$0xff]
    %v325 = vld [vmem:[#allocation7 + $0x808] sm:$0xff]
    %v326 = vld [vmem:[#allocation7 + $0x810] sm:$0xff]
    %v327 = vld [vmem:[#allocation7 + $0x818] sm:$0xff]
    %v328 = vld [vmem:[#allocation7 + $0x820] sm:$0xff]
    %v329 = vld [vmem:[#allocation7 + $0x828] sm:$0xff]
    %v330 = vld [vmem:[#allocation7 + $0x830] sm:$0xff]
    %v331 = vld [vmem:[#allocation7 + $0x838] sm:$0xff]
    %v332 = vld [vmem:[#allocation7 + $0x840] sm:$0xff]
    %v333 = vld [vmem:[#allocation7 + $0x848] sm:$0xff]
    %v334 = vld [vmem:[#allocation7 + $0x850] sm:$0xff]
    %v335 = vld [vmem:[#allocation7 + $0x858] sm:$0xff]
    %v336 = vld [vmem:[#allocation7 + $0x860] sm:$0xff]
    %v337 = vld [vmem:[#allocation7 + $0x868] sm:$0xff]
    %v338 = vld [vmem:[#allocation7 + $0x870] sm:$0xff]
    %v339 = vld [vmem:[#allocation7 + $0x878] sm:$0xff]
    %v340 = vld [vmem:[#allocation7 + $0x880] sm:$0xff]
    %v341 = vld [vmem:[#allocation7 + $0x888] sm:$0xff]
    %v342 = vld [vmem:[#allocation7 + $0x890] sm:$0xff]
    %v343 = vld [vmem:[#allocation7 + $0x898] sm:$0xff]
    %v344 = vld [vmem:[#allocation7 + $0x8a0] sm:$0xff]
    %v345 = vld [vmem:[#allocation7 + $0x8a8] sm:$0xff]
    %v346 = vld [vmem:[#allocation7 + $0x8b0] sm:$0xff]
    %v347 = vld [vmem:[#allocation7 + $0x8b8] sm:$0xff]
    %v348 = vld [vmem:[#allocation7 + $0x8c0] sm:$0xff]
    %v349 = vld [vmem:[#allocation7 + $0x8c8] sm:$0xff]
    %v350 = vld [vmem:[#allocation7 + $0x8d0] sm:$0xff]
    %v351 = vld [vmem:[#allocation7 + $0x8d8] sm:$0xff]
    %v352 = vld [vmem:[#allocation7 + $0x8e0] sm:$0xff]
    %v353 = vld [vmem:[#allocation7 + $0x8e8] sm:$0xff]
    %v354 = vld [vmem:[#allocation7 + $0x8f0] sm:$0xff]
    %v355 = vld [vmem:[#allocation7 + $0x8f8] sm:$0xff]
    %v360 = vunpack.c.l.b16 %v64
    %v361 = vunpack.c.h.b16 %v64
    %v362 = vunpack.c.l.b16 %v65
    %v363 = vunpack.c.l.b16 %v66
    %v364 = vunpack.c.h.b16 %v66
    %v365 = vunpack.c.l.b16 %v67
    %v366 = vpack.c.b16 %v363, %v360
    %v367 = vpack.c.b16 %v364, %v361
    %v368 = vpack.c.b16 %v365, %v362
    %v660 = vunpack.c.l.b16 %v68
    %v661 = vunpack.c.h.b16 %v68
    %v662 = vunpack.c.l.b16 %v69
    %v663 = vunpack.c.h.b16 %v69
    %v664 = vunpack.c.l.b16 %v70
    %v665 = vunpack.c.h.b16 %v70
    %v666 = vunpack.c.l.b16 %v71
    %v667 = vunpack.c.h.b16 %v71
    %v668 = vunpack.c.l.b16 %v72
    %v669 = vunpack.c.h.b16 %v72
    %v670 = vunpack.c.l.b16 %v73
    %v671 = vunpack.c.h.b16 %v73
    %v672 = vunpack.c.l.b16 %v74
    %v673 = vunpack.c.h.b16 %v74
    %v674 = vunpack.c.l.b16 %v75
    %v675 = vunpack.c.h.b16 %v75
    %v676 = vunpack.c.l.b16 %v76
    %v677 = vunpack.c.h.b16 %v76
    %v678 = vunpack.c.l.b16 %v77
    %v679 = vunpack.c.h.b16 %v77
    %v680 = vunpack.c.l.b16 %v78
    %v681 = vunpack.c.h.b16 %v78
    %v682 = vunpack.c.l.b16 %v79
    %v683 = vunpack.c.h.b16 %v79
    %v684 = vunpack.c.l.b16 %v80
    %v685 = vunpack.c.h.b16 %v80
    %v686 = vunpack.c.l.b16 %v81
    %v687 = vunpack.c.h.b16 %v81
    %v688 = vunpack.c.l.b16 %v82
    %v689 = vunpack.c.h.b16 %v82
    %v690 = vunpack.c.l.b16 %v83
    %v691 = vunpack.c.h.b16 %v83
    %v692 = vunpack.c.l.b16 %v84
    %v693 = vunpack.c.h.b16 %v84
    %v694 = vunpack.c.l.b16 %v85
    %v695 = vunpack.c.h.b16 %v85
    %v696 = vunpack.c.l.b16 %v86
    %v697 = vunpack.c.h.b16 %v86
    %v698 = vunpack.c.l.b16 %v87
    %v699 = vunpack.c.h.b16 %v87
    %v700 = vunpack.c.l.b16 %v88
    %v701 = vunpack.c.h.b16 %v88
    %v702 = vunpack.c.l.b16 %v89
    %v703 = vunpack.c.h.b16 %v89
    %v704 = vunpack.c.l.b16 %v90
    %v705 = vunpack.c.h.b16 %v90
    %v706 = vunpack.c.l.b16 %v91
    %v707 = vunpack.c.h.b16 %v91
    %v708 = vunpack.c.l.b16 %v92
    %v709 = vunpack.c.h.b16 %v92
    %v710 = vunpack.c.l.b16 %v93
    %v711 = vunpack.c.h.b16 %v93
    %v712 = vunpack.c.l.b16 %v94
    %v713 = vunpack.c.h.b16 %v94
    %v714 = vunpack.c.l.b16 %v95
    %v715 = vunpack.c.h.b16 %v95
    %v716 = vunpack.c.l.b16 %v96
    %v717 = vunpack.c.h.b16 %v96
    %v718 = vunpack.c.l.b16 %v97
    %v719 = vunpack.c.h.b16 %v97
    %v720 = vunpack.c.l.b16 %v98
    %v721 = vunpack.c.h.b16 %v98
    %v722 = vunpack.c.l.b16 %v99
    %v723 = vunpack.c.h.b16 %v99
    %v724 = vunpack.c.l.b16 %v100
    %v725 = vunpack.c.h.b16 %v100
    %v726 = vunpack.c.l.b16 %v101
    %v727 = vunpack.c.h.b16 %v101
    %v728 = vunpack.c.l.b16 %v102
    %v729 = vunpack.c.h.b16 %v102
    %v730 = vunpack.c.l.b16 %v103
    %v731 = vunpack.c.h.b16 %v103
    %v732 = vunpack.c.l.b16 %v104
    %v733 = vunpack.c.h.b16 %v104
    %v734 = vunpack.c.l.b16 %v105
    %v735 = vunpack.c.h.b16 %v105
    %v736 = vunpack.c.l.b16 %v106
    %v737 = vunpack.c.h.b16 %v106
    %v738 = vunpack.c.l.b16 %v107
    %v739 = vunpack.c.h.b16 %v107
    %v740 = vunpack.c.l.b16 %v108
    %v741 = vunpack.c.h.b16 %v108
    %v742 = vunpack.c.l.b16 %v109
    %v743 = vunpack.c.h.b16 %v109
    %v744 = vunpack.c.l.b16 %v110
    %v745 = vunpack.c.h.b16 %v110
    %v746 = vunpack.c.l.b16 %v111
    %v747 = vunpack.c.h.b16 %v111
    %v748 = vunpack.c.l.b16 %v112
    %v749 = vunpack.c.h.b16 %v112
    %v750 = vunpack.c.l.b16 %v113
    %v751 = vunpack.c.h.b16 %v113
    %v752 = vunpack.c.l.b16 %v114
    %v753 = vunpack.c.h.b16 %v114
    %v754 = vunpack.c.l.b16 %v115
    %v755 = vunpack.c.h.b16 %v115
    %v756 = vunpack.c.l.b16 %v116
    %v757 = vunpack.c.h.b16 %v116
    %v758 = vunpack.c.l.b16 %v117
    %v759 = vunpack.c.h.b16 %v117
    %v760 = vunpack.c.l.b16 %v118
    %v761 = vunpack.c.h.b16 %v118
    %v762 = vunpack.c.l.b16 %v119
    %v763 = vunpack.c.h.b16 %v119
    %v764 = vunpack.c.l.b16 %v120
    %v765 = vunpack.c.h.b16 %v120
    %v766 = vunpack.c.l.b16 %v121
    %v767 = vunpack.c.h.b16 %v121
    %v768 = vunpack.c.l.b16 %v122
    %v769 = vunpack.c.h.b16 %v122
    %v770 = vunpack.c.l.b16 %v123
    %v771 = vunpack.c.h.b16 %v123
    %v772 = vunpack.c.l.b16 %v124
    %v773 = vunpack.c.h.b16 %v124
    %v774 = vunpack.c.l.b16 %v125
    %v775 = vunpack.c.h.b16 %v125
    %v776 = vunpack.c.l.b16 %v126
    %v777 = vunpack.c.h.b16 %v126
    %v778 = vunpack.c.l.b16 %v127
    %v779 = vunpack.c.h.b16 %v127
    %v780 = vunpack.c.l.b16 %v128
    %v781 = vunpack.c.h.b16 %v128
    %v782 = vunpack.c.l.b16 %v129
    %v783 = vunpack.c.h.b16 %v129
    %v784 = vunpack.c.l.b16 %v130
    %v785 = vunpack.c.h.b16 %v130
    %v786 = vunpack.c.l.b16 %v131
    %v787 = vunpack.c.h.b16 %v131
    %v788 = vunpack.c.l.b16 %v132
    %v789 = vunpack.c.h.b16 %v132
    %v790 = vunpack.c.l.b16 %v133
    %v791 = vunpack.c.h.b16 %v133
    %v792 = vunpack.c.l.b16 %v134
    %v793 = vunpack.c.h.b16 %v134
    %v794 = vunpack.c.l.b16 %v135
    %v795 = vunpack.c.h.b16 %v135
    %v796 = vunpack.c.l.b16 %v136
    %v797 = vunpack.c.h.b16 %v136
    %v798 = vunpack.c.l.b16 %v137
    %v799 = vunpack.c.h.b16 %v137
    %v800 = vunpack.c.l.b16 %v138
    %v801 = vunpack.c.h.b16 %v138
    %v802 = vunpack.c.l.b16 %v139
    %v803 = vunpack.c.h.b16 %v139
    %v804 = vunpack.c.l.b16 %v140
    %v805 = vunpack.c.h.b16 %v140
    %v806 = vunpack.c.l.b16 %v141
    %v807 = vunpack.c.h.b16 %v141
    %v808 = vunpack.c.l.b16 %v142
    %v809 = vunpack.c.h.b16 %v142
    %v810 = vunpack.c.l.b16 %v143
    %v811 = vunpack.c.h.b16 %v143
    %v812 = vunpack.c.l.b16 %v144
    %v813 = vunpack.c.h.b16 %v144
    %v814 = vunpack.c.l.b16 %v145
    %v815 = vunpack.c.h.b16 %v145
    %v816 = vunpack.c.l.b16 %v146
    %v817 = vunpack.c.h.b16 %v146
    %v818 = vunpack.c.l.b16 %v147
    %v819 = vunpack.c.h.b16 %v147
    %v820 = vunpack.c.l.b16 %v148
    %v821 = vunpack.c.h.b16 %v148
    %v822 = vunpack.c.l.b16 %v149
    %v823 = vunpack.c.h.b16 %v149
    %v824 = vunpack.c.l.b16 %v150
    %v825 = vunpack.c.h.b16 %v150
    %v826 = vunpack.c.l.b16 %v151
    %v827 = vunpack.c.h.b16 %v151
    %v828 = vunpack.c.l.b16 %v152
    %v829 = vunpack.c.h.b16 %v152
    %v830 = vunpack.c.l.b16 %v153
    %v831 = vunpack.c.h.b16 %v153
    %v832 = vunpack.c.l.b16 %v154
    %v833 = vunpack.c.h.b16 %v154
    %v834 = vunpack.c.l.b16 %v155
    %v835 = vunpack.c.h.b16 %v155
    %v836 = vunpack.c.l.b16 %v156
    %v837 = vunpack.c.h.b16 %v156
    %v838 = vunpack.c.l.b16 %v157
    %v839 = vunpack.c.h.b16 %v157
    %v840 = vunpack.c.l.b16 %v158
    %v841 = vunpack.c.h.b16 %v158
    %v842 = vunpack.c.l.b16 %v159
    %v843 = vunpack.c.h.b16 %v159
    %v844 = vunpack.c.l.b16 %v160
    %v845 = vunpack.c.h.b16 %v160
    %v846 = vunpack.c.l.b16 %v161
    %v847 = vunpack.c.h.b16 %v161
    %v848 = vunpack.c.l.b16 %v162
    %v849 = vunpack.c.h.b16 %v162
    %v850 = vunpack.c.l.b16 %v163
    %v851 = vunpack.c.h.b16 %v163
    %v852 = vunpack.c.l.b16 %v164
    %v853 = vunpack.c.h.b16 %v164
    %v854 = vunpack.c.l.b16 %v165
    %v855 = vunpack.c.h.b16 %v165
    %v856 = vunpack.c.l.b16 %v166
    %v857 = vunpack.c.h.b16 %v166
    %v858 = vunpack.c.l.b16 %v167
    %v859 = vunpack.c.h.b16 %v167
    %v860 = vunpack.c.l.b16 %v168
    %v861 = vunpack.c.h.b16 %v168
    %v862 = vunpack.c.l.b16 %v169
    %v863 = vunpack.c.h.b16 %v169
    %v864 = vunpack.c.l.b16 %v170
    %v865 = vunpack.c.h.b16 %v170
    %v866 = vunpack.c.l.b16 %v171
    %v867 = vunpack.c.h.b16 %v171
    %v868 = vunpack.c.l.b16 %v172
    %v869 = vunpack.c.h.b16 %v172
    %v870 = vunpack.c.l.b16 %v173
    %v871 = vunpack.c.h.b16 %v173
    %v872 = vunpack.c.l.b16 %v174
    %v873 = vunpack.c.h.b16 %v174
    %v874 = vunpack.c.l.b16 %v175
    %v875 = vunpack.c.h.b16 %v175
    %v876 = vunpack.c.l.b16 %v176
    %v877 = vunpack.c.h.b16 %v176
    %v878 = vunpack.c.l.b16 %v177
    %v879 = vunpack.c.h.b16 %v177
    %v880 = vunpack.c.l.b16 %v178
    %v881 = vunpack.c.h.b16 %v178
    %v882 = vunpack.c.l.b16 %v179
    %v883 = vunpack.c.h.b16 %v179
    %v884 = vunpack.c.l.b16 %v180
    %v885 = vunpack.c.h.b16 %v180
    %v886 = vunpack.c.l.b16 %v181
    %v887 = vunpack.c.h.b16 %v181
    %v888 = vunpack.c.l.b16 %v182
    %v889 = vunpack.c.h.b16 %v182
    %v890 = vunpack.c.l.b16 %v183
    %v891 = vunpack.c.h.b16 %v183
    %v892 = vunpack.c.l.b16 %v184
    %v893 = vunpack.c.h.b16 %v184
    %v894 = vunpack.c.l.b16 %v185
    %v895 = vunpack.c.h.b16 %v185
    %v896 = vunpack.c.l.b16 %v186
    %v897 = vunpack.c.h.b16 %v186
    %v898 = vunpack.c.l.b16 %v187
    %v899 = vunpack.c.h.b16 %v187
    %v900 = vunpack.c.l.b16 %v188
    %v901 = vunpack.c.h.b16 %v188
    %v902 = vunpack.c.l.b16 %v189
    %v903 = vunpack.c.h.b16 %v189
    %v904 = vunpack.c.l.b16 %v190
    %v905 = vunpack.c.h.b16 %v190
    %v906 = vunpack.c.l.b16 %v191
    %v907 = vunpack.c.h.b16 %v191
    %v908 = vunpack.c.l.b16 %v192
    %v909 = vunpack.c.h.b16 %v192
    %v910 = vunpack.c.l.b16 %v193
    %v911 = vunpack.c.h.b16 %v193
    %v912 = vunpack.c.l.b16 %v194
    %v913 = vunpack.c.h.b16 %v194
    %v914 = vunpack.c.l.b16 %v195
    %v915 = vunpack.c.h.b16 %v195
    %v916 = vunpack.c.l.b16 %v196
    %v917 = vunpack.c.h.b16 %v196
    %v918 = vunpack.c.l.b16 %v197
    %v919 = vunpack.c.h.b16 %v197
    %v920 = vunpack.c.l.b16 %v198
    %v921 = vunpack.c.h.b16 %v198
    %v922 = vunpack.c.l.b16 %v199
    %v923 = vunpack.c.h.b16 %v199
    %v924 = vunpack.c.l.b16 %v200
    %v925 = vunpack.c.h.b16 %v200
    %v926 = vunpack.c.l.b16 %v201
    %v927 = vunpack.c.h.b16 %v201
    %v928 = vunpack.c.l.b16 %v202
    %v929 = vunpack.c.h.b16 %v202
    %v930 = vunpack.c.l.b16 %v203
    %v931 = vunpack.c.h.b16 %v203
    %v932 = vunpack.c.l.b16 %v204
    %v933 = vunpack.c.h.b16 %v204
    %v934 = vunpack.c.l.b16 %v205
    %v935 = vunpack.c.h.b16 %v205
    %v936 = vunpack.c.l.b16 %v206
    %v937 = vunpack.c.h.b16 %v206
    %v938 = vunpack.c.l.b16 %v207
    %v939 = vunpack.c.h.b16 %v207
    %v940 = vunpack.c.l.b16 %v208
    %v941 = vunpack.c.h.b16 %v208
    %v942 = vunpack.c.l.b16 %v209
    %v943 = vunpack.c.h.b16 %v209
    %v944 = vunpack.c.l.b16 %v210
    %v945 = vunpack.c.h.b16 %v210
    %v946 = vunpack.c.l.b16 %v211
    %v947 = vunpack.c.h.b16 %v211
    %v948 = vunpack.c.l.b16 %v212
    %v949 = vunpack.c.h.b16 %v212
    %v950 = vunpack.c.l.b16 %v213
    %v951 = vunpack.c.h.b16 %v213
    %v952 = vunpack.c.l.b16 %v214
    %v953 = vunpack.c.h.b16 %v214
    %v954 = vunpack.c.l.b16 %v215
    %v955 = vunpack.c.h.b16 %v215
    %v956 = vunpack.c.l.b16 %v216
    %v957 = vunpack.c.h.b16 %v216
    %v958 = vunpack.c.l.b16 %v217
    %v959 = vunpack.c.h.b16 %v217
    %v960 = vunpack.c.l.b16 %v218
    %v961 = vunpack.c.h.b16 %v218
    %v962 = vunpack.c.l.b16 %v219
    %v963 = vunpack.c.h.b16 %v219
    %v964 = vunpack.c.l.b16 %v220
    %v965 = vunpack.c.h.b16 %v220
    %v966 = vunpack.c.l.b16 %v221
    %v967 = vunpack.c.h.b16 %v221
    %v968 = vunpack.c.l.b16 %v222
    %v969 = vunpack.c.h.b16 %v222
    %v970 = vunpack.c.l.b16 %v223
    %v971 = vunpack.c.h.b16 %v223
    %v972 = vunpack.c.l.b16 %v224
    %v973 = vunpack.c.h.b16 %v224
    %v974 = vunpack.c.l.b16 %v225
    %v975 = vunpack.c.h.b16 %v225
    %v976 = vunpack.c.l.b16 %v226
    %v977 = vunpack.c.h.b16 %v226
    %v978 = vunpack.c.l.b16 %v227
    %v979 = vunpack.c.h.b16 %v227
    %v980 = vunpack.c.l.b16 %v228
    %v981 = vunpack.c.h.b16 %v228
    %v982 = vunpack.c.l.b16 %v229
    %v983 = vunpack.c.h.b16 %v229
    %v984 = vunpack.c.l.b16 %v230
    %v985 = vunpack.c.h.b16 %v230
    %v986 = vunpack.c.l.b16 %v231
    %v987 = vunpack.c.h.b16 %v231
    %v988 = vunpack.c.l.b16 %v232
    %v989 = vunpack.c.h.b16 %v232
    %v990 = vunpack.c.l.b16 %v233
    %v991 = vunpack.c.h.b16 %v233
    %v992 = vunpack.c.l.b16 %v234
    %v993 = vunpack.c.h.b16 %v234
    %v994 = vunpack.c.l.b16 %v235
    %v995 = vunpack.c.h.b16 %v235
    %v996 = vunpack.c.l.b16 %v236
    %v997 = vunpack.c.h.b16 %v236
    %v998 = vunpack.c.l.b16 %v237
    %v999 = vunpack.c.h.b16 %v237
    %v1000 = vunpack.c.l.b16 %v238
    %v1001 = vunpack.c.h.b16 %v238
    %v1002 = vunpack.c.l.b16 %v239
    %v1003 = vunpack.c.h.b16 %v239
    %v1004 = vunpack.c.l.b16 %v240
    %v1005 = vunpack.c.h.b16 %v240
    %v1006 = vunpack.c.l.b16 %v241
    %v1007 = vunpack.c.h.b16 %v241
    %v1008 = vunpack.c.l.b16 %v242
    %v1009 = vunpack.c.h.b16 %v242
    %v1010 = vunpack.c.l.b16 %v243
    %v1011 = vunpack.c.h.b16 %v243
    %v1012 = vunpack.c.l.b16 %v244
    %v1013 = vunpack.c.h.b16 %v244
    %v1014 = vunpack.c.l.b16 %v245
    %v1015 = vunpack.c.h.b16 %v245
    %v1016 = vunpack.c.l.b16 %v246
    %v1017 = vunpack.c.h.b16 %v246
    %v1018 = vunpack.c.l.b16 %v247
    %v1019 = vunpack.c.h.b16 %v247
    %v1020 = vunpack.c.l.b16 %v248
    %v1021 = vunpack.c.h.b16 %v248
    %v1022 = vunpack.c.l.b16 %v249
    %v1023 = vunpack.c.h.b16 %v249
    %v1024 = vunpack.c.l.b16 %v250
    %v1025 = vunpack.c.h.b16 %v250
    %v1026 = vunpack.c.l.b16 %v251
    %v1027 = vunpack.c.h.b16 %v251
    %v1028 = vunpack.c.l.b16 %v252
    %v1029 = vunpack.c.h.b16 %v252
    %v1030 = vunpack.c.l.b16 %v253
    %v1031 = vunpack.c.h.b16 %v253
    %v1032 = vunpack.c.l.b16 %v254
    %v1033 = vunpack.c.h.b16 %v254
    %v1034 = vunpack.c.l.b16 %v255
    %v1035 = vunpack.c.h.b16 %v255
    %v1036 = vunpack.c.l.b16 %v256
    %v1037 = vunpack.c.h.b16 %v256
    %v1038 = vunpack.c.l.b16 %v257
    %v1039 = vunpack.c.h.b16 %v257
    %v1040 = vunpack.c.l.b16 %v258
    %v1041 = vunpack.c.h.b16 %v258
    %v1042 = vunpack.c.l.b16 %v259
    %v1043 = vunpack.c.h.b16 %v259
    %v1044 = vunpack.c.l.b16 %v260
    %v1045 = vunpack.c.h.b16 %v260
    %v1046 = vunpack.c.l.b16 %v261
    %v1047 = vunpack.c.h.b16 %v261
    %v1048 = vunpack.c.l.b16 %v262
    %v1049 = vunpack.c.h.b16 %v262
    %v1050 = vunpack.c.l.b16 %v263
    %v1051 = vunpack.c.h.b16 %v263
    %v1052 = vunpack.c.l.b16 %v264
    %v1053 = vunpack.c.h.b16 %v264
    %v1054 = vunpack.c.l.b16 %v265
    %v1055 = vunpack.c.h.b16 %v265
    %v1056 = vunpack.c.l.b16 %v266
    %v1057 = vunpack.c.h.b16 %v266
    %v1058 = vunpack.c.l.b16 %v267
    %v1059 = vunpack.c.h.b16 %v267
    %v1060 = vunpack.c.l.b16 %v268
    %v1061 = vunpack.c.h.b16 %v268
    %v1062 = vunpack.c.l.b16 %v269
    %v1063 = vunpack.c.h.b16 %v269
    %v1064 = vunpack.c.l.b16 %v270
    %v1065 = vunpack.c.h.b16 %v270
    %v1066 = vunpack.c.l.b16 %v271
    %v1067 = vunpack.c.h.b16 %v271
    %v1068 = vunpack.c.l.b16 %v272
    %v1069 = vunpack.c.h.b16 %v272
    %v1070 = vunpack.c.l.b16 %v273
    %v1071 = vunpack.c.h.b16 %v273
    %v1072 = vunpack.c.l.b16 %v274
    %v1073 = vunpack.c.h.b16 %v274
    %v1074 = vunpack.c.l.b16 %v275
    %v1075 = vunpack.c.h.b16 %v275
    %v1076 = vunpack.c.l.b16 %v276
    %v1077 = vunpack.c.h.b16 %v276
    %v1078 = vunpack.c.l.b16 %v277
    %v1079 = vunpack.c.h.b16 %v277
    %v1080 = vunpack.c.l.b16 %v278
    %v1081 = vunpack.c.h.b16 %v278
    %v1082 = vunpack.c.l.b16 %v279
    %v1083 = vunpack.c.h.b16 %v279
    %v1084 = vunpack.c.l.b16 %v280
    %v1085 = vunpack.c.h.b16 %v280
    %v1086 = vunpack.c.l.b16 %v281
    %v1087 = vunpack.c.h.b16 %v281
    %v1088 = vunpack.c.l.b16 %v282
    %v1089 = vunpack.c.h.b16 %v282
    %v1090 = vunpack.c.l.b16 %v283
    %v1091 = vunpack.c.h.b16 %v283
    %v1092 = vunpack.c.l.b16 %v284
    %v1093 = vunpack.c.h.b16 %v284
    %v1094 = vunpack.c.l.b16 %v285
    %v1095 = vunpack.c.h.b16 %v285
    %v1096 = vunpack.c.l.b16 %v286
    %v1097 = vunpack.c.h.b16 %v286
    %v1098 = vunpack.c.l.b16 %v287
    %v1099 = vunpack.c.h.b16 %v287
    %v1100 = vunpack.c.l.b16 %v288
    %v1101 = vunpack.c.h.b16 %v288
    %v1102 = vunpack.c.l.b16 %v289
    %v1103 = vunpack.c.h.b16 %v289
    %v1104 = vunpack.c.l.b16 %v290
    %v1105 = vunpack.c.h.b16 %v290
    %v1106 = vunpack.c.l.b16 %v291
    %v1107 = vunpack.c.h.b16 %v291
    %v1108 = vunpack.c.l.b16 %v292
    %v1109 = vunpack.c.h.b16 %v292
    %v1110 = vunpack.c.l.b16 %v293
    %v1111 = vunpack.c.h.b16 %v293
    %v1112 = vunpack.c.l.b16 %v294
    %v1113 = vunpack.c.h.b16 %v294
    %v1114 = vunpack.c.l.b16 %v295
    %v1115 = vunpack.c.h.b16 %v295
    %v1116 = vunpack.c.l.b16 %v296
    %v1117 = vunpack.c.h.b16 %v296
    %v1118 = vunpack.c.l.b16 %v297
    %v1119 = vunpack.c.h.b16 %v297
    %v1120 = vunpack.c.l.b16 %v298
    %v1121 = vunpack.c.h.b16 %v298
    %v1122 = vunpack.c.l.b16 %v299
    %v1123 = vunpack.c.h.b16 %v299
    %v1124 = vunpack.c.l.b16 %v300
    %v1125 = vunpack.c.h.b16 %v300
    %v1126 = vunpack.c.l.b16 %v301
    %v1127 = vunpack.c.h.b16 %v301
    %v1128 = vunpack.c.l.b16 %v302
    %v1129 = vunpack.c.h.b16 %v302
    %v1130 = vunpack.c.l.b16 %v303
    %v1131 = vunpack.c.h.b16 %v303
    %v1132 = vunpack.c.l.b16 %v304
    %v1133 = vunpack.c.h.b16 %v304
    %v1134 = vunpack.c.l.b16 %v305
    %v1135 = vunpack.c.h.b16 %v305
    %v1136 = vunpack.c.l.b16 %v306
    %v1137 = vunpack.c.h.b16 %v306
    %v1138 = vunpack.c.l.b16 %v307
    %v1139 = vunpack.c.h.b16 %v307
    %v1140 = vunpack.c.l.b16 %v308
    %v1141 = vunpack.c.h.b16 %v308
    %v1142 = vunpack.c.l.b16 %v309
    %v1143 = vunpack.c.h.b16 %v309
    %v1144 = vunpack.c.l.b16 %v310
    %v1145 = vunpack.c.h.b16 %v310
    %v1146 = vunpack.c.l.b16 %v311
    %v1147 = vunpack.c.h.b16 %v311
    %v1148 = vunpack.c.l.b16 %v312
    %v1149 = vunpack.c.h.b16 %v312
    %v1150 = vunpack.c.l.b16 %v313
    %v1151 = vunpack.c.h.b16 %v313
    %v1152 = vunpack.c.l.b16 %v314
    %v1153 = vunpack.c.h.b16 %v314
    %v1154 = vunpack.c.l.b16 %v315
    %v1155 = vunpack.c.h.b16 %v315
    %v1156 = vunpack.c.l.b16 %v316
    %v1157 = vunpack.c.h.b16 %v316
    %v1158 = vunpack.c.l.b16 %v317
    %v1159 = vunpack.c.h.b16 %v317
    %v1160 = vunpack.c.l.b16 %v318
    %v1161 = vunpack.c.h.b16 %v318
    %v1162 = vunpack.c.l.b16 %v319
    %v1163 = vunpack.c.h.b16 %v319
    %v1164 = vunpack.c.l.b16 %v320
    %v1165 = vunpack.c.h.b16 %v320
    %v1166 = vunpack.c.l.b16 %v321
    %v1167 = vunpack.c.h.b16 %v321
    %v1168 = vunpack.c.l.b16 %v322
    %v1169 = vunpack.c.h.b16 %v322
    %v1170 = vunpack.c.l.b16 %v323
    %v1171 = vunpack.c.h.b16 %v323
    %v1172 = vunpack.c.l.b16 %v324
    %v1173 = vunpack.c.h.b16 %v324
    %v1174 = vunpack.c.l.b16 %v325
    %v1175 = vunpack.c.h.b16 %v325
    %v1176 = vunpack.c.l.b16 %v326
    %v1177 = vunpack.c.h.b16 %v326
    %v1178 = vunpack.c.l.b16 %v327
    %v1179 = vunpack.c.h.b16 %v327
    %v1180 = vunpack.c.l.b16 %v328
    %v1181 = vunpack.c.h.b16 %v328
    %v1182 = vunpack.c.l.b16 %v329
    %v1183 = vunpack.c.h.b16 %v329
    %v1184 = vunpack.c.l.b16 %v330
    %v1185 = vunpack.c.h.b16 %v330
    %v1186 = vunpack.c.l.b16 %v331
    %v1187 = vunpack.c.h.b16 %v331
    %v1188 = vunpack.c.l.b16 %v332
    %v1189 = vunpack.c.h.b16 %v332
    %v1190 = vunpack.c.l.b16 %v333
    %v1191 = vunpack.c.h.b16 %v333
    %v1192 = vunpack.c.l.b16 %v334
    %v1193 = vunpack.c.h.b16 %v334
    %v1194 = vunpack.c.l.b16 %v335
    %v1195 = vunpack.c.h.b16 %v335
    %v1196 = vunpack.c.l.b16 %v336
    %v1197 = vunpack.c.h.b16 %v336
    %v1198 = vunpack.c.l.b16 %v337
    %v1199 = vunpack.c.h.b16 %v337
    %v1200 = vunpack.c.l.b16 %v338
    %v1201 = vunpack.c.h.b16 %v338
    %v1202 = vunpack.c.l.b16 %v339
    %v1203 = vunpack.c.h.b16 %v339
    %v1204 = vunpack.c.l.b16 %v340
    %v1205 = vunpack.c.h.b16 %v340
    %v1206 = vunpack.c.l.b16 %v341
    %v1207 = vunpack.c.h.b16 %v341
    %v1208 = vunpack.c.l.b16 %v342
    %v1209 = vunpack.c.h.b16 %v342
    %v1210 = vunpack.c.l.b16 %v343
    %v1211 = vunpack.c.h.b16 %v343
    %v1212 = vunpack.c.l.b16 %v344
    %v1213 = vunpack.c.h.b16 %v344
    %v1214 = vunpack.c.l.b16 %v345
    %v1215 = vunpack.c.h.b16 %v345
    %v1216 = vunpack.c.l.b16 %v346
    %v1217 = vunpack.c.h.b16 %v346
    %v1218 = vunpack.c.l.b16 %v347
    %v1219 = vunpack.c.h.b16 %v347
    %v1220 = vunpack.c.l.b16 %v348
    %v1221 = vunpack.c.h.b16 %v348
    %v1222 = vunpack.c.l.b16 %v349
    %v1223 = vunpack.c.h.b16 %v349
    %v1224 = vunpack.c.l.b16 %v350
    %v1225 = vunpack.c.h.b16 %v350
    %v1226 = vunpack.c.l.b16 %v351
    %v1227 = vunpack.c.h.b16 %v351
    %v1228 = vunpack.c.l.b16 %v352
    %v1229 = vunpack.c.h.b16 %v352
    %v1230 = vunpack.c.l.b16 %v353
    %v1231 = vunpack.c.h.b16 %v353
    %v1232 = vunpack.c.l.b16 %v354
    %v1233 = vunpack.c.h.b16 %v354
    %v1234 = vunpack.c.l.b16 %v355
    %v1235 = vunpack.c.h.b16 %v355
    %v1236 = vpack.c.b16 %v672, %v660
    %v1237 = vpack.c.b16 %v673, %v661
    %v1238 = vpack.c.b16 %v674, %v662
    %v1239 = vpack.c.b16 %v675, %v663
    %v1240 = vpack.c.b16 %v676, %v664
    %v1241 = vpack.c.b16 %v677, %v665
    %v1242 = vpack.c.b16 %v678, %v666
    %v1243 = vpack.c.b16 %v679, %v667
    %v1244 = vpack.c.b16 %v680, %v668
    %v1245 = vpack.c.b16 %v681, %v669
    %v1246 = vpack.c.b16 %v682, %v670
    %v1247 = vpack.c.b16 %v683, %v671
    %v1248 = vpack.c.b16 %v696, %v684
    %v1249 = vpack.c.b16 %v697, %v685
    %v1250 = vpack.c.b16 %v698, %v686
    %v1251 = vpack.c.b16 %v699, %v687
    %v1252 = vpack.c.b16 %v700, %v688
    %v1253 = vpack.c.b16 %v701, %v689
    %v1254 = vpack.c.b16 %v702, %v690
    %v1255 = vpack.c.b16 %v703, %v691
    %v1256 = vpack.c.b16 %v704, %v692
    %v1257 = vpack.c.b16 %v705, %v693
    %v1258 = vpack.c.b16 %v706, %v694
    %v1259 = vpack.c.b16 %v707, %v695
    %v1260 = vpack.c.b16 %v720, %v708
    %v1261 = vpack.c.b16 %v721, %v709
    %v1262 = vpack.c.b16 %v722, %v710
    %v1263 = vpack.c.b16 %v723, %v711
    %v1264 = vpack.c.b16 %v724, %v712
    %v1265 = vpack.c.b16 %v725, %v713
    %v1266 = vpack.c.b16 %v726, %v714
    %v1267 = vpack.c.b16 %v727, %v715
    %v1268 = vpack.c.b16 %v728, %v716
    %v1269 = vpack.c.b16 %v729, %v717
    %v1270 = vpack.c.b16 %v730, %v718
    %v1271 = vpack.c.b16 %v731, %v719
    %v1272 = vpack.c.b16 %v744, %v732
    %v1273 = vpack.c.b16 %v745, %v733
    %v1274 = vpack.c.b16 %v746, %v734
    %v1275 = vpack.c.b16 %v747, %v735
    %v1276 = vpack.c.b16 %v748, %v736
    %v1277 = vpack.c.b16 %v749, %v737
    %v1278 = vpack.c.b16 %v750, %v738
    %v1279 = vpack.c.b16 %v751, %v739
    %v1280 = vpack.c.b16 %v752, %v740
    %v1281 = vpack.c.b16 %v753, %v741
    %v1282 = vpack.c.b16 %v754, %v742
    %v1283 = vpack.c.b16 %v755, %v743
    %v1284 = vpack.c.b16 %v768, %v756
    %v1285 = vpack.c.b16 %v769, %v757
    %v1286 = vpack.c.b16 %v770, %v758
    %v1287 = vpack.c.b16 %v771, %v759
    %v1288 = vpack.c.b16 %v772, %v760
    %v1289 = vpack.c.b16 %v773, %v761
    %v1290 = vpack.c.b16 %v774, %v762
    %v1291 = vpack.c.b16 %v775, %v763
    %v1292 = vpack.c.b16 %v776, %v764
    %v1293 = vpack.c.b16 %v777, %v765
    %v1294 = vpack.c.b16 %v778, %v766
    %v1295 = vpack.c.b16 %v779, %v767
    %v1296 = vpack.c.b16 %v792, %v780
    %v1297 = vpack.c.b16 %v793, %v781
    %v1298 = vpack.c.b16 %v794, %v782
    %v1299 = vpack.c.b16 %v795, %v783
    %v1300 = vpack.c.b16 %v796, %v784
    %v1301 = vpack.c.b16 %v797, %v785
    %v1302 = vpack.c.b16 %v798, %v786
    %v1303 = vpack.c.b16 %v799, %v787
    %v1304 = vpack.c.b16 %v800, %v788
    %v1305 = vpack.c.b16 %v801, %v789
    %v1306 = vpack.c.b16 %v802, %v790
    %v1307 = vpack.c.b16 %v803, %v791
    %v1308 = vpack.c.b16 %v816, %v804
    %v1309 = vpack.c.b16 %v817, %v805
    %v1310 = vpack.c.b16 %v818, %v806
    %v1311 = vpack.c.b16 %v819, %v807
    %v1312 = vpack.c.b16 %v820, %v808
    %v1313 = vpack.c.b16 %v821, %v809
    %v1314 = vpack.c.b16 %v822, %v810
    %v1315 = vpack.c.b16 %v823, %v811
    %v1316 = vpack.c.b16 %v824, %v812
    %v1317 = vpack.c.b16 %v825, %v813
    %v1318 = vpack.c.b16 %v826, %v814
    %v1319 = vpack.c.b16 %v827, %v815
    %v1320 = vpack.c.b16 %v840, %v828
    %v1321 = vpack.c.b16 %v841, %v829
    %v1322 = vpack.c.b16 %v842, %v830
    %v1323 = vpack.c.b16 %v843, %v831
    %v1324 = vpack.c.b16 %v844, %v832
    %v1325 = vpack.c.b16 %v845, %v833
    %v1326 = vpack.c.b16 %v846, %v834
    %v1327 = vpack.c.b16 %v847, %v835
    %v1328 = vpack.c.b16 %v848, %v836
    %v1329 = vpack.c.b16 %v849, %v837
    %v1330 = vpack.c.b16 %v850, %v838
    %v1331 = vpack.c.b16 %v851, %v839
    %v1332 = vpack.c.b16 %v864, %v852
    %v1333 = vpack.c.b16 %v865, %v853
    %v1334 = vpack.c.b16 %v866, %v854
    %v1335 = vpack.c.b16 %v867, %v855
    %v1336 = vpack.c.b16 %v868, %v856
    %v1337 = vpack.c.b16 %v869, %v857
    %v1338 = vpack.c.b16 %v870, %v858
    %v1339 = vpack.c.b16 %v871, %v859
    %v1340 = vpack.c.b16 %v872, %v860
    %v1341 = vpack.c.b16 %v873, %v861
    %v1342 = vpack.c.b16 %v874, %v862
    %v1343 = vpack.c.b16 %v875, %v863
    %v1344 = vpack.c.b16 %v888, %v876
    %v1345 = vpack.c.b16 %v889, %v877
    %v1346 = vpack.c.b16 %v890, %v878
    %v1347 = vpack.c.b16 %v891, %v879
    %v1348 = vpack.c.b16 %v892, %v880
    %v1349 = vpack.c.b16 %v893, %v881
    %v1350 = vpack.c.b16 %v894, %v882
    %v1351 = vpack.c.b16 %v895, %v883
    %v1352 = vpack.c.b16 %v896, %v884
    %v1353 = vpack.c.b16 %v897, %v885
    %v1354 = vpack.c.b16 %v898, %v886
    %v1355 = vpack.c.b16 %v899, %v887
    %v1356 = vpack.c.b16 %v912, %v900
    %v1357 = vpack.c.b16 %v913, %v901
    %v1358 = vpack.c.b16 %v914, %v902
    %v1359 = vpack.c.b16 %v915, %v903
    %v1360 = vpack.c.b16 %v916, %v904
    %v1361 = vpack.c.b16 %v917, %v905
    %v1362 = vpack.c.b16 %v918, %v906
    %v1363 = vpack.c.b16 %v919, %v907
    %v1364 = vpack.c.b16 %v920, %v908
    %v1365 = vpack.c.b16 %v921, %v909
    %v1366 = vpack.c.b16 %v922, %v910
    %v1367 = vpack.c.b16 %v923, %v911
    %v1368 = vpack.c.b16 %v936, %v924
    %v1369 = vpack.c.b16 %v937, %v925
    %v1370 = vpack.c.b16 %v938, %v926
    %v1371 = vpack.c.b16 %v939, %v927
    %v1372 = vpack.c.b16 %v940, %v928
    %v1373 = vpack.c.b16 %v941, %v929
    %v1374 = vpack.c.b16 %v942, %v930
    %v1375 = vpack.c.b16 %v943, %v931
    %v1376 = vpack.c.b16 %v944, %v932
    %v1377 = vpack.c.b16 %v945, %v933
    %v1378 = vpack.c.b16 %v946, %v934
    %v1379 = vpack.c.b16 %v947, %v935
    %v1380 = vpack.c.b16 %v960, %v948
    %v1381 = vpack.c.b16 %v961, %v949
    %v1382 = vpack.c.b16 %v962, %v950
    %v1383 = vpack.c.b16 %v963, %v951
    %v1384 = vpack.c.b16 %v964, %v952
    %v1385 = vpack.c.b16 %v965, %v953
    %v1386 = vpack.c.b16 %v966, %v954
    %v1387 = vpack.c.b16 %v967, %v955
    %v1388 = vpack.c.b16 %v968, %v956
    %v1389 = vpack.c.b16 %v969, %v957
    %v1390 = vpack.c.b16 %v970, %v958
    %v1391 = vpack.c.b16 %v971, %v959
    %v1392 = vpack.c.b16 %v984, %v972
    %v1393 = vpack.c.b16 %v985, %v973
    %v1394 = vpack.c.b16 %v986, %v974
    %v1395 = vpack.c.b16 %v987, %v975
    %v1396 = vpack.c.b16 %v988, %v976
    %v1397 = vpack.c.b16 %v989, %v977
    %v1398 = vpack.c.b16 %v990, %v978
    %v1399 = vpack.c.b16 %v991, %v979
    %v1400 = vpack.c.b16 %v992, %v980
    %v1401 = vpack.c.b16 %v993, %v981
    %v1402 = vpack.c.b16 %v994, %v982
    %v1403 = vpack.c.b16 %v995, %v983
    %v1404 = vpack.c.b16 %v1008, %v996
    %v1405 = vpack.c.b16 %v1009, %v997
    %v1406 = vpack.c.b16 %v1010, %v998
    %v1407 = vpack.c.b16 %v1011, %v999
    %v1408 = vpack.c.b16 %v1012, %v1000
    %v1409 = vpack.c.b16 %v1013, %v1001
    %v1410 = vpack.c.b16 %v1014, %v1002
    %v1411 = vpack.c.b16 %v1015, %v1003
    %v1412 = vpack.c.b16 %v1016, %v1004
    %v1413 = vpack.c.b16 %v1017, %v1005
    %v1414 = vpack.c.b16 %v1018, %v1006
    %v1415 = vpack.c.b16 %v1019, %v1007
    %v1416 = vpack.c.b16 %v1032, %v1020
    %v1417 = vpack.c.b16 %v1033, %v1021
    %v1418 = vpack.c.b16 %v1034, %v1022
    %v1419 = vpack.c.b16 %v1035, %v1023
    %v1420 = vpack.c.b16 %v1036, %v1024
    %v1421 = vpack.c.b16 %v1037, %v1025
    %v1422 = vpack.c.b16 %v1038, %v1026
    %v1423 = vpack.c.b16 %v1039, %v1027
    %v1424 = vpack.c.b16 %v1040, %v1028
    %v1425 = vpack.c.b16 %v1041, %v1029
    %v1426 = vpack.c.b16 %v1042, %v1030
    %v1427 = vpack.c.b16 %v1043, %v1031
    %v1428 = vpack.c.b16 %v1056, %v1044
    %v1429 = vpack.c.b16 %v1057, %v1045
    %v1430 = vpack.c.b16 %v1058, %v1046
    %v1431 = vpack.c.b16 %v1059, %v1047
    %v1432 = vpack.c.b16 %v1060, %v1048
    %v1433 = vpack.c.b16 %v1061, %v1049
    %v1434 = vpack.c.b16 %v1062, %v1050
    %v1435 = vpack.c.b16 %v1063, %v1051
    %v1436 = vpack.c.b16 %v1064, %v1052
    %v1437 = vpack.c.b16 %v1065, %v1053
    %v1438 = vpack.c.b16 %v1066, %v1054
    %v1439 = vpack.c.b16 %v1067, %v1055
    %v1440 = vpack.c.b16 %v1080, %v1068
    %v1441 = vpack.c.b16 %v1081, %v1069
    %v1442 = vpack.c.b16 %v1082, %v1070
    %v1443 = vpack.c.b16 %v1083, %v1071
    %v1444 = vpack.c.b16 %v1084, %v1072
    %v1445 = vpack.c.b16 %v1085, %v1073
    %v1446 = vpack.c.b16 %v1086, %v1074
    %v1447 = vpack.c.b16 %v1087, %v1075
    %v1448 = vpack.c.b16 %v1088, %v1076
    %v1449 = vpack.c.b16 %v1089, %v1077
    %v1450 = vpack.c.b16 %v1090, %v1078
    %v1451 = vpack.c.b16 %v1091, %v1079
    %v1452 = vpack.c.b16 %v1104, %v1092
    %v1453 = vpack.c.b16 %v1105, %v1093
    %v1454 = vpack.c.b16 %v1106, %v1094
    %v1455 = vpack.c.b16 %v1107, %v1095
    %v1456 = vpack.c.b16 %v1108, %v1096
    %v1457 = vpack.c.b16 %v1109, %v1097
    %v1458 = vpack.c.b16 %v1110, %v1098
    %v1459 = vpack.c.b16 %v1111, %v1099
    %v1460 = vpack.c.b16 %v1112, %v1100
    %v1461 = vpack.c.b16 %v1113, %v1101
    %v1462 = vpack.c.b16 %v1114, %v1102
    %v1463 = vpack.c.b16 %v1115, %v1103
    %v1464 = vpack.c.b16 %v1128, %v1116
    %v1465 = vpack.c.b16 %v1129, %v1117
    %v1466 = vpack.c.b16 %v1130, %v1118
    %v1467 = vpack.c.b16 %v1131, %v1119
    %v1468 = vpack.c.b16 %v1132, %v1120
    %v1469 = vpack.c.b16 %v1133, %v1121
    %v1470 = vpack.c.b16 %v1134, %v1122
    %v1471 = vpack.c.b16 %v1135, %v1123
    %v1472 = vpack.c.b16 %v1136, %v1124
    %v1473 = vpack.c.b16 %v1137, %v1125
    %v1474 = vpack.c.b16 %v1138, %v1126
    %v1475 = vpack.c.b16 %v1139, %v1127
    %v1476 = vpack.c.b16 %v1152, %v1140
    %v1477 = vpack.c.b16 %v1153, %v1141
    %v1478 = vpack.c.b16 %v1154, %v1142
    %v1479 = vpack.c.b16 %v1155, %v1143
    %v1480 = vpack.c.b16 %v1156, %v1144
    %v1481 = vpack.c.b16 %v1157, %v1145
    %v1482 = vpack.c.b16 %v1158, %v1146
    %v1483 = vpack.c.b16 %v1159, %v1147
    %v1484 = vpack.c.b16 %v1160, %v1148
    %v1485 = vpack.c.b16 %v1161, %v1149
    %v1486 = vpack.c.b16 %v1162, %v1150
    %v1487 = vpack.c.b16 %v1163, %v1151
    %v1488 = vpack.c.b16 %v1176, %v1164
    %v1489 = vpack.c.b16 %v1177, %v1165
    %v1490 = vpack.c.b16 %v1178, %v1166
    %v1491 = vpack.c.b16 %v1179, %v1167
    %v1492 = vpack.c.b16 %v1180, %v1168
    %v1493 = vpack.c.b16 %v1181, %v1169
    %v1494 = vpack.c.b16 %v1182, %v1170
    %v1495 = vpack.c.b16 %v1183, %v1171
    %v1496 = vpack.c.b16 %v1184, %v1172
    %v1497 = vpack.c.b16 %v1185, %v1173
    %v1498 = vpack.c.b16 %v1186, %v1174
    %v1499 = vpack.c.b16 %v1187, %v1175
    %v1500 = vpack.c.b16 %v1200, %v1188
    %v1501 = vpack.c.b16 %v1201, %v1189
    %v1502 = vpack.c.b16 %v1202, %v1190
    %v1503 = vpack.c.b16 %v1203, %v1191
    %v1504 = vpack.c.b16 %v1204, %v1192
    %v1505 = vpack.c.b16 %v1205, %v1193
    %v1506 = vpack.c.b16 %v1206, %v1194
    %v1507 = vpack.c.b16 %v1207, %v1195
    %v1508 = vpack.c.b16 %v1208, %v1196
    %v1509 = vpack.c.b16 %v1209, %v1197
    %v1510 = vpack.c.b16 %v1210, %v1198
    %v1511 = vpack.c.b16 %v1211, %v1199
    %v1512 = vpack.c.b16 %v1224, %v1212
    %v1513 = vpack.c.b16 %v1225, %v1213
    %v1514 = vpack.c.b16 %v1226, %v1214
    %v1515 = vpack.c.b16 %v1227, %v1215
    %v1516 = vpack.c.b16 %v1228, %v1216
    %v1517 = vpack.c.b16 %v1229, %v1217
    %v1518 = vpack.c.b16 %v1230, %v1218
    %v1519 = vpack.c.b16 %v1231, %v1219
    %v1520 = vpack.c.b16 %v1232, %v1220
    %v1521 = vpack.c.b16 %v1233, %v1221
    %v1522 = vpack.c.b16 %v1234, %v1222
    %v1523 = vpack.c.b16 %v1235, %v1223
    %1812 = vmatpush.bf16.msra.mxu0 %v1320
    %1813 = vmatpush.bf16.msra.mxu0 %v1308
    %1814 = vmatpush.bf16.msra.mxu0 %v1296
    %1815 = vmatpush.bf16.msra.mxu0 %v1284
    %1816 = vmatpush.bf16.msra.mxu0 %v1272
    %1817 = vmatpush.bf16.msra.mxu0 %v1260
    %1818 = vmatpush.bf16.msra.mxu0 %v1248
    %1819 = vmatpush.bf16.msra.mxu0 %v1236
    %1820 = vmatmul.bf16.gmra.mxu0 %v366
    %v1821 = vpop.f32.mrf.mxu0
    %v1822 = vadd.f32 0.0, %v1821
    %v1823 = vpop.f32.mrf.mxu0
    %v1824 = vadd.f32 0.0, %v1823
    %1825 = vdwg.mxu0
    %1826 = vmatpush.bf16.msra.mxu0 %v1416
    %1827 = vmatpush.bf16.msra.mxu0 %v1404
    %1828 = vmatpush.bf16.msra.mxu0 %v1392
    %1829 = vmatpush.bf16.msra.mxu0 %v1380
    %1830 = vmatpush.bf16.msra.mxu0 %v1368
    %1831 = vmatpush.bf16.msra.mxu0 %v1356
    %1832 = vmatpush.bf16.msra.mxu0 %v1344
    %1833 = vmatpush.bf16.msra.mxu0 %v1332
    %1834 = vmatmul.bf16.gmra.mxu0 %v367
    %v1835 = vpop.f32.mrf.mxu0
    %v1836 = vadd.f32 %v1822, %v1835
    %v1837 = vpop.f32.mrf.mxu0
    %v1838 = vadd.f32 %v1824, %v1837
    %1839 = vdwg.mxu0
    %1840 = vmatpush.bf16.msra.mxu0 %v1512
    %1841 = vmatpush.bf16.msra.mxu0 %v1500
    %1842 = vmatpush.bf16.msra.mxu0 %v1488
    %1843 = vmatpush.bf16.msra.mxu0 %v1476
    %1844 = vmatpush.bf16.msra.mxu0 %v1464
    %1845 = vmatpush.bf16.msra.mxu0 %v1452
    %1846 = vmatpush.bf16.msra.mxu0 %v1440
    %1847 = vmatpush.bf16.msra.mxu0 %v1428
    %1848 = vmatmul.bf16.gmra.mxu0 %v368
    %v1849 = vpop.f32.mrf.mxu0
    %v1850 = vadd.f32 %v1836, %v1849
    %v1851 = vpop.f32.mrf.mxu0
    %v1852 = vadd.f32 %v1838, %v1851
    %1853 = vdwg.mxu0
    %1854 = vmatpush.bf16.msra.mxu0 %v1321
    %1855 = vmatpush.bf16.msra.mxu0 %v1309
    %1856 = vmatpush.bf16.msra.mxu0 %v1297
    %1857 = vmatpush.bf16.msra.mxu0 %v1285
    %1858 = vmatpush.bf16.msra.mxu0 %v1273
    %1859 = vmatpush.bf16.msra.mxu0 %v1261
    %1860 = vmatpush.bf16.msra.mxu0 %v1249
    %1861 = vmatpush.bf16.msra.mxu0 %v1237
    %1862 = vmatmul.bf16.gmra.mxu0 %v366
    %v1863 = vpop.f32.mrf.mxu0
    %v1864 = vadd.f32 0.0, %v1863
    %v1865 = vpop.f32.mrf.mxu0
    %v1866 = vadd.f32 0.0, %v1865
    %1867 = vdwg.mxu0
    %1868 = vmatpush.bf16.msra.mxu0 %v1417
    %1869 = vmatpush.bf16.msra.mxu0 %v1405
    %1870 = vmatpush.bf16.msra.mxu0 %v1393
    %1871 = vmatpush.bf16.msra.mxu0 %v1381
    %1872 = vmatpush.bf16.msra.mxu0 %v1369
    %1873 = vmatpush.bf16.msra.mxu0 %v1357
    %1874 = vmatpush.bf16.msra.mxu0 %v1345
    %1875 = vmatpush.bf16.msra.mxu0 %v1333
    %1876 = vmatmul.bf16.gmra.mxu0 %v367
    %v1877 = vpop.f32.mrf.mxu0
    %v1878 = vadd.f32 %v1864, %v1877
    %v1879 = vpop.f32.mrf.mxu0
    %v1880 = vadd.f32 %v1866, %v1879
    %1881 = vdwg.mxu0
    %1882 = vmatpush.bf16.msra.mxu0 %v1513
    %1883 = vmatpush.bf16.msra.mxu0 %v1501
    %1884 = vmatpush.bf16.msra.mxu0 %v1489
    %1885 = vmatpush.bf16.msra.mxu0 %v1477
    %1886 = vmatpush.bf16.msra.mxu0 %v1465
    %1887 = vmatpush.bf16.msra.mxu0 %v1453
    %1888 = vmatpush.bf16.msra.mxu0 %v1441
    %1889 = vmatpush.bf16.msra.mxu0 %v1429
    %1890 = vmatmul.bf16.gmra.mxu0 %v368
    %v1891 = vpop.f32.mrf.mxu0
    %v1892 = vadd.f32 %v1878, %v1891
    %v1893 = vpop.f32.mrf.mxu0
    %v1894 = vadd.f32 %v1880, %v1893
    %1895 = vdwg.mxu0
    %1896 = vmatpush.bf16.msra.mxu0 %v1322
    %1897 = vmatpush.bf16.msra.mxu0 %v1310
    %1898 = vmatpush.bf16.msra.mxu0 %v1298
    %1899 = vmatpush.bf16.msra.mxu0 %v1286
    %1900 = vmatpush.bf16.msra.mxu0 %v1274
    %1901 = vmatpush.bf16.msra.mxu0 %v1262
    %1902 = vmatpush.bf16.msra.mxu0 %v1250
    %1903 = vmatpush.bf16.msra.mxu0 %v1238
    %1904 = vmatmul.bf16.gmra.mxu0 %v366
    %v1905 = vpop.f32.mrf.mxu0
    %v1906 = vadd.f32 0.0, %v1905
    %v1907 = vpop.f32.mrf.mxu0
    %v1908 = vadd.f32 0.0, %v1907
    %1909 = vdwg.mxu0
    %1910 = vmatpush.bf16.msra.mxu0 %v1418
    %1911 = vmatpush.bf16.msra.mxu0 %v1406
    %1912 = vmatpush.bf16.msra.mxu0 %v1394
    %1913 = vmatpush.bf16.msra.mxu0 %v1382
    %1914 = vmatpush.bf16.msra.mxu0 %v1370
    %1915 = vmatpush.bf16.msra.mxu0 %v1358
    %1916 = vmatpush.bf16.msra.mxu0 %v1346
    %1917 = vmatpush.bf16.msra.mxu0 %v1334
    %1918 = vmatmul.bf16.gmra.mxu0 %v367
    %v1919 = vpop.f32.mrf.mxu0
    %v1920 = vadd.f32 %v1906, %v1919
    %v1921 = vpop.f32.mrf.mxu0
    %v1922 = vadd.f32 %v1908, %v1921
    %1923 = vdwg.mxu0
    %1924 = vmatpush.bf16.msra.mxu0 %v1514
    %1925 = vmatpush.bf16.msra.mxu0 %v1502
    %1926 = vmatpush.bf16.msra.mxu0 %v1490
    %1927 = vmatpush.bf16.msra.mxu0 %v1478
    %1928 = vmatpush.bf16.msra.mxu0 %v1466
    %1929 = vmatpush.bf16.msra.mxu0 %v1454
    %1930 = vmatpush.bf16.msra.mxu0 %v1442
    %1931 = vmatpush.bf16.msra.mxu0 %v1430
    %1932 = vmatmul.bf16.gmra.mxu0 %v368
    %v1933 = vpop.f32.mrf.mxu0
    %v1934 = vadd.f32 %v1920, %v1933
    %v1935 = vpop.f32.mrf.mxu0
    %v1936 = vadd.f32 %v1922, %v1935
    %1937 = vdwg.mxu0
    %1938 = vmatpush.bf16.msra.mxu0 %v1323
    %1939 = vmatpush.bf16.msra.mxu0 %v1311
    %1940 = vmatpush.bf16.msra.mxu0 %v1299
    %1941 = vmatpush.bf16.msra.mxu0 %v1287
    %1942 = vmatpush.bf16.msra.mxu0 %v1275
    %1943 = vmatpush.bf16.msra.mxu0 %v1263
    %1944 = vmatpush.bf16.msra.mxu0 %v1251
    %1945 = vmatpush.bf16.msra.mxu0 %v1239
    %1946 = vmatmul.bf16.gmra.mxu0 %v366
    %v1947 = vpop.f32.mrf.mxu0
    %v1948 = vadd.f32 0.0, %v1947
    %v1949 = vpop.f32.mrf.mxu0
    %v1950 = vadd.f32 0.0, %v1949
    %1951 = vdwg.mxu0
    %1952 = vmatpush.bf16.msra.mxu0 %v1419
    %1953 = vmatpush.bf16.msra.mxu0 %v1407
    %1954 = vmatpush.bf16.msra.mxu0 %v1395
    %1955 = vmatpush.bf16.msra.mxu0 %v1383
    %1956 = vmatpush.bf16.msra.mxu0 %v1371
    %1957 = vmatpush.bf16.msra.mxu0 %v1359
    %1958 = vmatpush.bf16.msra.mxu0 %v1347
    %1959 = vmatpush.bf16.msra.mxu0 %v1335
    %1960 = vmatmul.bf16.gmra.mxu0 %v367
    %v1961 = vpop.f32.mrf.mxu0
    %v1962 = vadd.f32 %v1948, %v1961
    %v1963 = vpop.f32.mrf.mxu0
    %v1964 = vadd.f32 %v1950, %v1963
    %1965 = vdwg.mxu0
    %1966 = vmatpush.bf16.msra.mxu0 %v1515
    %1967 = vmatpush.bf16.msra.mxu0 %v1503
    %1968 = vmatpush.bf16.msra.mxu0 %v1491
    %1969 = vmatpush.bf16.msra.mxu0 %v1479
    %1970 = vmatpush.bf16.msra.mxu0 %v1467
    %1971 = vmatpush.bf16.msra.mxu0 %v1455
    %1972 = vmatpush.bf16.msra.mxu0 %v1443
    %1973 = vmatpush.bf16.msra.mxu0 %v1431
    %1974 = vmatmul.bf16.gmra.mxu0 %v368
    %v1975 = vpop.f32.mrf.mxu0
    %v1976 = vadd.f32 %v1962, %v1975
    %v1977 = vpop.f32.mrf.mxu0
    %v1978 = vadd.f32 %v1964, %v1977
    %1979 = vdwg.mxu0
    %1980 = vmatpush.bf16.msra.mxu0 %v1324
    %1981 = vmatpush.bf16.msra.mxu0 %v1312
    %1982 = vmatpush.bf16.msra.mxu0 %v1300
    %1983 = vmatpush.bf16.msra.mxu0 %v1288
    %1984 = vmatpush.bf16.msra.mxu0 %v1276
    %1985 = vmatpush.bf16.msra.mxu0 %v1264
    %1986 = vmatpush.bf16.msra.mxu0 %v1252
    %1987 = vmatpush.bf16.msra.mxu0 %v1240
    %1988 = vmatmul.bf16.gmra.mxu0 %v366
    %v1989 = vpop.f32.mrf.mxu0
    %v1990 = vadd.f32 0.0, %v1989
    %v1991 = vpop.f32.mrf.mxu0
    %v1992 = vadd.f32 0.0, %v1991
    %1993 = vdwg.mxu0
    %1994 = vmatpush.bf16.msra.mxu0 %v1420
    %1995 = vmatpush.bf16.msra.mxu0 %v1408
    %1996 = vmatpush.bf16.msra.mxu0 %v1396
    %1997 = vmatpush.bf16.msra.mxu0 %v1384
    %1998 = vmatpush.bf16.msra.mxu0 %v1372
    %1999 = vmatpush.bf16.msra.mxu0 %v1360
    %2000 = vmatpush.bf16.msra.mxu0 %v1348
    %2001 = vmatpush.bf16.msra.mxu0 %v1336
    %2002 = vmatmul.bf16.gmra.mxu0 %v367
    %v2003 = vpop.f32.mrf.mxu0
    %v2004 = vadd.f32 %v1990, %v2003
    %v2005 = vpop.f32.mrf.mxu0
    %v2006 = vadd.f32 %v1992, %v2005
    %2007 = vdwg.mxu0
    %2008 = vmatpush.bf16.msra.mxu0 %v1516
    %2009 = vmatpush.bf16.msra.mxu0 %v1504
    %2010 = vmatpush.bf16.msra.mxu0 %v1492
    %2011 = vmatpush.bf16.msra.mxu0 %v1480
    %2012 = vmatpush.bf16.msra.mxu0 %v1468
    %2013 = vmatpush.bf16.msra.mxu0 %v1456
    %2014 = vmatpush.bf16.msra.mxu0 %v1444
    %2015 = vmatpush.bf16.msra.mxu0 %v1432
    %2016 = vmatmul.bf16.gmra.mxu0 %v368
    %v2017 = vpop.f32.mrf.mxu0
    %v2018 = vadd.f32 %v2004, %v2017
    %v2019 = vpop.f32.mrf.mxu0
    %v2020 = vadd.f32 %v2006, %v2019
    %2021 = vdwg.mxu0
    %2022 = vmatpush.bf16.msra.mxu0 %v1325
    %2023 = vmatpush.bf16.msra.mxu0 %v1313
    %2024 = vmatpush.bf16.msra.mxu0 %v1301
    %2025 = vmatpush.bf16.msra.mxu0 %v1289
    %2026 = vmatpush.bf16.msra.mxu0 %v1277
    %2027 = vmatpush.bf16.msra.mxu0 %v1265
    %2028 = vmatpush.bf16.msra.mxu0 %v1253
    %2029 = vmatpush.bf16.msra.mxu0 %v1241
    %2030 = vmatmul.bf16.gmra.mxu0 %v366
    %v2031 = vpop.f32.mrf.mxu0
    %v2032 = vadd.f32 0.0, %v2031
    %v2033 = vpop.f32.mrf.mxu0
    %v2034 = vadd.f32 0.0, %v2033
    %2035 = vdwg.mxu0
    %2036 = vmatpush.bf16.msra.mxu0 %v1421
    %2037 = vmatpush.bf16.msra.mxu0 %v1409
    %2038 = vmatpush.bf16.msra.mxu0 %v1397
    %2039 = vmatpush.bf16.msra.mxu0 %v1385
    %2040 = vmatpush.bf16.msra.mxu0 %v1373
    %2041 = vmatpush.bf16.msra.mxu0 %v1361
    %2042 = vmatpush.bf16.msra.mxu0 %v1349
    %2043 = vmatpush.bf16.msra.mxu0 %v1337
    %2044 = vmatmul.bf16.gmra.mxu0 %v367
    %v2045 = vpop.f32.mrf.mxu0
    %v2046 = vadd.f32 %v2032, %v2045
    %v2047 = vpop.f32.mrf.mxu0
    %v2048 = vadd.f32 %v2034, %v2047
    %2049 = vdwg.mxu0
    %2050 = vmatpush.bf16.msra.mxu0 %v1517
    %2051 = vmatpush.bf16.msra.mxu0 %v1505
    %2052 = vmatpush.bf16.msra.mxu0 %v1493
    %2053 = vmatpush.bf16.msra.mxu0 %v1481
    %2054 = vmatpush.bf16.msra.mxu0 %v1469
    %2055 = vmatpush.bf16.msra.mxu0 %v1457
    %2056 = vmatpush.bf16.msra.mxu0 %v1445
    %2057 = vmatpush.bf16.msra.mxu0 %v1433
    %2058 = vmatmul.bf16.gmra.mxu0 %v368
    %v2059 = vpop.f32.mrf.mxu0
    %v2060 = vadd.f32 %v2046, %v2059
    %v2061 = vpop.f32.mrf.mxu0
    %v2062 = vadd.f32 %v2048, %v2061
    %2063 = vdwg.mxu0
    %2064 = vmatpush.bf16.msra.mxu0 %v1326
    %2065 = vmatpush.bf16.msra.mxu0 %v1314
    %2066 = vmatpush.bf16.msra.mxu0 %v1302
    %2067 = vmatpush.bf16.msra.mxu0 %v1290
    %2068 = vmatpush.bf16.msra.mxu0 %v1278
    %2069 = vmatpush.bf16.msra.mxu0 %v1266
    %2070 = vmatpush.bf16.msra.mxu0 %v1254
    %2071 = vmatpush.bf16.msra.mxu0 %v1242
    %2072 = vmatmul.bf16.gmra.mxu0 %v366
    %v2073 = vpop.f32.mrf.mxu0
    %v2074 = vadd.f32 0.0, %v2073
    %v2075 = vpop.f32.mrf.mxu0
    %v2076 = vadd.f32 0.0, %v2075
    %2077 = vdwg.mxu0
    %2078 = vmatpush.bf16.msra.mxu0 %v1422
    %2079 = vmatpush.bf16.msra.mxu0 %v1410
    %2080 = vmatpush.bf16.msra.mxu0 %v1398
    %2081 = vmatpush.bf16.msra.mxu0 %v1386
    %2082 = vmatpush.bf16.msra.mxu0 %v1374
    %2083 = vmatpush.bf16.msra.mxu0 %v1362
    %2084 = vmatpush.bf16.msra.mxu0 %v1350
    %2085 = vmatpush.bf16.msra.mxu0 %v1338
    %2086 = vmatmul.bf16.gmra.mxu0 %v367
    %v2087 = vpop.f32.mrf.mxu0
    %v2088 = vadd.f32 %v2074, %v2087
    %v2089 = vpop.f32.mrf.mxu0
    %v2090 = vadd.f32 %v2076, %v2089
    %2091 = vdwg.mxu0
    %2092 = vmatpush.bf16.msra.mxu0 %v1518
    %2093 = vmatpush.bf16.msra.mxu0 %v1506
    %2094 = vmatpush.bf16.msra.mxu0 %v1494
    %2095 = vmatpush.bf16.msra.mxu0 %v1482
    %2096 = vmatpush.bf16.msra.mxu0 %v1470
    %2097 = vmatpush.bf16.msra.mxu0 %v1458
    %2098 = vmatpush.bf16.msra.mxu0 %v1446
    %2099 = vmatpush.bf16.msra.mxu0 %v1434
    %2100 = vmatmul.bf16.gmra.mxu0 %v368
    %v2101 = vpop.f32.mrf.mxu0
    %v2102 = vadd.f32 %v2088, %v2101
    %v2103 = vpop.f32.mrf.mxu0
    %v2104 = vadd.f32 %v2090, %v2103
    %2105 = vdwg.mxu0
    %2106 = vmatpush.bf16.msra.mxu0 %v1327
    %2107 = vmatpush.bf16.msra.mxu0 %v1315
    %2108 = vmatpush.bf16.msra.mxu0 %v1303
    %2109 = vmatpush.bf16.msra.mxu0 %v1291
    %2110 = vmatpush.bf16.msra.mxu0 %v1279
    %2111 = vmatpush.bf16.msra.mxu0 %v1267
    %2112 = vmatpush.bf16.msra.mxu0 %v1255
    %2113 = vmatpush.bf16.msra.mxu0 %v1243
    %2114 = vmatmul.bf16.gmra.mxu0 %v366
    %v2115 = vpop.f32.mrf.mxu0
    %v2116 = vadd.f32 0.0, %v2115
    %v2117 = vpop.f32.mrf.mxu0
    %v2118 = vadd.f32 0.0, %v2117
    %2119 = vdwg.mxu0
    %2120 = vmatpush.bf16.msra.mxu0 %v1423
    %2121 = vmatpush.bf16.msra.mxu0 %v1411
    %2122 = vmatpush.bf16.msra.mxu0 %v1399
    %2123 = vmatpush.bf16.msra.mxu0 %v1387
    %2124 = vmatpush.bf16.msra.mxu0 %v1375
    %2125 = vmatpush.bf16.msra.mxu0 %v1363
    %2126 = vmatpush.bf16.msra.mxu0 %v1351
    %2127 = vmatpush.bf16.msra.mxu0 %v1339
    %2128 = vmatmul.bf16.gmra.mxu0 %v367
    %v2129 = vpop.f32.mrf.mxu0
    %v2130 = vadd.f32 %v2116, %v2129
    %v2131 = vpop.f32.mrf.mxu0
    %v2132 = vadd.f32 %v2118, %v2131
    %2133 = vdwg.mxu0
    %2134 = vmatpush.bf16.msra.mxu0 %v1519
    %2135 = vmatpush.bf16.msra.mxu0 %v1507
    %2136 = vmatpush.bf16.msra.mxu0 %v1495
    %2137 = vmatpush.bf16.msra.mxu0 %v1483
    %2138 = vmatpush.bf16.msra.mxu0 %v1471
    %2139 = vmatpush.bf16.msra.mxu0 %v1459
    %2140 = vmatpush.bf16.msra.mxu0 %v1447
    %2141 = vmatpush.bf16.msra.mxu0 %v1435
    %2142 = vmatmul.bf16.gmra.mxu0 %v368
    %v2143 = vpop.f32.mrf.mxu0
    %v2144 = vadd.f32 %v2130, %v2143
    %v2145 = vpop.f32.mrf.mxu0
    %v2146 = vadd.f32 %v2132, %v2145
    %2147 = vdwg.mxu0
    %2148 = vmatpush.bf16.msra.mxu0 %v1328
    %2149 = vmatpush.bf16.msra.mxu0 %v1316
    %2150 = vmatpush.bf16.msra.mxu0 %v1304
    %2151 = vmatpush.bf16.msra.mxu0 %v1292
    %2152 = vmatpush.bf16.msra.mxu0 %v1280
    %2153 = vmatpush.bf16.msra.mxu0 %v1268
    %2154 = vmatpush.bf16.msra.mxu0 %v1256
    %2155 = vmatpush.bf16.msra.mxu0 %v1244
    %2156 = vmatmul.bf16.gmra.mxu0 %v366
    %v2157 = vpop.f32.mrf.mxu0
    %v2158 = vadd.f32 0.0, %v2157
    %v2159 = vpop.f32.mrf.mxu0
    %v2160 = vadd.f32 0.0, %v2159
    %2161 = vdwg.mxu0
    %2162 = vmatpush.bf16.msra.mxu0 %v1424
    %2163 = vmatpush.bf16.msra.mxu0 %v1412
    %2164 = vmatpush.bf16.msra.mxu0 %v1400
    %2165 = vmatpush.bf16.msra.mxu0 %v1388
    %2166 = vmatpush.bf16.msra.mxu0 %v1376
    %2167 = vmatpush.bf16.msra.mxu0 %v1364
    %2168 = vmatpush.bf16.msra.mxu0 %v1352
    %2169 = vmatpush.bf16.msra.mxu0 %v1340
    %2170 = vmatmul.bf16.gmra.mxu0 %v367
    %v2171 = vpop.f32.mrf.mxu0
    %v2172 = vadd.f32 %v2158, %v2171
    %v2173 = vpop.f32.mrf.mxu0
    %v2174 = vadd.f32 %v2160, %v2173
    %2175 = vdwg.mxu0
    %2176 = vmatpush.bf16.msra.mxu0 %v1520
    %2177 = vmatpush.bf16.msra.mxu0 %v1508
    %2178 = vmatpush.bf16.msra.mxu0 %v1496
    %2179 = vmatpush.bf16.msra.mxu0 %v1484
    %2180 = vmatpush.bf16.msra.mxu0 %v1472
    %2181 = vmatpush.bf16.msra.mxu0 %v1460
    %2182 = vmatpush.bf16.msra.mxu0 %v1448
    %2183 = vmatpush.bf16.msra.mxu0 %v1436
    %2184 = vmatmul.bf16.gmra.mxu0 %v368
    %v2185 = vpop.f32.mrf.mxu0
    %v2186 = vadd.f32 %v2172, %v2185
    %v2187 = vpop.f32.mrf.mxu0
    %v2188 = vadd.f32 %v2174, %v2187
    %2189 = vdwg.mxu0
    %2190 = vmatpush.bf16.msra.mxu0 %v1329
    %2191 = vmatpush.bf16.msra.mxu0 %v1317
    %2192 = vmatpush.bf16.msra.mxu0 %v1305
    %2193 = vmatpush.bf16.msra.mxu0 %v1293
    %2194 = vmatpush.bf16.msra.mxu0 %v1281
    %2195 = vmatpush.bf16.msra.mxu0 %v1269
    %2196 = vmatpush.bf16.msra.mxu0 %v1257
    %2197 = vmatpush.bf16.msra.mxu0 %v1245
    %2198 = vmatmul.bf16.gmra.mxu0 %v366
    %v2199 = vpop.f32.mrf.mxu0
    %v2200 = vadd.f32 0.0, %v2199
    %v2201 = vpop.f32.mrf.mxu0
    %v2202 = vadd.f32 0.0, %v2201
    %2203 = vdwg.mxu0
    %2204 = vmatpush.bf16.msra.mxu0 %v1425
    %2205 = vmatpush.bf16.msra.mxu0 %v1413
    %2206 = vmatpush.bf16.msra.mxu0 %v1401
    %2207 = vmatpush.bf16.msra.mxu0 %v1389
    %2208 = vmatpush.bf16.msra.mxu0 %v1377
    %2209 = vmatpush.bf16.msra.mxu0 %v1365
    %2210 = vmatpush.bf16.msra.mxu0 %v1353
    %2211 = vmatpush.bf16.msra.mxu0 %v1341
    %2212 = vmatmul.bf16.gmra.mxu0 %v367
    %v2213 = vpop.f32.mrf.mxu0
    %v2214 = vadd.f32 %v2200, %v2213
    %v2215 = vpop.f32.mrf.mxu0
    %v2216 = vadd.f32 %v2202, %v2215
    %2217 = vdwg.mxu0
    %2218 = vmatpush.bf16.msra.mxu0 %v1521
    %2219 = vmatpush.bf16.msra.mxu0 %v1509
    %2220 = vmatpush.bf16.msra.mxu0 %v1497
    %2221 = vmatpush.bf16.msra.mxu0 %v1485
    %2222 = vmatpush.bf16.msra.mxu0 %v1473
    %2223 = vmatpush.bf16.msra.mxu0 %v1461
    %2224 = vmatpush.bf16.msra.mxu0 %v1449
    %2225 = vmatpush.bf16.msra.mxu0 %v1437
    %2226 = vmatmul.bf16.gmra.mxu0 %v368
    %v2227 = vpop.f32.mrf.mxu0
    %v2228 = vadd.f32 %v2214, %v2227
    %v2229 = vpop.f32.mrf.mxu0
    %v2230 = vadd.f32 %v2216, %v2229
    %2231 = vdwg.mxu0
    %2232 = vmatpush.bf16.msra.mxu0 %v1330
    %2233 = vmatpush.bf16.msra.mxu0 %v1318
    %2234 = vmatpush.bf16.msra.mxu0 %v1306
    %2235 = vmatpush.bf16.msra.mxu0 %v1294
    %2236 = vmatpush.bf16.msra.mxu0 %v1282
    %2237 = vmatpush.bf16.msra.mxu0 %v1270
    %2238 = vmatpush.bf16.msra.mxu0 %v1258
    %2239 = vmatpush.bf16.msra.mxu0 %v1246
    %2240 = vmatmul.bf16.gmra.mxu0 %v366
    %v2241 = vpop.f32.mrf.mxu0
    %v2242 = vadd.f32 0.0, %v2241
    %v2243 = vpop.f32.mrf.mxu0
    %v2244 = vadd.f32 0.0, %v2243
    %2245 = vdwg.mxu0
    %2246 = vmatpush.bf16.msra.mxu0 %v1426
    %2247 = vmatpush.bf16.msra.mxu0 %v1414
    %2248 = vmatpush.bf16.msra.mxu0 %v1402
    %2249 = vmatpush.bf16.msra.mxu0 %v1390
    %2250 = vmatpush.bf16.msra.mxu0 %v1378
    %2251 = vmatpush.bf16.msra.mxu0 %v1366
    %2252 = vmatpush.bf16.msra.mxu0 %v1354
    %2253 = vmatpush.bf16.msra.mxu0 %v1342
    %2254 = vmatmul.bf16.gmra.mxu0 %v367
    %v2255 = vpop.f32.mrf.mxu0
    %v2256 = vadd.f32 %v2242, %v2255
    %v2257 = vpop.f32.mrf.mxu0
    %v2258 = vadd.f32 %v2244, %v2257
    %2259 = vdwg.mxu0
    %2260 = vmatpush.bf16.msra.mxu0 %v1522
    %2261 = vmatpush.bf16.msra.mxu0 %v1510
    %2262 = vmatpush.bf16.msra.mxu0 %v1498
    %2263 = vmatpush.bf16.msra.mxu0 %v1486
    %2264 = vmatpush.bf16.msra.mxu0 %v1474
    %2265 = vmatpush.bf16.msra.mxu0 %v1462
    %2266 = vmatpush.bf16.msra.mxu0 %v1450
    %2267 = vmatpush.bf16.msra.mxu0 %v1438
    %2268 = vmatmul.bf16.gmra.mxu0 %v368
    %v2269 = vpop.f32.mrf.mxu0
    %v2270 = vadd.f32 %v2256, %v2269
    %v2271 = vpop.f32.mrf.mxu0
    %v2272 = vadd.f32 %v2258, %v2271
    %2273 = vdwg.mxu0
    %2274 = vmatpush.bf16.msra.mxu0 %v1331
    %2275 = vmatpush.bf16.msra.mxu0 %v1319
    %2276 = vmatpush.bf16.msra.mxu0 %v1307
    %2277 = vmatpush.bf16.msra.mxu0 %v1295
    %2278 = vmatpush.bf16.msra.mxu0 %v1283
    %2279 = vmatpush.bf16.msra.mxu0 %v1271
    %2280 = vmatpush.bf16.msra.mxu0 %v1259
    %2281 = vmatpush.bf16.msra.mxu0 %v1247
    %2282 = vmatmul.bf16.gmra.mxu0 %v366
    %v2283 = vpop.f32.mrf.mxu0
    %v2284 = vadd.f32 0.0, %v2283
    %v2285 = vpop.f32.mrf.mxu0
    %v2286 = vadd.f32 0.0, %v2285
    %2287 = vdwg.mxu0
    %2288 = vmatpush.bf16.msra.mxu0 %v1427
    %2289 = vmatpush.bf16.msra.mxu0 %v1415
    %2290 = vmatpush.bf16.msra.mxu0 %v1403
    %2291 = vmatpush.bf16.msra.mxu0 %v1391
    %2292 = vmatpush.bf16.msra.mxu0 %v1379
    %2293 = vmatpush.bf16.msra.mxu0 %v1367
    %2294 = vmatpush.bf16.msra.mxu0 %v1355
    %2295 = vmatpush.bf16.msra.mxu0 %v1343
    %2296 = vmatmul.bf16.gmra.mxu0 %v367
    %v2297 = vpop.f32.mrf.mxu0
    %v2298 = vadd.f32 %v2284, %v2297
    %v2299 = vpop.f32.mrf.mxu0
    %v2300 = vadd.f32 %v2286, %v2299
    %2301 = vdwg.mxu0
    %2302 = vmatpush.bf16.msra.mxu0 %v1523
    %2303 = vmatpush.bf16.msra.mxu0 %v1511
    %2304 = vmatpush.bf16.msra.mxu0 %v1499
    %2305 = vmatpush.bf16.msra.mxu0 %v1487
    %2306 = vmatpush.bf16.msra.mxu0 %v1475
    %2307 = vmatpush.bf16.msra.mxu0 %v1463
    %2308 = vmatpush.bf16.msra.mxu0 %v1451
    %2309 = vmatpush.bf16.msra.mxu0 %v1439
    %2310 = vmatmul.bf16.gmra.mxu0 %v368
    %v2311 = vpop.f32.mrf.mxu0
    %v2312 = vadd.f32 %v2298, %v2311
    %v2313 = vpop.f32.mrf.mxu0
    %v2314 = vadd.f32 %v2300, %v2313
    %2315 = vdwg.mxu0
    %v2316 = vmul.f32 %v1850, 0.5
    %v2317 = vmul.f32 %v1892, 0.5
    %v2318 = vmul.f32 %v1934, 0.5
    %v2319 = vmul.f32 %v1976, 0.5
    %v2320 = vmul.f32 %v2018, 0.5
    %v2321 = vmul.f32 %v2060, 0.5
    %v2322 = vmul.f32 %v2102, 0.5
    %v2323 = vmul.f32 %v2144, 0.5
    %v2324 = vmul.f32 %v2186, 0.5
    %v2325 = vmul.f32 %v2228, 0.5
    %v2326 = vmul.f32 %v2270, 0.5
    %v2327 = vmul.f32 %v2312, 0.5
    %v2328 = vmul.f32 %v1852, 0.5
    %v2329 = vmul.f32 %v1894, 0.5
    %v2330 = vmul.f32 %v1936, 0.5
    %v2331 = vmul.f32 %v1978, 0.5
    %v2332 = vmul.f32 %v2020, 0.5
    %v2333 = vmul.f32 %v2062, 0.5
    %v2334 = vmul.f32 %v2104, 0.5
    %v2335 = vmul.f32 %v2146, 0.5
    %v2336 = vmul.f32 %v2188, 0.5
    %v2337 = vmul.f32 %v2230, 0.5
    %v2338 = vmul.f32 %v2272, 0.5
    %v2339 = vmul.f32 %v2314, 0.5
    %v2340 = vmul.f32 %v1850, %v1850
    %v2341 = vmul.f32 %v1892, %v1892
    %v2342 = vmul.f32 %v1934, %v1934
    %v2343 = vmul.f32 %v1976, %v1976
    %v2344 = vmul.f32 %v2018, %v2018
    %v2345 = vmul.f32 %v2060, %v2060
    %v2346 = vmul.f32 %v2102, %v2102
    %v2347 = vmul.f32 %v2144, %v2144
    %v2348 = vmul.f32 %v2186, %v2186
    %v2349 = vmul.f32 %v2228, %v2228
    %v2350 = vmul.f32 %v2270, %v2270
    %v2351 = vmul.f32 %v2312, %v2312
    %v2352 = vmul.f32 %v1852, %v1852
    %v2353 = vmul.f32 %v1894, %v1894
    %v2354 = vmul.f32 %v1936, %v1936
    %v2355 = vmul.f32 %v1978, %v1978
    %v2356 = vmul.f32 %v2020, %v2020
    %v2357 = vmul.f32 %v2062, %v2062
    %v2358 = vmul.f32 %v2104, %v2104
    %v2359 = vmul.f32 %v2146, %v2146
    %v2360 = vmul.f32 %v2188, %v2188
    %v2361 = vmul.f32 %v2230, %v2230
    %v2362 = vmul.f32 %v2272, %v2272
    %v2363 = vmul.f32 %v2314, %v2314
    %v2364 = vmul.f32 %v2340, %v1850
    %v2365 = vmul.f32 %v2341, %v1892
    %v2366 = vmul.f32 %v2342, %v1934
    %v2367 = vmul.f32 %v2343, %v1976
    %v2368 = vmul.f32 %v2344, %v2018
    %v2369 = vmul.f32 %v2345, %v2060
    %v2370 = vmul.f32 %v2346, %v2102
    %v2371 = vmul.f32 %v2347, %v2144
    %v2372 = vmul.f32 %v2348, %v2186
    %v2373 = vmul.f32 %v2349, %v2228
    %v2374 = vmul.f32 %v2350, %v2270
    %v2375 = vmul.f32 %v2351, %v2312
    %v2376 = vmul.f32 %v2352, %v1852
    %v2377 = vmul.f32 %v2353, %v1894
    %v2378 = vmul.f32 %v2354, %v1936
    %v2379 = vmul.f32 %v2355, %v1978
    %v2380 = vmul.f32 %v2356, %v2020
    %v2381 = vmul.f32 %v2357, %v2062
    %v2382 = vmul.f32 %v2358, %v2104
    %v2383 = vmul.f32 %v2359, %v2146
    %v2384 = vmul.f32 %v2360, %v2188
    %v2385 = vmul.f32 %v2361, %v2230
    %v2386 = vmul.f32 %v2362, %v2272
    %v2387 = vmul.f32 %v2363, %v2314
    %v2388 = vmul.f32 %v2364, 0.044715
    %v2389 = vmul.f32 %v2365, 0.044715
    %v2390 = vmul.f32 %v2366, 0.044715
    %v2391 = vmul.f32 %v2367, 0.044715
    %v2392 = vmul.f32 %v2368, 0.044715
    %v2393 = vmul.f32 %v2369, 0.044715
    %v2394 = vmul.f32 %v2370, 0.044715
    %v2395 = vmul.f32 %v2371, 0.044715
    %v2396 = vmul.f32 %v2372, 0.044715
    %v2397 = vmul.f32 %v2373, 0.044715
    %v2398 = vmul.f32 %v2374, 0.044715
    %v2399 = vmul.f32 %v2375, 0.044715
    %v2400 = vmul.f32 %v2376, 0.044715
    %v2401 = vmul.f32 %v2377, 0.044715
    %v2402 = vmul.f32 %v2378, 0.044715
    %v2403 = vmul.f32 %v2379, 0.044715
    %v2404 = vmul.f32 %v2380, 0.044715
    %v2405 = vmul.f32 %v2381, 0.044715
    %v2406 = vmul.f32 %v2382, 0.044715
    %v2407 = vmul.f32 %v2383, 0.044715
    %v2408 = vmul.f32 %v2384, 0.044715
    %v2409 = vmul.f32 %v2385, 0.044715
    %v2410 = vmul.f32 %v2386, 0.044715
    %v2411 = vmul.f32 %v2387, 0.044715
    %v2412 = vadd.f32 %v1850, %v2388
    %v2413 = vadd.f32 %v1892, %v2389
    %v2414 = vadd.f32 %v1934, %v2390
    %v2415 = vadd.f32 %v1976, %v2391
    %v2416 = vadd.f32 %v2018, %v2392
    %v2417 = vadd.f32 %v2060, %v2393
    %v2418 = vadd.f32 %v2102, %v2394
    %v2419 = vadd.f32 %v2144, %v2395
    %v2420 = vadd.f32 %v2186, %v2396
    %v2421 = vadd.f32 %v2228, %v2397
    %v2422 = vadd.f32 %v2270, %v2398
    %v2423 = vadd.f32 %v2312, %v2399
    %v2424 = vadd.f32 %v1852, %v2400
    %v2425 = vadd.f32 %v1894, %v2401
    %v2426 = vadd.f32 %v1936, %v2402
    %v2427 = vadd.f32 %v1978, %v2403
    %v2428 = vadd.f32 %v2020, %v2404
    %v2429 = vadd.f32 %v2062, %v2405
    %v2430 = vadd.f32 %v2104, %v2406
    %v2431 = vadd.f32 %v2146, %v2407
    %v2432 = vadd.f32 %v2188, %v2408
    %v2433 = vadd.f32 %v2230, %v2409
    %v2434 = vadd.f32 %v2272, %v2410
    %v2435 = vadd.f32 %v2314, %v2411
    %v2436 = vmul.f32 %v2412, 0.7978846
    %v2437 = vmul.f32 %v2413, 0.7978846
    %v2438 = vmul.f32 %v2414, 0.7978846
    %v2439 = vmul.f32 %v2415, 0.7978846
    %v2440 = vmul.f32 %v2416, 0.7978846
    %v2441 = vmul.f32 %v2417, 0.7978846
    %v2442 = vmul.f32 %v2418, 0.7978846
    %v2443 = vmul.f32 %v2419, 0.7978846
    %v2444 = vmul.f32 %v2420, 0.7978846
    %v2445 = vmul.f32 %v2421, 0.7978846
    %v2446 = vmul.f32 %v2422, 0.7978846
    %v2447 = vmul.f32 %v2423, 0.7978846
    %v2448 = vmul.f32 %v2424, 0.7978846
    %v2449 = vmul.f32 %v2425, 0.7978846
    %v2450 = vmul.f32 %v2426, 0.7978846
    %v2451 = vmul.f32 %v2427, 0.7978846
    %v2452 = vmul.f32 %v2428, 0.7978846
    %v2453 = vmul.f32 %v2429, 0.7978846
    %v2454 = vmul.f32 %v2430, 0.7978846
    %v2455 = vmul.f32 %v2431, 0.7978846
    %v2456 = vmul.f32 %v2432, 0.7978846
    %v2457 = vmul.f32 %v2433, 0.7978846
    %v2458 = vmul.f32 %v2434, 0.7978846
    %v2459 = vmul.f32 %v2435, 0.7978846
    %v2460 = vtanh.pop %v2436
    %v2461 = vtanh.pop %v2437
    %v2462 = vtanh.pop %v2438
    %v2463 = vtanh.pop %v2439
    %v2464 = vtanh.pop %v2440
    %v2465 = vtanh.pop %v2441
    %v2466 = vtanh.pop %v2442
    %v2467 = vtanh.pop %v2443
    %v2468 = vtanh.pop %v2444
    %v2469 = vtanh.pop %v2445
    %v2470 = vtanh.pop %v2446
    %v2471 = vtanh.pop %v2447
    %v2472 = vtanh.pop %v2448
    %v2473 = vtanh.pop %v2449
    %v2474 = vtanh.pop %v2450
    %v2475 = vtanh.pop %v2451
    %v2476 = vtanh.pop %v2452
    %v2477 = vtanh.pop %v2453
    %v2478 = vtanh.pop %v2454
    %v2479 = vtanh.pop %v2455
    %v2480 = vtanh.pop %v2456
    %v2481 = vtanh.pop %v2457
    %v2482 = vtanh.pop %v2458
    %v2483 = vtanh.pop %v2459
    %v2484 = vadd.f32 %v2460, 1.0
    %v2485 = vadd.f32 %v2461, 1.0
    %v2486 = vadd.f32 %v2462, 1.0
    %v2487 = vadd.f32 %v2463, 1.0
    %v2488 = vadd.f32 %v2464, 1.0
    %v2489 = vadd.f32 %v2465, 1.0
    %v2490 = vadd.f32 %v2466, 1.0
    %v2491 = vadd.f32 %v2467, 1.0
    %v2492 = vadd.f32 %v2468, 1.0
    %v2493 = vadd.f32 %v2469, 1.0
    %v2494 = vadd.f32 %v2470, 1.0
    %v2495 = vadd.f32 %v2471, 1.0
    %v2496 = vadd.f32 %v2472, 1.0
    %v2497 = vadd.f32 %v2473, 1.0
    %v2498 = vadd.f32 %v2474, 1.0
    %v2499 = vadd.f32 %v2475, 1.0
    %v2500 = vadd.f32 %v2476, 1.0
    %v2501 = vadd.f32 %v2477, 1.0
    %v2502 = vadd.f32 %v2478, 1.0
    %v2503 = vadd.f32 %v2479, 1.0
    %v2504 = vadd.f32 %v2480, 1.0
    %v2505 = vadd.f32 %v2481, 1.0
    %v2506 = vadd.f32 %v2482, 1.0
    %v2507 = vadd.f32 %v2483, 1.0
    %v2508 = vmul.f32 %v2316, %v2484
    %v2509 = vmul.f32 %v2317, %v2485
    %v2510 = vmul.f32 %v2318, %v2486
    %v2511 = vmul.f32 %v2319, %v2487
    %v2512 = vmul.f32 %v2320, %v2488
    %v2513 = vmul.f32 %v2321, %v2489
    %v2514 = vmul.f32 %v2322, %v2490
    %v2515 = vmul.f32 %v2323, %v2491
    %v2516 = vmul.f32 %v2324, %v2492
    %v2517 = vmul.f32 %v2325, %v2493
    %v2518 = vmul.f32 %v2326, %v2494
    %v2519 = vmul.f32 %v2327, %v2495
    %v2520 = vmul.f32 %v2328, %v2496
    %v2521 = vmul.f32 %v2329, %v2497
    %v2522 = vmul.f32 %v2330, %v2498
    %v2523 = vmul.f32 %v2331, %v2499
    %v2524 = vmul.f32 %v2332, %v2500
    %v2525 = vmul.f32 %v2333, %v2501
    %v2526 = vmul.f32 %v2334, %v2502
    %v2527 = vmul.f32 %v2335, %v2503
    %v2528 = vmul.f32 %v2336, %v2504
    %v2529 = vmul.f32 %v2337, %v2505
    %v2530 = vmul.f32 %v2338, %v2506
    %v2531 = vmul.f32 %v2339, %v2507
    %v2532 = vpack.c.bf16 %v2520, %v2508
    %v2533 = vpack.c.bf16 %v2521, %v2509
    %v2534 = vpack.c.bf16 %v2522, %v2510
    %v2535 = vpack.c.bf16 %v2523, %v2511
    %v2536 = vpack.c.bf16 %v2524, %v2512
    %v2537 = vpack.c.bf16 %v2525, %v2513
    %v2538 = vpack.c.bf16 %v2526, %v2514
    %v2539 = vpack.c.bf16 %v2527, %v2515
    %v2540 = vpack.c.bf16 %v2528, %v2516
    %v2541 = vpack.c.bf16 %v2529, %v2517
    %v2542 = vpack.c.bf16 %v2530, %v2518
    %v2543 = vpack.c.bf16 %v2531, %v2519
    %v2544 = vld [vmem:[#allocation9] sm:$0xff]
    %v2545 = vld [vmem:[#allocation9 + $0x8] sm:$0xf]
    %v2546 = vld [vmem:[#allocation9 + $0xc] sm:$0xff]
    %v2547 = vld [vmem:[#allocation9 + $0x14] sm:$0xf]
    %v2548 = vld [vmem:[#allocation9 + $0x18] sm:$0xff]
    %v2549 = vld [vmem:[#allocation9 + $0x20] sm:$0xf]
    %v2550 = vld [vmem:[#allocation9 + $0x24] sm:$0xff]
    %v2551 = vld [vmem:[#allocation9 + $0x2c] sm:$0xf]
    %v2552 = vld [vmem:[#allocation9 + $0x30] sm:$0xff]
    %v2553 = vld [vmem:[#allocation9 + $0x38] sm:$0xf]
    %v2554 = vld [vmem:[#allocation9 + $0x3c] sm:$0xff]
    %v2555 = vld [vmem:[#allocation9 + $0x44] sm:$0xf]
    %v2556 = vld [vmem:[#allocation9 + $0x48] sm:$0xff]
    %v2557 = vld [vmem:[#allocation9 + $0x50] sm:$0xf]
    %v2558 = vld [vmem:[#allocation9 + $0x54] sm:$0xff]
    %v2559 = vld [vmem:[#allocation9 + $0x5c] sm:$0xf]
    %v2560 = vld [vmem:[#allocation9 + $0x60] sm:$0xff]
    %v2561 = vld [vmem:[#allocation9 + $0x68] sm:$0xf]
    %v2562 = vld [vmem:[#allocation9 + $0x6c] sm:$0xff]
    %v2563 = vld [vmem:[#allocation9 + $0x74] sm:$0xf]
    %v2564 = vld [vmem:[#allocation9 + $0x78] sm:$0xff]
    %v2565 = vld [vmem:[#allocation9 + $0x80] sm:$0xf]
    %v2566 = vld [vmem:[#allocation9 + $0x84] sm:$0xff]
    %v2567 = vld [vmem:[#allocation9 + $0x8c] sm:$0xf]
    %v2568 = vld [vmem:[#allocation9 + $0x90] sm:$0xff]
    %v2569 = vld [vmem:[#allocation9 + $0x98] sm:$0xf]
    %v2570 = vld [vmem:[#allocation9 + $0x9c] sm:$0xff]
    %v2571 = vld [vmem:[#allocation9 + $0xa4] sm:$0xf]
    %v2572 = vld [vmem:[#allocation9 + $0xa8] sm:$0xff]
    %v2573 = vld [vmem:[#allocation9 + $0xb0] sm:$0xf]
    %v2574 = vld [vmem:[#allocation9 + $0xb4] sm:$0xff]
    %v2575 = vld [vmem:[#allocation9 + $0xbc] sm:$0xf]
    %v2576 = vld [vmem:[#allocation9 + $0xc0] sm:$0xff]
    %v2577 = vld [vmem:[#allocation9 + $0xc8] sm:$0xf]
    %v2578 = vld [vmem:[#allocation9 + $0xcc] sm:$0xff]
    %v2579 = vld [vmem:[#allocation9 + $0xd4] sm:$0xf]
    %v2580 = vld [vmem:[#allocation9 + $0xd8] sm:$0xff]
    %v2581 = vld [vmem:[#allocation9 + $0xe0] sm:$0xf]
    %v2582 = vld [vmem:[#allocation9 + $0xe4] sm:$0xff]
    %v2583 = vld [vmem:[#allocation9 + $0xec] sm:$0xf]
    %v2584 = vld [vmem:[#allocation9 + $0xf0] sm:$0xff]
    %v2585 = vld [vmem:[#allocation9 + $0xf8] sm:$0xf]
    %v2586 = vld [vmem:[#allocation9 + $0xfc] sm:$0xff]
    %v2587 = vld [vmem:[#allocation9 + $0x104] sm:$0xf]
    %v2588 = vld [vmem:[#allocation9 + $0x108] sm:$0xff]
    %v2589 = vld [vmem:[#allocation9 + $0x110] sm:$0xf]
    %v2590 = vld [vmem:[#allocation9 + $0x114] sm:$0xff]
    %v2591 = vld [vmem:[#allocation9 + $0x11c] sm:$0xf]
    %v2592 = vld [vmem:[#allocation9 + $0x120] sm:$0xff]
    %v2593 = vld [vmem:[#allocation9 + $0x128] sm:$0xf]
    %v2594 = vld [vmem:[#allocation9 + $0x12c] sm:$0xff]
    %v2595 = vld [vmem:[#allocation9 + $0x134] sm:$0xf]
    %v2596 = vld [vmem:[#allocation9 + $0x138] sm:$0xff]
    %v2597 = vld [vmem:[#allocation9 + $0x140] sm:$0xf]
    %v2598 = vld [vmem:[#allocation9 + $0x144] sm:$0xff]
    %v2599 = vld [vmem:[#allocation9 + $0x14c] sm:$0xf]
    %v2600 = vld [vmem:[#allocation9 + $0x150] sm:$0xff]
    %v2601 = vld [vmem:[#allocation9 + $0x158] sm:$0xf]
    %v2602 = vld [vmem:[#allocation9 + $0x15c] sm:$0xff]
    %v2603 = vld [vmem:[#allocation9 + $0x164] sm:$0xf]
    %v2604 = vld [vmem:[#allocation9 + $0x168] sm:$0xff]
    %v2605 = vld [vmem:[#allocation9 + $0x170] sm:$0xf]
    %v2606 = vld [vmem:[#allocation9 + $0x174] sm:$0xff]
    %v2607 = vld [vmem:[#allocation9 + $0x17c] sm:$0xf]
    %v2608 = vld [vmem:[#allocation9 + $0x180] sm:$0xff]
    %v2609 = vld [vmem:[#allocation9 + $0x188] sm:$0xf]
    %v2610 = vld [vmem:[#allocation9 + $0x18c] sm:$0xff]
    %v2611 = vld [vmem:[#allocation9 + $0x194] sm:$0xf]
    %v2612 = vld [vmem:[#allocation9 + $0x198] sm:$0xff]
    %v2613 = vld [vmem:[#allocation9 + $0x1a0] sm:$0xf]
    %v2614 = vld [vmem:[#allocation9 + $0x1a4] sm:$0xff]
    %v2615 = vld [vmem:[#allocation9 + $0x1ac] sm:$0xf]
    %v2616 = vld [vmem:[#allocation9 + $0x1b0] sm:$0xff]
    %v2617 = vld [vmem:[#allocation9 + $0x1b8] sm:$0xf]
    %v2618 = vld [vmem:[#allocation9 + $0x1bc] sm:$0xff]
    %v2619 = vld [vmem:[#allocation9 + $0x1c4] sm:$0xf]
    %v2620 = vld [vmem:[#allocation9 + $0x1c8] sm:$0xff]
    %v2621 = vld [vmem:[#allocation9 + $0x1d0] sm:$0xf]
    %v2622 = vld [vmem:[#allocation9 + $0x1d4] sm:$0xff]
    %v2623 = vld [vmem:[#allocation9 + $0x1dc] sm:$0xf]
    %v2624 = vld [vmem:[#allocation9 + $0x1e0] sm:$0xff]
    %v2625 = vld [vmem:[#allocation9 + $0x1e8] sm:$0xf]
    %v2626 = vld [vmem:[#allocation9 + $0x1ec] sm:$0xff]
    %v2627 = vld [vmem:[#allocation9 + $0x1f4] sm:$0xf]
    %v2628 = vld [vmem:[#allocation9 + $0x1f8] sm:$0xff]
    %v2629 = vld [vmem:[#allocation9 + $0x200] sm:$0xf]
    %v2630 = vld [vmem:[#allocation9 + $0x204] sm:$0xff]
    %v2631 = vld [vmem:[#allocation9 + $0x20c] sm:$0xf]
    %v2632 = vld [vmem:[#allocation9 + $0x210] sm:$0xff]
    %v2633 = vld [vmem:[#allocation9 + $0x218] sm:$0xf]
    %v2634 = vld [vmem:[#allocation9 + $0x21c] sm:$0xff]
    %v2635 = vld [vmem:[#allocation9 + $0x224] sm:$0xf]
    %v2636 = vld [vmem:[#allocation9 + $0x228] sm:$0xff]
    %v2637 = vld [vmem:[#allocation9 + $0x230] sm:$0xf]
    %v2638 = vld [vmem:[#allocation9 + $0x234] sm:$0xff]
    %v2639 = vld [vmem:[#allocation9 + $0x23c] sm:$0xf]
    %v2640 = vld [vmem:[#allocation9 + $0x240] sm:$0xff]
    %v2641 = vld [vmem:[#allocation9 + $0x248] sm:$0xf]
    %v2642 = vld [vmem:[#allocation9 + $0x24c] sm:$0xff]
    %v2643 = vld [vmem:[#allocation9 + $0x254] sm:$0xf]
    %v2644 = vld [vmem:[#allocation9 + $0x258] sm:$0xff]
    %v2645 = vld [vmem:[#allocation9 + $0x260] sm:$0xf]
    %v2646 = vld [vmem:[#allocation9 + $0x264] sm:$0xff]
    %v2647 = vld [vmem:[#allocation9 + $0x26c] sm:$0xf]
    %v2648 = vld [vmem:[#allocation9 + $0x270] sm:$0xff]
    %v2649 = vld [vmem:[#allocation9 + $0x278] sm:$0xf]
    %v2650 = vld [vmem:[#allocation9 + $0x27c] sm:$0xff]
    %v2651 = vld [vmem:[#allocation9 + $0x284] sm:$0xf]
    %v2652 = vld [vmem:[#allocation9 + $0x288] sm:$0xff]
    %v2653 = vld [vmem:[#allocation9 + $0x290] sm:$0xf]
    %v2654 = vld [vmem:[#allocation9 + $0x294] sm:$0xff]
    %v2655 = vld [vmem:[#allocation9 + $0x29c] sm:$0xf]
    %v2656 = vld [vmem:[#allocation9 + $0x2a0] sm:$0xff]
    %v2657 = vld [vmem:[#allocation9 + $0x2a8] sm:$0xf]
    %v2658 = vld [vmem:[#allocation9 + $0x2ac] sm:$0xff]
    %v2659 = vld [vmem:[#allocation9 + $0x2b4] sm:$0xf]
    %v2660 = vld [vmem:[#allocation9 + $0x2b8] sm:$0xff]
    %v2661 = vld [vmem:[#allocation9 + $0x2c0] sm:$0xf]
    %v2662 = vld [vmem:[#allocation9 + $0x2c4] sm:$0xff]
    %v2663 = vld [vmem:[#allocation9 + $0x2cc] sm:$0xf]
    %v2664 = vld [vmem:[#allocation9 + $0x2d0] sm:$0xff]
    %v2665 = vld [vmem:[#allocation9 + $0x2d8] sm:$0xf]
    %v2666 = vld [vmem:[#allocation9 + $0x2dc] sm:$0xff]
    %v2667 = vld [vmem:[#allocation9 + $0x2e4] sm:$0xf]
    %v2668 = vld [vmem:[#allocation9 + $0x2e8] sm:$0xff]
    %v2669 = vld [vmem:[#allocation9 + $0x2f0] sm:$0xf]
    %v2670 = vld [vmem:[#allocation9 + $0x2f4] sm:$0xff]
    %v2671 = vld [vmem:[#allocation9 + $0x2fc] sm:$0xf]
    %v2672 = vld [vmem:[#allocation9 + $0x300] sm:$0xff]
    %v2673 = vld [vmem:[#allocation9 + $0x308] sm:$0xf]
    %v2674 = vld [vmem:[#allocation9 + $0x30c] sm:$0xff]
    %v2675 = vld [vmem:[#allocation9 + $0x314] sm:$0xf]
    %v2676 = vld [vmem:[#allocation9 + $0x318] sm:$0xff]
    %v2677 = vld [vmem:[#allocation9 + $0x320] sm:$0xf]
    %v2678 = vld [vmem:[#allocation9 + $0x324] sm:$0xff]
    %v2679 = vld [vmem:[#allocation9 + $0x32c] sm:$0xf]
    %v2680 = vld [vmem:[#allocation9 + $0x330] sm:$0xff]
    %v2681 = vld [vmem:[#allocation9 + $0x338] sm:$0xf]
    %v2682 = vld [vmem:[#allocation9 + $0x33c] sm:$0xff]
    %v2683 = vld [vmem:[#allocation9 + $0x344] sm:$0xf]
    %v2684 = vld [vmem:[#allocation9 + $0x348] sm:$0xff]
    %v2685 = vld [vmem:[#allocation9 + $0x350] sm:$0xf]
    %v2686 = vld [vmem:[#allocation9 + $0x354] sm:$0xff]
    %v2687 = vld [vmem:[#allocation9 + $0x35c] sm:$0xf]
    %v2688 = vld [vmem:[#allocation9 + $0x360] sm:$0xff]
    %v2689 = vld [vmem:[#allocation9 + $0x368] sm:$0xf]
    %v2690 = vld [vmem:[#allocation9 + $0x36c] sm:$0xff]
    %v2691 = vld [vmem:[#allocation9 + $0x374] sm:$0xf]
    %v2692 = vld [vmem:[#allocation9 + $0x378] sm:$0xff]
    %v2693 = vld [vmem:[#allocation9 + $0x380] sm:$0xf]
    %v2694 = vld [vmem:[#allocation9 + $0x384] sm:$0xff]
    %v2695 = vld [vmem:[#allocation9 + $0x38c] sm:$0xf]
    %v2696 = vld [vmem:[#allocation9 + $0x390] sm:$0xff]
    %v2697 = vld [vmem:[#allocation9 + $0x398] sm:$0xf]
    %v2698 = vld [vmem:[#allocation9 + $0x39c] sm:$0xff]
    %v2699 = vld [vmem:[#allocation9 + $0x3a4] sm:$0xf]
    %v2700 = vld [vmem:[#allocation9 + $0x3a8] sm:$0xff]
    %v2701 = vld [vmem:[#allocation9 + $0x3b0] sm:$0xf]
    %v2702 = vld [vmem:[#allocation9 + $0x3b4] sm:$0xff]
    %v2703 = vld [vmem:[#allocation9 + $0x3bc] sm:$0xf]
    %v2704 = vld [vmem:[#allocation9 + $0x3c0] sm:$0xff]
    %v2705 = vld [vmem:[#allocation9 + $0x3c8] sm:$0xf]
    %v2706 = vld [vmem:[#allocation9 + $0x3cc] sm:$0xff]
    %v2707 = vld [vmem:[#allocation9 + $0x3d4] sm:$0xf]
    %v2708 = vld [vmem:[#allocation9 + $0x3d8] sm:$0xff]
    %v2709 = vld [vmem:[#allocation9 + $0x3e0] sm:$0xf]
    %v2710 = vld [vmem:[#allocation9 + $0x3e4] sm:$0xff]
    %v2711 = vld [vmem:[#allocation9 + $0x3ec] sm:$0xf]
    %v2712 = vld [vmem:[#allocation9 + $0x3f0] sm:$0xff]
    %v2713 = vld [vmem:[#allocation9 + $0x3f8] sm:$0xf]
    %v2714 = vld [vmem:[#allocation9 + $0x3fc] sm:$0xff]
    %v2715 = vld [vmem:[#allocation9 + $0x404] sm:$0xf]
    %v2716 = vld [vmem:[#allocation9 + $0x408] sm:$0xff]
    %v2717 = vld [vmem:[#allocation9 + $0x410] sm:$0xf]
    %v2718 = vld [vmem:[#allocation9 + $0x414] sm:$0xff]
    %v2719 = vld [vmem:[#allocation9 + $0x41c] sm:$0xf]
    %v2720 = vld [vmem:[#allocation9 + $0x420] sm:$0xff]
    %v2721 = vld [vmem:[#allocation9 + $0x428] sm:$0xf]
    %v2722 = vld [vmem:[#allocation9 + $0x42c] sm:$0xff]
    %v2723 = vld [vmem:[#allocation9 + $0x434] sm:$0xf]
    %v2724 = vld [vmem:[#allocation9 + $0x438] sm:$0xff]
    %v2725 = vld [vmem:[#allocation9 + $0x440] sm:$0xf]
    %v2726 = vld [vmem:[#allocation9 + $0x444] sm:$0xff]
    %v2727 = vld [vmem:[#allocation9 + $0x44c] sm:$0xf]
    %v2728 = vld [vmem:[#allocation9 + $0x450] sm:$0xff]
    %v2729 = vld [vmem:[#allocation9 + $0x458] sm:$0xf]
    %v2730 = vld [vmem:[#allocation9 + $0x45c] sm:$0xff]
    %v2731 = vld [vmem:[#allocation9 + $0x464] sm:$0xf]
    %v2732 = vld [vmem:[#allocation9 + $0x468] sm:$0xff]
    %v2733 = vld [vmem:[#allocation9 + $0x470] sm:$0xf]
    %v2734 = vld [vmem:[#allocation9 + $0x474] sm:$0xff]
    %v2735 = vld [vmem:[#allocation9 + $0x47c] sm:$0xf]
    %v2736 = vld [vmem:[#allocation9 + $0x480] sm:$0xff]
    %v2737 = vld [vmem:[#allocation9 + $0x488] sm:$0xf]
    %v2738 = vld [vmem:[#allocation9 + $0x48c] sm:$0xff]
    %v2739 = vld [vmem:[#allocation9 + $0x494] sm:$0xf]
    %v2740 = vld [vmem:[#allocation9 + $0x498] sm:$0xff]
    %v2741 = vld [vmem:[#allocation9 + $0x4a0] sm:$0xf]
    %v2742 = vld [vmem:[#allocation9 + $0x4a4] sm:$0xff]
    %v2743 = vld [vmem:[#allocation9 + $0x4ac] sm:$0xf]
    %v2744 = vld [vmem:[#allocation9 + $0x4b0] sm:$0xff]
    %v2745 = vld [vmem:[#allocation9 + $0x4b8] sm:$0xf]
    %v2746 = vld [vmem:[#allocation9 + $0x4bc] sm:$0xff]
    %v2747 = vld [vmem:[#allocation9 + $0x4c4] sm:$0xf]
    %v2748 = vld [vmem:[#allocation9 + $0x4c8] sm:$0xff]
    %v2749 = vld [vmem:[#allocation9 + $0x4d0] sm:$0xf]
    %v2750 = vld [vmem:[#allocation9 + $0x4d4] sm:$0xff]
    %v2751 = vld [vmem:[#allocation9 + $0x4dc] sm:$0xf]
    %v2752 = vld [vmem:[#allocation9 + $0x4e0] sm:$0xff]
    %v2753 = vld [vmem:[#allocation9 + $0x4e8] sm:$0xf]
    %v2754 = vld [vmem:[#allocation9 + $0x4ec] sm:$0xff]
    %v2755 = vld [vmem:[#allocation9 + $0x4f4] sm:$0xf]
    %v2756 = vld [vmem:[#allocation9 + $0x4f8] sm:$0xff]
    %v2757 = vld [vmem:[#allocation9 + $0x500] sm:$0xf]
    %v2758 = vld [vmem:[#allocation9 + $0x504] sm:$0xff]
    %v2759 = vld [vmem:[#allocation9 + $0x50c] sm:$0xf]
    %v2760 = vld [vmem:[#allocation9 + $0x510] sm:$0xff]
    %v2761 = vld [vmem:[#allocation9 + $0x518] sm:$0xf]
    %v2762 = vld [vmem:[#allocation9 + $0x51c] sm:$0xff]
    %v2763 = vld [vmem:[#allocation9 + $0x524] sm:$0xf]
    %v2764 = vld [vmem:[#allocation9 + $0x528] sm:$0xff]
    %v2765 = vld [vmem:[#allocation9 + $0x530] sm:$0xf]
    %v2766 = vld [vmem:[#allocation9 + $0x534] sm:$0xff]
    %v2767 = vld [vmem:[#allocation9 + $0x53c] sm:$0xf]
    %v2768 = vld [vmem:[#allocation9 + $0x540] sm:$0xff]
    %v2769 = vld [vmem:[#allocation9 + $0x548] sm:$0xf]
    %v2770 = vld [vmem:[#allocation9 + $0x54c] sm:$0xff]
    %v2771 = vld [vmem:[#allocation9 + $0x554] sm:$0xf]
    %v2772 = vld [vmem:[#allocation9 + $0x558] sm:$0xff]
    %v2773 = vld [vmem:[#allocation9 + $0x560] sm:$0xf]
    %v2774 = vld [vmem:[#allocation9 + $0x564] sm:$0xff]
    %v2775 = vld [vmem:[#allocation9 + $0x56c] sm:$0xf]
    %v2776 = vld [vmem:[#allocation9 + $0x570] sm:$0xff]
    %v2777 = vld [vmem:[#allocation9 + $0x578] sm:$0xf]
    %v2778 = vld [vmem:[#allocation9 + $0x57c] sm:$0xff]
    %v2779 = vld [vmem:[#allocation9 + $0x584] sm:$0xf]
    %v2780 = vld [vmem:[#allocation9 + $0x588] sm:$0xff]
    %v2781 = vld [vmem:[#allocation9 + $0x590] sm:$0xf]
    %v2782 = vld [vmem:[#allocation9 + $0x594] sm:$0xff]
    %v2783 = vld [vmem:[#allocation9 + $0x59c] sm:$0xf]
    %v2784 = vld [vmem:[#allocation9 + $0x5a0] sm:$0xff]
    %v2785 = vld [vmem:[#allocation9 + $0x5a8] sm:$0xf]
    %v2786 = vld [vmem:[#allocation9 + $0x5ac] sm:$0xff]
    %v2787 = vld [vmem:[#allocation9 + $0x5b4] sm:$0xf]
    %v2788 = vld [vmem:[#allocation9 + $0x5b8] sm:$0xff]
    %v2789 = vld [vmem:[#allocation9 + $0x5c0] sm:$0xf]
    %v2790 = vld [vmem:[#allocation9 + $0x5c4] sm:$0xff]
    %v2791 = vld [vmem:[#allocation9 + $0x5cc] sm:$0xf]
    %v2792 = vld [vmem:[#allocation9 + $0x5d0] sm:$0xff]
    %v2793 = vld [vmem:[#allocation9 + $0x5d8] sm:$0xf]
    %v2794 = vld [vmem:[#allocation9 + $0x5dc] sm:$0xff]
    %v2795 = vld [vmem:[#allocation9 + $0x5e4] sm:$0xf]
    %v2796 = vld [vmem:[#allocation9 + $0x5e8] sm:$0xff]
    %v2797 = vld [vmem:[#allocation9 + $0x5f0] sm:$0xf]
    %v2798 = vld [vmem:[#allocation9 + $0x5f4] sm:$0xff]
    %v2799 = vld [vmem:[#allocation9 + $0x5fc] sm:$0xf]
    %v2800 = vld [vmem:[#allocation9 + $0x600] sm:$0xff]
    %v2801 = vld [vmem:[#allocation9 + $0x608] sm:$0xf]
    %v2802 = vld [vmem:[#allocation9 + $0x60c] sm:$0xff]
    %v2803 = vld [vmem:[#allocation9 + $0x614] sm:$0xf]
    %v2804 = vld [vmem:[#allocation9 + $0x618] sm:$0xff]
    %v2805 = vld [vmem:[#allocation9 + $0x620] sm:$0xf]
    %v2806 = vld [vmem:[#allocation9 + $0x624] sm:$0xff]
    %v2807 = vld [vmem:[#allocation9 + $0x62c] sm:$0xf]
    %v2808 = vld [vmem:[#allocation9 + $0x630] sm:$0xff]
    %v2809 = vld [vmem:[#allocation9 + $0x638] sm:$0xf]
    %v2810 = vld [vmem:[#allocation9 + $0x63c] sm:$0xff]
    %v2811 = vld [vmem:[#allocation9 + $0x644] sm:$0xf]
    %v2812 = vld [vmem:[#allocation9 + $0x648] sm:$0xff]
    %v2813 = vld [vmem:[#allocation9 + $0x650] sm:$0xf]
    %v2814 = vld [vmem:[#allocation9 + $0x654] sm:$0xff]
    %v2815 = vld [vmem:[#allocation9 + $0x65c] sm:$0xf]
    %v2816 = vld [vmem:[#allocation9 + $0x660] sm:$0xff]
    %v2817 = vld [vmem:[#allocation9 + $0x668] sm:$0xf]
    %v2818 = vld [vmem:[#allocation9 + $0x66c] sm:$0xff]
    %v2819 = vld [vmem:[#allocation9 + $0x674] sm:$0xf]
    %v2820 = vld [vmem:[#allocation9 + $0x678] sm:$0xff]
    %v2821 = vld [vmem:[#allocation9 + $0x680] sm:$0xf]
    %v2822 = vld [vmem:[#allocation9 + $0x684] sm:$0xff]
    %v2823 = vld [vmem:[#allocation9 + $0x68c] sm:$0xf]
    %v2824 = vld [vmem:[#allocation9 + $0x690] sm:$0xff]
    %v2825 = vld [vmem:[#allocation9 + $0x698] sm:$0xf]
    %v2826 = vld [vmem:[#allocation9 + $0x69c] sm:$0xff]
    %v2827 = vld [vmem:[#allocation9 + $0x6a4] sm:$0xf]
    %v2828 = vld [vmem:[#allocation9 + $0x6a8] sm:$0xff]
    %v2829 = vld [vmem:[#allocation9 + $0x6b0] sm:$0xf]
    %v2830 = vld [vmem:[#allocation9 + $0x6b4] sm:$0xff]
    %v2831 = vld [vmem:[#allocation9 + $0x6bc] sm:$0xf]
    %v2832 = vld [vmem:[#allocation9 + $0x6c0] sm:$0xff]
    %v2833 = vld [vmem:[#allocation9 + $0x6c8] sm:$0xf]
    %v2834 = vld [vmem:[#allocation9 + $0x6cc] sm:$0xff]
    %v2835 = vld [vmem:[#allocation9 + $0x6d4] sm:$0xf]
    %v2836 = vld [vmem:[#allocation9 + $0x6d8] sm:$0xff]
    %v2837 = vld [vmem:[#allocation9 + $0x6e0] sm:$0xf]
    %v2838 = vld [vmem:[#allocation9 + $0x6e4] sm:$0xff]
    %v2839 = vld [vmem:[#allocation9 + $0x6ec] sm:$0xf]
    %v2840 = vld [vmem:[#allocation9 + $0x6f0] sm:$0xff]
    %v2841 = vld [vmem:[#allocation9 + $0x6f8] sm:$0xf]
    %v2842 = vld [vmem:[#allocation9 + $0x6fc] sm:$0xff]
    %v2843 = vld [vmem:[#allocation9 + $0x704] sm:$0xf]
    %v2844 = vld [vmem:[#allocation9 + $0x708] sm:$0xff]
    %v2845 = vld [vmem:[#allocation9 + $0x710] sm:$0xf]
    %v2846 = vld [vmem:[#allocation9 + $0x714] sm:$0xff]
    %v2847 = vld [vmem:[#allocation9 + $0x71c] sm:$0xf]
    %v2848 = vld [vmem:[#allocation9 + $0x720] sm:$0xff]
    %v2849 = vld [vmem:[#allocation9 + $0x728] sm:$0xf]
    %v2850 = vld [vmem:[#allocation9 + $0x72c] sm:$0xff]
    %v2851 = vld [vmem:[#allocation9 + $0x734] sm:$0xf]
    %v2852 = vld [vmem:[#allocation9 + $0x738] sm:$0xff]
    %v2853 = vld [vmem:[#allocation9 + $0x740] sm:$0xf]
    %v2854 = vld [vmem:[#allocation9 + $0x744] sm:$0xff]
    %v2855 = vld [vmem:[#allocation9 + $0x74c] sm:$0xf]
    %v2856 = vld [vmem:[#allocation9 + $0x750] sm:$0xff]
    %v2857 = vld [vmem:[#allocation9 + $0x758] sm:$0xf]
    %v2858 = vld [vmem:[#allocation9 + $0x75c] sm:$0xff]
    %v2859 = vld [vmem:[#allocation9 + $0x764] sm:$0xf]
    %v2860 = vld [vmem:[#allocation9 + $0x768] sm:$0xff]
    %v2861 = vld [vmem:[#allocation9 + $0x770] sm:$0xf]
    %v2862 = vld [vmem:[#allocation9 + $0x774] sm:$0xff]
    %v2863 = vld [vmem:[#allocation9 + $0x77c] sm:$0xf]
    %v2864 = vld [vmem:[#allocation9 + $0x780] sm:$0xff]
    %v2865 = vld [vmem:[#allocation9 + $0x788] sm:$0xf]
    %v2866 = vld [vmem:[#allocation9 + $0x78c] sm:$0xff]
    %v2867 = vld [vmem:[#allocation9 + $0x794] sm:$0xf]
    %v2868 = vld [vmem:[#allocation9 + $0x798] sm:$0xff]
    %v2869 = vld [vmem:[#allocation9 + $0x7a0] sm:$0xf]
    %v2870 = vld [vmem:[#allocation9 + $0x7a4] sm:$0xff]
    %v2871 = vld [vmem:[#allocation9 + $0x7ac] sm:$0xf]
    %v2872 = vld [vmem:[#allocation9 + $0x7b0] sm:$0xff]
    %v2873 = vld [vmem:[#allocation9 + $0x7b8] sm:$0xf]
    %v2874 = vld [vmem:[#allocation9 + $0x7bc] sm:$0xff]
    %v2875 = vld [vmem:[#allocation9 + $0x7c4] sm:$0xf]
    %v2876 = vld [vmem:[#allocation9 + $0x7c8] sm:$0xff]
    %v2877 = vld [vmem:[#allocation9 + $0x7d0] sm:$0xf]
    %v2878 = vld [vmem:[#allocation9 + $0x7d4] sm:$0xff]
    %v2879 = vld [vmem:[#allocation9 + $0x7dc] sm:$0xf]
    %v2880 = vld [vmem:[#allocation9 + $0x7e0] sm:$0xff]
    %v2881 = vld [vmem:[#allocation9 + $0x7e8] sm:$0xf]
    %v2882 = vld [vmem:[#allocation9 + $0x7ec] sm:$0xff]
    %v2883 = vld [vmem:[#allocation9 + $0x7f4] sm:$0xf]
    %v2884 = vld [vmem:[#allocation9 + $0x7f8] sm:$0xff]
    %v2885 = vld [vmem:[#allocation9 + $0x800] sm:$0xf]
    %v2886 = vld [vmem:[#allocation9 + $0x804] sm:$0xff]
    %v2887 = vld [vmem:[#allocation9 + $0x80c] sm:$0xf]
    %v2888 = vld [vmem:[#allocation9 + $0x810] sm:$0xff]
    %v2889 = vld [vmem:[#allocation9 + $0x818] sm:$0xf]
    %v2890 = vld [vmem:[#allocation9 + $0x81c] sm:$0xff]
    %v2891 = vld [vmem:[#allocation9 + $0x824] sm:$0xf]
    %v2892 = vld [vmem:[#allocation9 + $0x828] sm:$0xff]
    %v2893 = vld [vmem:[#allocation9 + $0x830] sm:$0xf]
    %v2894 = vld [vmem:[#allocation9 + $0x834] sm:$0xff]
    %v2895 = vld [vmem:[#allocation9 + $0x83c] sm:$0xf]
    %v2896 = vld [vmem:[#allocation9 + $0x840] sm:$0xff]
    %v2897 = vld [vmem:[#allocation9 + $0x848] sm:$0xf]
    %v2898 = vld [vmem:[#allocation9 + $0x84c] sm:$0xff]
    %v2899 = vld [vmem:[#allocation9 + $0x854] sm:$0xf]
    %v2900 = vld [vmem:[#allocation9 + $0x858] sm:$0xff]
    %v2901 = vld [vmem:[#allocation9 + $0x860] sm:$0xf]
    %v2902 = vld [vmem:[#allocation9 + $0x864] sm:$0xff]
    %v2903 = vld [vmem:[#allocation9 + $0x86c] sm:$0xf]
    %v2904 = vld [vmem:[#allocation9 + $0x870] sm:$0xff]
    %v2905 = vld [vmem:[#allocation9 + $0x878] sm:$0xf]
    %v2906 = vld [vmem:[#allocation9 + $0x87c] sm:$0xff]
    %v2907 = vld [vmem:[#allocation9 + $0x884] sm:$0xf]
    %v2908 = vld [vmem:[#allocation9 + $0x888] sm:$0xff]
    %v2909 = vld [vmem:[#allocation9 + $0x890] sm:$0xf]
    %v2910 = vld [vmem:[#allocation9 + $0x894] sm:$0xff]
    %v2911 = vld [vmem:[#allocation9 + $0x89c] sm:$0xf]
    %v2912 = vld [vmem:[#allocation9 + $0x8a0] sm:$0xff]
    %v2913 = vld [vmem:[#allocation9 + $0x8a8] sm:$0xf]
    %v2914 = vld [vmem:[#allocation9 + $0x8ac] sm:$0xff]
    %v2915 = vld [vmem:[#allocation9 + $0x8b4] sm:$0xf]
    %v2916 = vld [vmem:[#allocation9 + $0x8b8] sm:$0xff]
    %v2917 = vld [vmem:[#allocation9 + $0x8c0] sm:$0xf]
    %v2918 = vld [vmem:[#allocation9 + $0x8c4] sm:$0xff]
    %v2919 = vld [vmem:[#allocation9 + $0x8cc] sm:$0xf]
    %v2920 = vld [vmem:[#allocation9 + $0x8d0] sm:$0xff]
    %v2921 = vld [vmem:[#allocation9 + $0x8d8] sm:$0xf]
    %v2922 = vld [vmem:[#allocation9 + $0x8dc] sm:$0xff]
    %v2923 = vld [vmem:[#allocation9 + $0x8e4] sm:$0xf]
    %v2924 = vld [vmem:[#allocation9 + $0x8e8] sm:$0xff]
    %v2925 = vld [vmem:[#allocation9 + $0x8f0] sm:$0xf]
    %v2926 = vld [vmem:[#allocation9 + $0x8f4] sm:$0xff]
    %v2927 = vld [vmem:[#allocation9 + $0x8fc] sm:$0xf]
    %v3312 = vunpack.c.l.b16 %v2544
    %v3313 = vunpack.c.h.b16 %v2544
    %v3314 = vunpack.c.l.b16 %v2545
    %v3315 = vunpack.c.l.b16 %v2546
    %v3316 = vunpack.c.h.b16 %v2546
    %v3317 = vunpack.c.l.b16 %v2547
    %v3318 = vunpack.c.l.b16 %v2548
    %v3319 = vunpack.c.h.b16 %v2548
    %v3320 = vunpack.c.l.b16 %v2549
    %v3321 = vunpack.c.l.b16 %v2550
    %v3322 = vunpack.c.h.b16 %v2550
    %v3323 = vunpack.c.l.b16 %v2551
    %v3324 = vunpack.c.l.b16 %v2552
    %v3325 = vunpack.c.h.b16 %v2552
    %v3326 = vunpack.c.l.b16 %v2553
    %v3327 = vunpack.c.l.b16 %v2554
    %v3328 = vunpack.c.h.b16 %v2554
    %v3329 = vunpack.c.l.b16 %v2555
    %v3330 = vunpack.c.l.b16 %v2556
    %v3331 = vunpack.c.h.b16 %v2556
    %v3332 = vunpack.c.l.b16 %v2557
    %v3333 = vunpack.c.l.b16 %v2558
    %v3334 = vunpack.c.h.b16 %v2558
    %v3335 = vunpack.c.l.b16 %v2559
    %v3336 = vunpack.c.l.b16 %v2560
    %v3337 = vunpack.c.h.b16 %v2560
    %v3338 = vunpack.c.l.b16 %v2561
    %v3339 = vunpack.c.l.b16 %v2562
    %v3340 = vunpack.c.h.b16 %v2562
    %v3341 = vunpack.c.l.b16 %v2563
    %v3342 = vunpack.c.l.b16 %v2564
    %v3343 = vunpack.c.h.b16 %v2564
    %v3344 = vunpack.c.l.b16 %v2565
    %v3345 = vunpack.c.l.b16 %v2566
    %v3346 = vunpack.c.h.b16 %v2566
    %v3347 = vunpack.c.l.b16 %v2567
    %v3348 = vunpack.c.l.b16 %v2568
    %v3349 = vunpack.c.h.b16 %v2568
    %v3350 = vunpack.c.l.b16 %v2569
    %v3351 = vunpack.c.l.b16 %v2570
    %v3352 = vunpack.c.h.b16 %v2570
    %v3353 = vunpack.c.l.b16 %v2571
    %v3354 = vunpack.c.l.b16 %v2572
    %v3355 = vunpack.c.h.b16 %v2572
    %v3356 = vunpack.c.l.b16 %v2573
    %v3357 = vunpack.c.l.b16 %v2574
    %v3358 = vunpack.c.h.b16 %v2574
    %v3359 = vunpack.c.l.b16 %v2575
    %v3360 = vunpack.c.l.b16 %v2576
    %v3361 = vunpack.c.h.b16 %v2576
    %v3362 = vunpack.c.l.b16 %v2577
    %v3363 = vunpack.c.l.b16 %v2578
    %v3364 = vunpack.c.h.b16 %v2578
    %v3365 = vunpack.c.l.b16 %v2579
    %v3366 = vunpack.c.l.b16 %v2580
    %v3367 = vunpack.c.h.b16 %v2580
    %v3368 = vunpack.c.l.b16 %v2581
    %v3369 = vunpack.c.l.b16 %v2582
    %v3370 = vunpack.c.h.b16 %v2582
    %v3371 = vunpack.c.l.b16 %v2583
    %v3372 = vunpack.c.l.b16 %v2584
    %v3373 = vunpack.c.h.b16 %v2584
    %v3374 = vunpack.c.l.b16 %v2585
    %v3375 = vunpack.c.l.b16 %v2586
    %v3376 = vunpack.c.h.b16 %v2586
    %v3377 = vunpack.c.l.b16 %v2587
    %v3378 = vunpack.c.l.b16 %v2588
    %v3379 = vunpack.c.h.b16 %v2588
    %v3380 = vunpack.c.l.b16 %v2589
    %v3381 = vunpack.c.l.b16 %v2590
    %v3382 = vunpack.c.h.b16 %v2590
    %v3383 = vunpack.c.l.b16 %v2591
    %v3384 = vunpack.c.l.b16 %v2592
    %v3385 = vunpack.c.h.b16 %v2592
    %v3386 = vunpack.c.l.b16 %v2593
    %v3387 = vunpack.c.l.b16 %v2594
    %v3388 = vunpack.c.h.b16 %v2594
    %v3389 = vunpack.c.l.b16 %v2595
    %v3390 = vunpack.c.l.b16 %v2596
    %v3391 = vunpack.c.h.b16 %v2596
    %v3392 = vunpack.c.l.b16 %v2597
    %v3393 = vunpack.c.l.b16 %v2598
    %v3394 = vunpack.c.h.b16 %v2598
    %v3395 = vunpack.c.l.b16 %v2599
    %v3396 = vunpack.c.l.b16 %v2600
    %v3397 = vunpack.c.h.b16 %v2600
    %v3398 = vunpack.c.l.b16 %v2601
    %v3399 = vunpack.c.l.b16 %v2602
    %v3400 = vunpack.c.h.b16 %v2602
    %v3401 = vunpack.c.l.b16 %v2603
    %v3402 = vunpack.c.l.b16 %v2604
    %v3403 = vunpack.c.h.b16 %v2604
    %v3404 = vunpack.c.l.b16 %v2605
    %v3405 = vunpack.c.l.b16 %v2606
    %v3406 = vunpack.c.h.b16 %v2606
    %v3407 = vunpack.c.l.b16 %v2607
    %v3408 = vunpack.c.l.b16 %v2608
    %v3409 = vunpack.c.h.b16 %v2608
    %v3410 = vunpack.c.l.b16 %v2609
    %v3411 = vunpack.c.l.b16 %v2610
    %v3412 = vunpack.c.h.b16 %v2610
    %v3413 = vunpack.c.l.b16 %v2611
    %v3414 = vunpack.c.l.b16 %v2612
    %v3415 = vunpack.c.h.b16 %v2612
    %v3416 = vunpack.c.l.b16 %v2613
    %v3417 = vunpack.c.l.b16 %v2614
    %v3418 = vunpack.c.h.b16 %v2614
    %v3419 = vunpack.c.l.b16 %v2615
    %v3420 = vunpack.c.l.b16 %v2616
    %v3421 = vunpack.c.h.b16 %v2616
    %v3422 = vunpack.c.l.b16 %v2617
    %v3423 = vunpack.c.l.b16 %v2618
    %v3424 = vunpack.c.h.b16 %v2618
    %v3425 = vunpack.c.l.b16 %v2619
    %v3426 = vunpack.c.l.b16 %v2620
    %v3427 = vunpack.c.h.b16 %v2620
    %v3428 = vunpack.c.l.b16 %v2621
    %v3429 = vunpack.c.l.b16 %v2622
    %v3430 = vunpack.c.h.b16 %v2622
    %v3431 = vunpack.c.l.b16 %v2623
    %v3432 = vunpack.c.l.b16 %v2624
    %v3433 = vunpack.c.h.b16 %v2624
    %v3434 = vunpack.c.l.b16 %v2625
    %v3435 = vunpack.c.l.b16 %v2626
    %v3436 = vunpack.c.h.b16 %v2626
    %v3437 = vunpack.c.l.b16 %v2627
    %v3438 = vunpack.c.l.b16 %v2628
    %v3439 = vunpack.c.h.b16 %v2628
    %v3440 = vunpack.c.l.b16 %v2629
    %v3441 = vunpack.c.l.b16 %v2630
    %v3442 = vunpack.c.h.b16 %v2630
    %v3443 = vunpack.c.l.b16 %v2631
    %v3444 = vunpack.c.l.b16 %v2632
    %v3445 = vunpack.c.h.b16 %v2632
    %v3446 = vunpack.c.l.b16 %v2633
    %v3447 = vunpack.c.l.b16 %v2634
    %v3448 = vunpack.c.h.b16 %v2634
    %v3449 = vunpack.c.l.b16 %v2635
    %v3450 = vunpack.c.l.b16 %v2636
    %v3451 = vunpack.c.h.b16 %v2636
    %v3452 = vunpack.c.l.b16 %v2637
    %v3453 = vunpack.c.l.b16 %v2638
    %v3454 = vunpack.c.h.b16 %v2638
    %v3455 = vunpack.c.l.b16 %v2639
    %v3456 = vunpack.c.l.b16 %v2640
    %v3457 = vunpack.c.h.b16 %v2640
    %v3458 = vunpack.c.l.b16 %v2641
    %v3459 = vunpack.c.l.b16 %v2642
    %v3460 = vunpack.c.h.b16 %v2642
    %v3461 = vunpack.c.l.b16 %v2643
    %v3462 = vunpack.c.l.b16 %v2644
    %v3463 = vunpack.c.h.b16 %v2644
    %v3464 = vunpack.c.l.b16 %v2645
    %v3465 = vunpack.c.l.b16 %v2646
    %v3466 = vunpack.c.h.b16 %v2646
    %v3467 = vunpack.c.l.b16 %v2647
    %v3468 = vunpack.c.l.b16 %v2648
    %v3469 = vunpack.c.h.b16 %v2648
    %v3470 = vunpack.c.l.b16 %v2649
    %v3471 = vunpack.c.l.b16 %v2650
    %v3472 = vunpack.c.h.b16 %v2650
    %v3473 = vunpack.c.l.b16 %v2651
    %v3474 = vunpack.c.l.b16 %v2652
    %v3475 = vunpack.c.h.b16 %v2652
    %v3476 = vunpack.c.l.b16 %v2653
    %v3477 = vunpack.c.l.b16 %v2654
    %v3478 = vunpack.c.h.b16 %v2654
    %v3479 = vunpack.c.l.b16 %v2655
    %v3480 = vunpack.c.l.b16 %v2656
    %v3481 = vunpack.c.h.b16 %v2656
    %v3482 = vunpack.c.l.b16 %v2657
    %v3483 = vunpack.c.l.b16 %v2658
    %v3484 = vunpack.c.h.b16 %v2658
    %v3485 = vunpack.c.l.b16 %v2659
    %v3486 = vunpack.c.l.b16 %v2660
    %v3487 = vunpack.c.h.b16 %v2660
    %v3488 = vunpack.c.l.b16 %v2661
    %v3489 = vunpack.c.l.b16 %v2662
    %v3490 = vunpack.c.h.b16 %v2662
    %v3491 = vunpack.c.l.b16 %v2663
    %v3492 = vunpack.c.l.b16 %v2664
    %v3493 = vunpack.c.h.b16 %v2664
    %v3494 = vunpack.c.l.b16 %v2665
    %v3495 = vunpack.c.l.b16 %v2666
    %v3496 = vunpack.c.h.b16 %v2666
    %v3497 = vunpack.c.l.b16 %v2667
    %v3498 = vunpack.c.l.b16 %v2668
    %v3499 = vunpack.c.h.b16 %v2668
    %v3500 = vunpack.c.l.b16 %v2669
    %v3501 = vunpack.c.l.b16 %v2670
    %v3502 = vunpack.c.h.b16 %v2670
    %v3503 = vunpack.c.l.b16 %v2671
    %v3504 = vunpack.c.l.b16 %v2672
    %v3505 = vunpack.c.h.b16 %v2672
    %v3506 = vunpack.c.l.b16 %v2673
    %v3507 = vunpack.c.l.b16 %v2674
    %v3508 = vunpack.c.h.b16 %v2674
    %v3509 = vunpack.c.l.b16 %v2675
    %v3510 = vunpack.c.l.b16 %v2676
    %v3511 = vunpack.c.h.b16 %v2676
    %v3512 = vunpack.c.l.b16 %v2677
    %v3513 = vunpack.c.l.b16 %v2678
    %v3514 = vunpack.c.h.b16 %v2678
    %v3515 = vunpack.c.l.b16 %v2679
    %v3516 = vunpack.c.l.b16 %v2680
    %v3517 = vunpack.c.h.b16 %v2680
    %v3518 = vunpack.c.l.b16 %v2681
    %v3519 = vunpack.c.l.b16 %v2682
    %v3520 = vunpack.c.h.b16 %v2682
    %v3521 = vunpack.c.l.b16 %v2683
    %v3522 = vunpack.c.l.b16 %v2684
    %v3523 = vunpack.c.h.b16 %v2684
    %v3524 = vunpack.c.l.b16 %v2685
    %v3525 = vunpack.c.l.b16 %v2686
    %v3526 = vunpack.c.h.b16 %v2686
    %v3527 = vunpack.c.l.b16 %v2687
    %v3528 = vunpack.c.l.b16 %v2688
    %v3529 = vunpack.c.h.b16 %v2688
    %v3530 = vunpack.c.l.b16 %v2689
    %v3531 = vunpack.c.l.b16 %v2690
    %v3532 = vunpack.c.h.b16 %v2690
    %v3533 = vunpack.c.l.b16 %v2691
    %v3534 = vunpack.c.l.b16 %v2692
    %v3535 = vunpack.c.h.b16 %v2692
    %v3536 = vunpack.c.l.b16 %v2693
    %v3537 = vunpack.c.l.b16 %v2694
    %v3538 = vunpack.c.h.b16 %v2694
    %v3539 = vunpack.c.l.b16 %v2695
    %v3540 = vunpack.c.l.b16 %v2696
    %v3541 = vunpack.c.h.b16 %v2696
    %v3542 = vunpack.c.l.b16 %v2697
    %v3543 = vunpack.c.l.b16 %v2698
    %v3544 = vunpack.c.h.b16 %v2698
    %v3545 = vunpack.c.l.b16 %v2699
    %v3546 = vunpack.c.l.b16 %v2700
    %v3547 = vunpack.c.h.b16 %v2700
    %v3548 = vunpack.c.l.b16 %v2701
    %v3549 = vunpack.c.l.b16 %v2702
    %v3550 = vunpack.c.h.b16 %v2702
    %v3551 = vunpack.c.l.b16 %v2703
    %v3552 = vunpack.c.l.b16 %v2704
    %v3553 = vunpack.c.h.b16 %v2704
    %v3554 = vunpack.c.l.b16 %v2705
    %v3555 = vunpack.c.l.b16 %v2706
    %v3556 = vunpack.c.h.b16 %v2706
    %v3557 = vunpack.c.l.b16 %v2707
    %v3558 = vunpack.c.l.b16 %v2708
    %v3559 = vunpack.c.h.b16 %v2708
    %v3560 = vunpack.c.l.b16 %v2709
    %v3561 = vunpack.c.l.b16 %v2710
    %v3562 = vunpack.c.h.b16 %v2710
    %v3563 = vunpack.c.l.b16 %v2711
    %v3564 = vunpack.c.l.b16 %v2712
    %v3565 = vunpack.c.h.b16 %v2712
    %v3566 = vunpack.c.l.b16 %v2713
    %v3567 = vunpack.c.l.b16 %v2714
    %v3568 = vunpack.c.h.b16 %v2714
    %v3569 = vunpack.c.l.b16 %v2715
    %v3570 = vunpack.c.l.b16 %v2716
    %v3571 = vunpack.c.h.b16 %v2716
    %v3572 = vunpack.c.l.b16 %v2717
    %v3573 = vunpack.c.l.b16 %v2718
    %v3574 = vunpack.c.h.b16 %v2718
    %v3575 = vunpack.c.l.b16 %v2719
    %v3576 = vunpack.c.l.b16 %v2720
    %v3577 = vunpack.c.h.b16 %v2720
    %v3578 = vunpack.c.l.b16 %v2721
    %v3579 = vunpack.c.l.b16 %v2722
    %v3580 = vunpack.c.h.b16 %v2722
    %v3581 = vunpack.c.l.b16 %v2723
    %v3582 = vunpack.c.l.b16 %v2724
    %v3583 = vunpack.c.h.b16 %v2724
    %v3584 = vunpack.c.l.b16 %v2725
    %v3585 = vunpack.c.l.b16 %v2726
    %v3586 = vunpack.c.h.b16 %v2726
    %v3587 = vunpack.c.l.b16 %v2727
    %v3588 = vunpack.c.l.b16 %v2728
    %v3589 = vunpack.c.h.b16 %v2728
    %v3590 = vunpack.c.l.b16 %v2729
    %v3591 = vunpack.c.l.b16 %v2730
    %v3592 = vunpack.c.h.b16 %v2730
    %v3593 = vunpack.c.l.b16 %v2731
    %v3594 = vunpack.c.l.b16 %v2732
    %v3595 = vunpack.c.h.b16 %v2732
    %v3596 = vunpack.c.l.b16 %v2733
    %v3597 = vunpack.c.l.b16 %v2734
    %v3598 = vunpack.c.h.b16 %v2734
    %v3599 = vunpack.c.l.b16 %v2735
    %v3600 = vunpack.c.l.b16 %v2736
    %v3601 = vunpack.c.h.b16 %v2736
    %v3602 = vunpack.c.l.b16 %v2737
    %v3603 = vunpack.c.l.b16 %v2738
    %v3604 = vunpack.c.h.b16 %v2738
    %v3605 = vunpack.c.l.b16 %v2739
    %v3606 = vunpack.c.l.b16 %v2740
    %v3607 = vunpack.c.h.b16 %v2740
    %v3608 = vunpack.c.l.b16 %v2741
    %v3609 = vunpack.c.l.b16 %v2742
    %v3610 = vunpack.c.h.b16 %v2742
    %v3611 = vunpack.c.l.b16 %v2743
    %v3612 = vunpack.c.l.b16 %v2744
    %v3613 = vunpack.c.h.b16 %v2744
    %v3614 = vunpack.c.l.b16 %v2745
    %v3615 = vunpack.c.l.b16 %v2746
    %v3616 = vunpack.c.h.b16 %v2746
    %v3617 = vunpack.c.l.b16 %v2747
    %v3618 = vunpack.c.l.b16 %v2748
    %v3619 = vunpack.c.h.b16 %v2748
    %v3620 = vunpack.c.l.b16 %v2749
    %v3621 = vunpack.c.l.b16 %v2750
    %v3622 = vunpack.c.h.b16 %v2750
    %v3623 = vunpack.c.l.b16 %v2751
    %v3624 = vunpack.c.l.b16 %v2752
    %v3625 = vunpack.c.h.b16 %v2752
    %v3626 = vunpack.c.l.b16 %v2753
    %v3627 = vunpack.c.l.b16 %v2754
    %v3628 = vunpack.c.h.b16 %v2754
    %v3629 = vunpack.c.l.b16 %v2755
    %v3630 = vunpack.c.l.b16 %v2756
    %v3631 = vunpack.c.h.b16 %v2756
    %v3632 = vunpack.c.l.b16 %v2757
    %v3633 = vunpack.c.l.b16 %v2758
    %v3634 = vunpack.c.h.b16 %v2758
    %v3635 = vunpack.c.l.b16 %v2759
    %v3636 = vunpack.c.l.b16 %v2760
    %v3637 = vunpack.c.h.b16 %v2760
    %v3638 = vunpack.c.l.b16 %v2761
    %v3639 = vunpack.c.l.b16 %v2762
    %v3640 = vunpack.c.h.b16 %v2762
    %v3641 = vunpack.c.l.b16 %v2763
    %v3642 = vunpack.c.l.b16 %v2764
    %v3643 = vunpack.c.h.b16 %v2764
    %v3644 = vunpack.c.l.b16 %v2765
    %v3645 = vunpack.c.l.b16 %v2766
    %v3646 = vunpack.c.h.b16 %v2766
    %v3647 = vunpack.c.l.b16 %v2767
    %v3648 = vunpack.c.l.b16 %v2768
    %v3649 = vunpack.c.h.b16 %v2768
    %v3650 = vunpack.c.l.b16 %v2769
    %v3651 = vunpack.c.l.b16 %v2770
    %v3652 = vunpack.c.h.b16 %v2770
    %v3653 = vunpack.c.l.b16 %v2771
    %v3654 = vunpack.c.l.b16 %v2772
    %v3655 = vunpack.c.h.b16 %v2772
    %v3656 = vunpack.c.l.b16 %v2773
    %v3657 = vunpack.c.l.b16 %v2774
    %v3658 = vunpack.c.h.b16 %v2774
    %v3659 = vunpack.c.l.b16 %v2775
    %v3660 = vunpack.c.l.b16 %v2776
    %v3661 = vunpack.c.h.b16 %v2776
    %v3662 = vunpack.c.l.b16 %v2777
    %v3663 = vunpack.c.l.b16 %v2778
    %v3664 = vunpack.c.h.b16 %v2778
    %v3665 = vunpack.c.l.b16 %v2779
    %v3666 = vunpack.c.l.b16 %v2780
    %v3667 = vunpack.c.h.b16 %v2780
    %v3668 = vunpack.c.l.b16 %v2781
    %v3669 = vunpack.c.l.b16 %v2782
    %v3670 = vunpack.c.h.b16 %v2782
    %v3671 = vunpack.c.l.b16 %v2783
    %v3672 = vunpack.c.l.b16 %v2784
    %v3673 = vunpack.c.h.b16 %v2784
    %v3674 = vunpack.c.l.b16 %v2785
    %v3675 = vunpack.c.l.b16 %v2786
    %v3676 = vunpack.c.h.b16 %v2786
    %v3677 = vunpack.c.l.b16 %v2787
    %v3678 = vunpack.c.l.b16 %v2788
    %v3679 = vunpack.c.h.b16 %v2788
    %v3680 = vunpack.c.l.b16 %v2789
    %v3681 = vunpack.c.l.b16 %v2790
    %v3682 = vunpack.c.h.b16 %v2790
    %v3683 = vunpack.c.l.b16 %v2791
    %v3684 = vunpack.c.l.b16 %v2792
    %v3685 = vunpack.c.h.b16 %v2792
    %v3686 = vunpack.c.l.b16 %v2793
    %v3687 = vunpack.c.l.b16 %v2794
    %v3688 = vunpack.c.h.b16 %v2794
    %v3689 = vunpack.c.l.b16 %v2795
    %v3690 = vunpack.c.l.b16 %v2796
    %v3691 = vunpack.c.h.b16 %v2796
    %v3692 = vunpack.c.l.b16 %v2797
    %v3693 = vunpack.c.l.b16 %v2798
    %v3694 = vunpack.c.h.b16 %v2798
    %v3695 = vunpack.c.l.b16 %v2799
    %v3696 = vunpack.c.l.b16 %v2800
    %v3697 = vunpack.c.h.b16 %v2800
    %v3698 = vunpack.c.l.b16 %v2801
    %v3699 = vunpack.c.l.b16 %v2802
    %v3700 = vunpack.c.h.b16 %v2802
    %v3701 = vunpack.c.l.b16 %v2803
    %v3702 = vunpack.c.l.b16 %v2804
    %v3703 = vunpack.c.h.b16 %v2804
    %v3704 = vunpack.c.l.b16 %v2805
    %v3705 = vunpack.c.l.b16 %v2806
    %v3706 = vunpack.c.h.b16 %v2806
    %v3707 = vunpack.c.l.b16 %v2807
    %v3708 = vunpack.c.l.b16 %v2808
    %v3709 = vunpack.c.h.b16 %v2808
    %v3710 = vunpack.c.l.b16 %v2809
    %v3711 = vunpack.c.l.b16 %v2810
    %v3712 = vunpack.c.h.b16 %v2810
    %v3713 = vunpack.c.l.b16 %v2811
    %v3714 = vunpack.c.l.b16 %v2812
    %v3715 = vunpack.c.h.b16 %v2812
    %v3716 = vunpack.c.l.b16 %v2813
    %v3717 = vunpack.c.l.b16 %v2814
    %v3718 = vunpack.c.h.b16 %v2814
    %v3719 = vunpack.c.l.b16 %v2815
    %v3720 = vunpack.c.l.b16 %v2816
    %v3721 = vunpack.c.h.b16 %v2816
    %v3722 = vunpack.c.l.b16 %v2817
    %v3723 = vunpack.c.l.b16 %v2818
    %v3724 = vunpack.c.h.b16 %v2818
    %v3725 = vunpack.c.l.b16 %v2819
    %v3726 = vunpack.c.l.b16 %v2820
    %v3727 = vunpack.c.h.b16 %v2820
    %v3728 = vunpack.c.l.b16 %v2821
    %v3729 = vunpack.c.l.b16 %v2822
    %v3730 = vunpack.c.h.b16 %v2822
    %v3731 = vunpack.c.l.b16 %v2823
    %v3732 = vunpack.c.l.b16 %v2824
    %v3733 = vunpack.c.h.b16 %v2824
    %v3734 = vunpack.c.l.b16 %v2825
    %v3735 = vunpack.c.l.b16 %v2826
    %v3736 = vunpack.c.h.b16 %v2826
    %v3737 = vunpack.c.l.b16 %v2827
    %v3738 = vunpack.c.l.b16 %v2828
    %v3739 = vunpack.c.h.b16 %v2828
    %v3740 = vunpack.c.l.b16 %v2829
    %v3741 = vunpack.c.l.b16 %v2830
    %v3742 = vunpack.c.h.b16 %v2830
    %v3743 = vunpack.c.l.b16 %v2831
    %v3744 = vunpack.c.l.b16 %v2832
    %v3745 = vunpack.c.h.b16 %v2832
    %v3746 = vunpack.c.l.b16 %v2833
    %v3747 = vunpack.c.l.b16 %v2834
    %v3748 = vunpack.c.h.b16 %v2834
    %v3749 = vunpack.c.l.b16 %v2835
    %v3750 = vunpack.c.l.b16 %v2836
    %v3751 = vunpack.c.h.b16 %v2836
    %v3752 = vunpack.c.l.b16 %v2837
    %v3753 = vunpack.c.l.b16 %v2838
    %v3754 = vunpack.c.h.b16 %v2838
    %v3755 = vunpack.c.l.b16 %v2839
    %v3756 = vunpack.c.l.b16 %v2840
    %v3757 = vunpack.c.h.b16 %v2840
    %v3758 = vunpack.c.l.b16 %v2841
    %v3759 = vunpack.c.l.b16 %v2842
    %v3760 = vunpack.c.h.b16 %v2842
    %v3761 = vunpack.c.l.b16 %v2843
    %v3762 = vunpack.c.l.b16 %v2844
    %v3763 = vunpack.c.h.b16 %v2844
    %v3764 = vunpack.c.l.b16 %v2845
    %v3765 = vunpack.c.l.b16 %v2846
    %v3766 = vunpack.c.h.b16 %v2846
    %v3767 = vunpack.c.l.b16 %v2847
    %v3768 = vunpack.c.l.b16 %v2848
    %v3769 = vunpack.c.h.b16 %v2848
    %v3770 = vunpack.c.l.b16 %v2849
    %v3771 = vunpack.c.l.b16 %v2850
    %v3772 = vunpack.c.h.b16 %v2850
    %v3773 = vunpack.c.l.b16 %v2851
    %v3774 = vunpack.c.l.b16 %v2852
    %v3775 = vunpack.c.h.b16 %v2852
    %v3776 = vunpack.c.l.b16 %v2853
    %v3777 = vunpack.c.l.b16 %v2854
    %v3778 = vunpack.c.h.b16 %v2854
    %v3779 = vunpack.c.l.b16 %v2855
    %v3780 = vunpack.c.l.b16 %v2856
    %v3781 = vunpack.c.h.b16 %v2856
    %v3782 = vunpack.c.l.b16 %v2857
    %v3783 = vunpack.c.l.b16 %v2858
    %v3784 = vunpack.c.h.b16 %v2858
    %v3785 = vunpack.c.l.b16 %v2859
    %v3786 = vunpack.c.l.b16 %v2860
    %v3787 = vunpack.c.h.b16 %v2860
    %v3788 = vunpack.c.l.b16 %v2861
    %v3789 = vunpack.c.l.b16 %v2862
    %v3790 = vunpack.c.h.b16 %v2862
    %v3791 = vunpack.c.l.b16 %v2863
    %v3792 = vunpack.c.l.b16 %v2864
    %v3793 = vunpack.c.h.b16 %v2864
    %v3794 = vunpack.c.l.b16 %v2865
    %v3795 = vunpack.c.l.b16 %v2866
    %v3796 = vunpack.c.h.b16 %v2866
    %v3797 = vunpack.c.l.b16 %v2867
    %v3798 = vunpack.c.l.b16 %v2868
    %v3799 = vunpack.c.h.b16 %v2868
    %v3800 = vunpack.c.l.b16 %v2869
    %v3801 = vunpack.c.l.b16 %v2870
    %v3802 = vunpack.c.h.b16 %v2870
    %v3803 = vunpack.c.l.b16 %v2871
    %v3804 = vunpack.c.l.b16 %v2872
    %v3805 = vunpack.c.h.b16 %v2872
    %v3806 = vunpack.c.l.b16 %v2873
    %v3807 = vunpack.c.l.b16 %v2874
    %v3808 = vunpack.c.h.b16 %v2874
    %v3809 = vunpack.c.l.b16 %v2875
    %v3810 = vunpack.c.l.b16 %v2876
    %v3811 = vunpack.c.h.b16 %v2876
    %v3812 = vunpack.c.l.b16 %v2877
    %v3813 = vunpack.c.l.b16 %v2878
    %v3814 = vunpack.c.h.b16 %v2878
    %v3815 = vunpack.c.l.b16 %v2879
    %v3816 = vunpack.c.l.b16 %v2880
    %v3817 = vunpack.c.h.b16 %v2880
    %v3818 = vunpack.c.l.b16 %v2881
    %v3819 = vunpack.c.l.b16 %v2882
    %v3820 = vunpack.c.h.b16 %v2882
    %v3821 = vunpack.c.l.b16 %v2883
    %v3822 = vunpack.c.l.b16 %v2884
    %v3823 = vunpack.c.h.b16 %v2884
    %v3824 = vunpack.c.l.b16 %v2885
    %v3825 = vunpack.c.l.b16 %v2886
    %v3826 = vunpack.c.h.b16 %v2886
    %v3827 = vunpack.c.l.b16 %v2887
    %v3828 = vunpack.c.l.b16 %v2888
    %v3829 = vunpack.c.h.b16 %v2888
    %v3830 = vunpack.c.l.b16 %v2889
    %v3831 = vunpack.c.l.b16 %v2890
    %v3832 = vunpack.c.h.b16 %v2890
    %v3833 = vunpack.c.l.b16 %v2891
    %v3834 = vunpack.c.l.b16 %v2892
    %v3835 = vunpack.c.h.b16 %v2892
    %v3836 = vunpack.c.l.b16 %v2893
    %v3837 = vunpack.c.l.b16 %v2894
    %v3838 = vunpack.c.h.b16 %v2894
    %v3839 = vunpack.c.l.b16 %v2895
    %v3840 = vunpack.c.l.b16 %v2896
    %v3841 = vunpack.c.h.b16 %v2896
    %v3842 = vunpack.c.l.b16 %v2897
    %v3843 = vunpack.c.l.b16 %v2898
    %v3844 = vunpack.c.h.b16 %v2898
    %v3845 = vunpack.c.l.b16 %v2899
    %v3846 = vunpack.c.l.b16 %v2900
    %v3847 = vunpack.c.h.b16 %v2900
    %v3848 = vunpack.c.l.b16 %v2901
    %v3849 = vunpack.c.l.b16 %v2902
    %v3850 = vunpack.c.h.b16 %v2902
    %v3851 = vunpack.c.l.b16 %v2903
    %v3852 = vunpack.c.l.b16 %v2904
    %v3853 = vunpack.c.h.b16 %v2904
    %v3854 = vunpack.c.l.b16 %v2905
    %v3855 = vunpack.c.l.b16 %v2906
    %v3856 = vunpack.c.h.b16 %v2906
    %v3857 = vunpack.c.l.b16 %v2907
    %v3858 = vunpack.c.l.b16 %v2908
    %v3859 = vunpack.c.h.b16 %v2908
    %v3860 = vunpack.c.l.b16 %v2909
    %v3861 = vunpack.c.l.b16 %v2910
    %v3862 = vunpack.c.h.b16 %v2910
    %v3863 = vunpack.c.l.b16 %v2911
    %v3864 = vunpack.c.l.b16 %v2912
    %v3865 = vunpack.c.h.b16 %v2912
    %v3866 = vunpack.c.l.b16 %v2913
    %v3867 = vunpack.c.l.b16 %v2914
    %v3868 = vunpack.c.h.b16 %v2914
    %v3869 = vunpack.c.l.b16 %v2915
    %v3870 = vunpack.c.l.b16 %v2916
    %v3871 = vunpack.c.h.b16 %v2916
    %v3872 = vunpack.c.l.b16 %v2917
    %v3873 = vunpack.c.l.b16 %v2918
    %v3874 = vunpack.c.h.b16 %v2918
    %v3875 = vunpack.c.l.b16 %v2919
    %v3876 = vunpack.c.l.b16 %v2920
    %v3877 = vunpack.c.h.b16 %v2920
    %v3878 = vunpack.c.l.b16 %v2921
    %v3879 = vunpack.c.l.b16 %v2922
    %v3880 = vunpack.c.h.b16 %v2922
    %v3881 = vunpack.c.l.b16 %v2923
    %v3882 = vunpack.c.l.b16 %v2924
    %v3883 = vunpack.c.h.b16 %v2924
    %v3884 = vunpack.c.l.b16 %v2925
    %v3885 = vunpack.c.l.b16 %v2926
    %v3886 = vunpack.c.h.b16 %v2926
    %v3887 = vunpack.c.l.b16 %v2927
    %v3888 = vpack.c.b16 %v3315, %v3312
    %v3889 = vpack.c.b16 %v3316, %v3313
    %v3890 = vpack.c.b16 %v3317, %v3314
    %v3891 = vpack.c.b16 %v3321, %v3318
    %v3892 = vpack.c.b16 %v3322, %v3319
    %v3893 = vpack.c.b16 %v3323, %v3320
    %v3894 = vpack.c.b16 %v3327, %v3324
    %v3895 = vpack.c.b16 %v3328, %v3325
    %v3896 = vpack.c.b16 %v3329, %v3326
    %v3897 = vpack.c.b16 %v3333, %v3330
    %v3898 = vpack.c.b16 %v3334, %v3331
    %v3899 = vpack.c.b16 %v3335, %v3332
    %v3900 = vpack.c.b16 %v3339, %v3336
    %v3901 = vpack.c.b16 %v3340, %v3337
    %v3902 = vpack.c.b16 %v3341, %v3338
    %v3903 = vpack.c.b16 %v3345, %v3342
    %v3904 = vpack.c.b16 %v3346, %v3343
    %v3905 = vpack.c.b16 %v3347, %v3344
    %v3906 = vpack.c.b16 %v3351, %v3348
    %v3907 = vpack.c.b16 %v3352, %v3349
    %v3908 = vpack.c.b16 %v3353, %v3350
    %v3909 = vpack.c.b16 %v3357, %v3354
    %v3910 = vpack.c.b16 %v3358, %v3355
    %v3911 = vpack.c.b16 %v3359, %v3356
    %v3912 = vpack.c.b16 %v3363, %v3360
    %v3913 = vpack.c.b16 %v3364, %v3361
    %v3914 = vpack.c.b16 %v3365, %v3362
    %v3915 = vpack.c.b16 %v3369, %v3366
    %v3916 = vpack.c.b16 %v3370, %v3367
    %v3917 = vpack.c.b16 %v3371, %v3368
    %v3918 = vpack.c.b16 %v3375, %v3372
    %v3919 = vpack.c.b16 %v3376, %v3373
    %v3920 = vpack.c.b16 %v3377, %v3374
    %v3921 = vpack.c.b16 %v3381, %v3378
    %v3922 = vpack.c.b16 %v3382, %v3379
    %v3923 = vpack.c.b16 %v3383, %v3380
    %v3924 = vpack.c.b16 %v3387, %v3384
    %v3925 = vpack.c.b16 %v3388, %v3385
    %v3926 = vpack.c.b16 %v3389, %v3386
    %v3927 = vpack.c.b16 %v3393, %v3390
    %v3928 = vpack.c.b16 %v3394, %v3391
    %v3929 = vpack.c.b16 %v3395, %v3392
    %v3930 = vpack.c.b16 %v3399, %v3396
    %v3931 = vpack.c.b16 %v3400, %v3397
    %v3932 = vpack.c.b16 %v3401, %v3398
    %v3933 = vpack.c.b16 %v3405, %v3402
    %v3934 = vpack.c.b16 %v3406, %v3403
    %v3935 = vpack.c.b16 %v3407, %v3404
    %v3936 = vpack.c.b16 %v3411, %v3408
    %v3937 = vpack.c.b16 %v3412, %v3409
    %v3938 = vpack.c.b16 %v3413, %v3410
    %v3939 = vpack.c.b16 %v3417, %v3414
    %v3940 = vpack.c.b16 %v3418, %v3415
    %v3941 = vpack.c.b16 %v3419, %v3416
    %v3942 = vpack.c.b16 %v3423, %v3420
    %v3943 = vpack.c.b16 %v3424, %v3421
    %v3944 = vpack.c.b16 %v3425, %v3422
    %v3945 = vpack.c.b16 %v3429, %v3426
    %v3946 = vpack.c.b16 %v3430, %v3427
    %v3947 = vpack.c.b16 %v3431, %v3428
    %v3948 = vpack.c.b16 %v3435, %v3432
    %v3949 = vpack.c.b16 %v3436, %v3433
    %v3950 = vpack.c.b16 %v3437, %v3434
    %v3951 = vpack.c.b16 %v3441, %v3438
    %v3952 = vpack.c.b16 %v3442, %v3439
    %v3953 = vpack.c.b16 %v3443, %v3440
    %v3954 = vpack.c.b16 %v3447, %v3444
    %v3955 = vpack.c.b16 %v3448, %v3445
    %v3956 = vpack.c.b16 %v3449, %v3446
    %v3957 = vpack.c.b16 %v3453, %v3450
    %v3958 = vpack.c.b16 %v3454, %v3451
    %v3959 = vpack.c.b16 %v3455, %v3452
    %v3960 = vpack.c.b16 %v3459, %v3456
    %v3961 = vpack.c.b16 %v3460, %v3457
    %v3962 = vpack.c.b16 %v3461, %v3458
    %v3963 = vpack.c.b16 %v3465, %v3462
    %v3964 = vpack.c.b16 %v3466, %v3463
    %v3965 = vpack.c.b16 %v3467, %v3464
    %v3966 = vpack.c.b16 %v3471, %v3468
    %v3967 = vpack.c.b16 %v3472, %v3469
    %v3968 = vpack.c.b16 %v3473, %v3470
    %v3969 = vpack.c.b16 %v3477, %v3474
    %v3970 = vpack.c.b16 %v3478, %v3475
    %v3971 = vpack.c.b16 %v3479, %v3476
    %v3972 = vpack.c.b16 %v3483, %v3480
    %v3973 = vpack.c.b16 %v3484, %v3481
    %v3974 = vpack.c.b16 %v3485, %v3482
    %v3975 = vpack.c.b16 %v3489, %v3486
    %v3976 = vpack.c.b16 %v3490, %v3487
    %v3977 = vpack.c.b16 %v3491, %v3488
    %v3978 = vpack.c.b16 %v3495, %v3492
    %v3979 = vpack.c.b16 %v3496, %v3493
    %v3980 = vpack.c.b16 %v3497, %v3494
    %v3981 = vpack.c.b16 %v3501, %v3498
    %v3982 = vpack.c.b16 %v3502, %v3499
    %v3983 = vpack.c.b16 %v3503, %v3500
    %v3984 = vpack.c.b16 %v3507, %v3504
    %v3985 = vpack.c.b16 %v3508, %v3505
    %v3986 = vpack.c.b16 %v3509, %v3506
    %v3987 = vpack.c.b16 %v3513, %v3510
    %v3988 = vpack.c.b16 %v3514, %v3511
    %v3989 = vpack.c.b16 %v3515, %v3512
    %v3990 = vpack.c.b16 %v3519, %v3516
    %v3991 = vpack.c.b16 %v3520, %v3517
    %v3992 = vpack.c.b16 %v3521, %v3518
    %v3993 = vpack.c.b16 %v3525, %v3522
    %v3994 = vpack.c.b16 %v3526, %v3523
    %v3995 = vpack.c.b16 %v3527, %v3524
    %v3996 = vpack.c.b16 %v3531, %v3528
    %v3997 = vpack.c.b16 %v3532, %v3529
    %v3998 = vpack.c.b16 %v3533, %v3530
    %v3999 = vpack.c.b16 %v3537, %v3534
    %v4000 = vpack.c.b16 %v3538, %v3535
    %v4001 = vpack.c.b16 %v3539, %v3536
    %v4002 = vpack.c.b16 %v3543, %v3540
    %v4003 = vpack.c.b16 %v3544, %v3541
    %v4004 = vpack.c.b16 %v3545, %v3542
    %v4005 = vpack.c.b16 %v3549, %v3546
    %v4006 = vpack.c.b16 %v3550, %v3547
    %v4007 = vpack.c.b16 %v3551, %v3548
    %v4008 = vpack.c.b16 %v3555, %v3552
    %v4009 = vpack.c.b16 %v3556, %v3553
    %v4010 = vpack.c.b16 %v3557, %v3554
    %v4011 = vpack.c.b16 %v3561, %v3558
    %v4012 = vpack.c.b16 %v3562, %v3559
    %v4013 = vpack.c.b16 %v3563, %v3560
    %v4014 = vpack.c.b16 %v3567, %v3564
    %v4015 = vpack.c.b16 %v3568, %v3565
    %v4016 = vpack.c.b16 %v3569, %v3566
    %v4017 = vpack.c.b16 %v3573, %v3570
    %v4018 = vpack.c.b16 %v3574, %v3571
    %v4019 = vpack.c.b16 %v3575, %v3572
    %v4020 = vpack.c.b16 %v3579, %v3576
    %v4021 = vpack.c.b16 %v3580, %v3577
    %v4022 = vpack.c.b16 %v3581, %v3578
    %v4023 = vpack.c.b16 %v3585, %v3582
    %v4024 = vpack.c.b16 %v3586, %v3583
    %v4025 = vpack.c.b16 %v3587, %v3584
    %v4026 = vpack.c.b16 %v3591, %v3588
    %v4027 = vpack.c.b16 %v3592, %v3589
    %v4028 = vpack.c.b16 %v3593, %v3590
    %v4029 = vpack.c.b16 %v3597, %v3594
    %v4030 = vpack.c.b16 %v3598, %v3595
    %v4031 = vpack.c.b16 %v3599, %v3596
    %v4032 = vpack.c.b16 %v3603, %v3600
    %v4033 = vpack.c.b16 %v3604, %v3601
    %v4034 = vpack.c.b16 %v3605, %v3602
    %v4035 = vpack.c.b16 %v3609, %v3606
    %v4036 = vpack.c.b16 %v3610, %v3607
    %v4037 = vpack.c.b16 %v3611, %v3608
    %v4038 = vpack.c.b16 %v3615, %v3612
    %v4039 = vpack.c.b16 %v3616, %v3613
    %v4040 = vpack.c.b16 %v3617, %v3614
    %v4041 = vpack.c.b16 %v3621, %v3618
    %v4042 = vpack.c.b16 %v3622, %v3619
    %v4043 = vpack.c.b16 %v3623, %v3620
    %v4044 = vpack.c.b16 %v3627, %v3624
    %v4045 = vpack.c.b16 %v3628, %v3625
    %v4046 = vpack.c.b16 %v3629, %v3626
    %v4047 = vpack.c.b16 %v3633, %v3630
    %v4048 = vpack.c.b16 %v3634, %v3631
    %v4049 = vpack.c.b16 %v3635, %v3632
    %v4050 = vpack.c.b16 %v3639, %v3636
    %v4051 = vpack.c.b16 %v3640, %v3637
    %v4052 = vpack.c.b16 %v3641, %v3638
    %v4053 = vpack.c.b16 %v3645, %v3642
    %v4054 = vpack.c.b16 %v3646, %v3643
    %v4055 = vpack.c.b16 %v3647, %v3644
    %v4056 = vpack.c.b16 %v3651, %v3648
    %v4057 = vpack.c.b16 %v3652, %v3649
    %v4058 = vpack.c.b16 %v3653, %v3650
    %v4059 = vpack.c.b16 %v3657, %v3654
    %v4060 = vpack.c.b16 %v3658, %v3655
    %v4061 = vpack.c.b16 %v3659, %v3656
    %v4062 = vpack.c.b16 %v3663, %v3660
    %v4063 = vpack.c.b16 %v3664, %v3661
    %v4064 = vpack.c.b16 %v3665, %v3662
    %v4065 = vpack.c.b16 %v3669, %v3666
    %v4066 = vpack.c.b16 %v3670, %v3667
    %v4067 = vpack.c.b16 %v3671, %v3668
    %v4068 = vpack.c.b16 %v3675, %v3672
    %v4069 = vpack.c.b16 %v3676, %v3673
    %v4070 = vpack.c.b16 %v3677, %v3674
    %v4071 = vpack.c.b16 %v3681, %v3678
    %v4072 = vpack.c.b16 %v3682, %v3679
    %v4073 = vpack.c.b16 %v3683, %v3680
    %v4074 = vpack.c.b16 %v3687, %v3684
    %v4075 = vpack.c.b16 %v3688, %v3685
    %v4076 = vpack.c.b16 %v3689, %v3686
    %v4077 = vpack.c.b16 %v3693, %v3690
    %v4078 = vpack.c.b16 %v3694, %v3691
    %v4079 = vpack.c.b16 %v3695, %v3692
    %v4080 = vpack.c.b16 %v3699, %v3696
    %v4081 = vpack.c.b16 %v3700, %v3697
    %v4082 = vpack.c.b16 %v3701, %v3698
    %v4083 = vpack.c.b16 %v3705, %v3702
    %v4084 = vpack.c.b16 %v3706, %v3703
    %v4085 = vpack.c.b16 %v3707, %v3704
    %v4086 = vpack.c.b16 %v3711, %v3708
    %v4087 = vpack.c.b16 %v3712, %v3709
    %v4088 = vpack.c.b16 %v3713, %v3710
    %v4089 = vpack.c.b16 %v3717, %v3714
    %v4090 = vpack.c.b16 %v3718, %v3715
    %v4091 = vpack.c.b16 %v3719, %v3716
    %v4092 = vpack.c.b16 %v3723, %v3720
    %v4093 = vpack.c.b16 %v3724, %v3721
    %v4094 = vpack.c.b16 %v3725, %v3722
    %v4095 = vpack.c.b16 %v3729, %v3726
    %v4096 = vpack.c.b16 %v3730, %v3727
    %v4097 = vpack.c.b16 %v3731, %v3728
    %v4098 = vpack.c.b16 %v3735, %v3732
    %v4099 = vpack.c.b16 %v3736, %v3733
    %v4100 = vpack.c.b16 %v3737, %v3734
    %v4101 = vpack.c.b16 %v3741, %v3738
    %v4102 = vpack.c.b16 %v3742, %v3739
    %v4103 = vpack.c.b16 %v3743, %v3740
    %v4104 = vpack.c.b16 %v3747, %v3744
    %v4105 = vpack.c.b16 %v3748, %v3745
    %v4106 = vpack.c.b16 %v3749, %v3746
    %v4107 = vpack.c.b16 %v3753, %v3750
    %v4108 = vpack.c.b16 %v3754, %v3751
    %v4109 = vpack.c.b16 %v3755, %v3752
    %v4110 = vpack.c.b16 %v3759, %v3756
    %v4111 = vpack.c.b16 %v3760, %v3757
    %v4112 = vpack.c.b16 %v3761, %v3758
    %v4113 = vpack.c.b16 %v3765, %v3762
    %v4114 = vpack.c.b16 %v3766, %v3763
    %v4115 = vpack.c.b16 %v3767, %v3764
    %v4116 = vpack.c.b16 %v3771, %v3768
    %v4117 = vpack.c.b16 %v3772, %v3769
    %v4118 = vpack.c.b16 %v3773, %v3770
    %v4119 = vpack.c.b16 %v3777, %v3774
    %v4120 = vpack.c.b16 %v3778, %v3775
    %v4121 = vpack.c.b16 %v3779, %v3776
    %v4122 = vpack.c.b16 %v3783, %v3780
    %v4123 = vpack.c.b16 %v3784, %v3781
    %v4124 = vpack.c.b16 %v3785, %v3782
    %v4125 = vpack.c.b16 %v3789, %v3786
    %v4126 = vpack.c.b16 %v3790, %v3787
    %v4127 = vpack.c.b16 %v3791, %v3788
    %v4128 = vpack.c.b16 %v3795, %v3792
    %v4129 = vpack.c.b16 %v3796, %v3793
    %v4130 = vpack.c.b16 %v3797, %v3794
    %v4131 = vpack.c.b16 %v3801, %v3798
    %v4132 = vpack.c.b16 %v3802, %v3799
    %v4133 = vpack.c.b16 %v3803, %v3800
    %v4134 = vpack.c.b16 %v3807, %v3804
    %v4135 = vpack.c.b16 %v3808, %v3805
    %v4136 = vpack.c.b16 %v3809, %v3806
    %v4137 = vpack.c.b16 %v3813, %v3810
    %v4138 = vpack.c.b16 %v3814, %v3811
    %v4139 = vpack.c.b16 %v3815, %v3812
    %v4140 = vpack.c.b16 %v3819, %v3816
    %v4141 = vpack.c.b16 %v3820, %v3817
    %v4142 = vpack.c.b16 %v3821, %v3818
    %v4143 = vpack.c.b16 %v3825, %v3822
    %v4144 = vpack.c.b16 %v3826, %v3823
    %v4145 = vpack.c.b16 %v3827, %v3824
    %v4146 = vpack.c.b16 %v3831, %v3828
    %v4147 = vpack.c.b16 %v3832, %v3829
    %v4148 = vpack.c.b16 %v3833, %v3830
    %v4149 = vpack.c.b16 %v3837, %v3834
    %v4150 = vpack.c.b16 %v3838, %v3835
    %v4151 = vpack.c.b16 %v3839, %v3836
    %v4152 = vpack.c.b16 %v3843, %v3840
    %v4153 = vpack.c.b16 %v3844, %v3841
    %v4154 = vpack.c.b16 %v3845, %v3842
    %v4155 = vpack.c.b16 %v3849, %v3846
    %v4156 = vpack.c.b16 %v3850, %v3847
    %v4157 = vpack.c.b16 %v3851, %v3848
    %v4158 = vpack.c.b16 %v3855, %v3852
    %v4159 = vpack.c.b16 %v3856, %v3853
    %v4160 = vpack.c.b16 %v3857, %v3854
    %v4161 = vpack.c.b16 %v3861, %v3858
    %v4162 = vpack.c.b16 %v3862, %v3859
    %v4163 = vpack.c.b16 %v3863, %v3860
    %v4164 = vpack.c.b16 %v3867, %v3864
    %v4165 = vpack.c.b16 %v3868, %v3865
    %v4166 = vpack.c.b16 %v3869, %v3866
    %v4167 = vpack.c.b16 %v3873, %v3870
    %v4168 = vpack.c.b16 %v3874, %v3871
    %v4169 = vpack.c.b16 %v3875, %v3872
    %v4170 = vpack.c.b16 %v3879, %v3876
    %v4171 = vpack.c.b16 %v3880, %v3877
    %v4172 = vpack.c.b16 %v3881, %v3878
    %v4173 = vpack.c.b16 %v3885, %v3882
    %v4174 = vpack.c.b16 %v3886, %v3883
    %v4175 = vpack.c.b16 %v3887, %v3884
    %4464 = vmatpush.bf16.msra.mxu0 %v3909
    %4465 = vmatpush.bf16.msra.mxu0 %v3906
    %4466 = vmatpush.bf16.msra.mxu0 %v3903
    %4467 = vmatpush.bf16.msra.mxu0 %v3900
    %4468 = vmatpush.bf16.msra.mxu0 %v3897
    %4469 = vmatpush.bf16.msra.mxu0 %v3894
    %4470 = vmatpush.bf16.msra.mxu0 %v3891
    %4471 = vmatpush.bf16.msra.mxu0 %v3888
    %4472 = vmatmul.bf16.gmra.mxu0 %v2532
    %v4473 = vpop.f32.mrf.mxu0
    %v4474 = vadd.f32 0.0, %v4473
    %v4475 = vpop.f32.mrf.mxu0
    %v4476 = vadd.f32 0.0, %v4475
    %4477 = vdwg.mxu0
    %4478 = vmatpush.bf16.msra.mxu0 %v3933
    %4479 = vmatpush.bf16.msra.mxu0 %v3930
    %4480 = vmatpush.bf16.msra.mxu0 %v3927
    %4481 = vmatpush.bf16.msra.mxu0 %v3924
    %4482 = vmatpush.bf16.msra.mxu0 %v3921
    %4483 = vmatpush.bf16.msra.mxu0 %v3918
    %4484 = vmatpush.bf16.msra.mxu0 %v3915
    %4485 = vmatpush.bf16.msra.mxu0 %v3912
    %4486 = vmatmul.bf16.gmra.mxu0 %v2533
    %v4487 = vpop.f32.mrf.mxu0
    %v4488 = vadd.f32 %v4474, %v4487
    %v4489 = vpop.f32.mrf.mxu0
    %v4490 = vadd.f32 %v4476, %v4489
    %4491 = vdwg.mxu0
    %4492 = vmatpush.bf16.msra.mxu0 %v3957
    %4493 = vmatpush.bf16.msra.mxu0 %v3954
    %4494 = vmatpush.bf16.msra.mxu0 %v3951
    %4495 = vmatpush.bf16.msra.mxu0 %v3948
    %4496 = vmatpush.bf16.msra.mxu0 %v3945
    %4497 = vmatpush.bf16.msra.mxu0 %v3942
    %4498 = vmatpush.bf16.msra.mxu0 %v3939
    %4499 = vmatpush.bf16.msra.mxu0 %v3936
    %4500 = vmatmul.bf16.gmra.mxu0 %v2534
    %v4501 = vpop.f32.mrf.mxu0
    %v4502 = vadd.f32 %v4488, %v4501
    %v4503 = vpop.f32.mrf.mxu0
    %v4504 = vadd.f32 %v4490, %v4503
    %4505 = vdwg.mxu0
    %4506 = vmatpush.bf16.msra.mxu0 %v3981
    %4507 = vmatpush.bf16.msra.mxu0 %v3978
    %4508 = vmatpush.bf16.msra.mxu0 %v3975
    %4509 = vmatpush.bf16.msra.mxu0 %v3972
    %4510 = vmatpush.bf16.msra.mxu0 %v3969
    %4511 = vmatpush.bf16.msra.mxu0 %v3966
    %4512 = vmatpush.bf16.msra.mxu0 %v3963
    %4513 = vmatpush.bf16.msra.mxu0 %v3960
    %4514 = vmatmul.bf16.gmra.mxu0 %v2535
    %v4515 = vpop.f32.mrf.mxu0
    %v4516 = vadd.f32 %v4502, %v4515
    %v4517 = vpop.f32.mrf.mxu0
    %v4518 = vadd.f32 %v4504, %v4517
    %4519 = vdwg.mxu0
    %4520 = vmatpush.bf16.msra.mxu0 %v4005
    %4521 = vmatpush.bf16.msra.mxu0 %v4002
    %4522 = vmatpush.bf16.msra.mxu0 %v3999
    %4523 = vmatpush.bf16.msra.mxu0 %v3996
    %4524 = vmatpush.bf16.msra.mxu0 %v3993
    %4525 = vmatpush.bf16.msra.mxu0 %v3990
    %4526 = vmatpush.bf16.msra.mxu0 %v3987
    %4527 = vmatpush.bf16.msra.mxu0 %v3984
    %4528 = vmatmul.bf16.gmra.mxu0 %v2536
    %v4529 = vpop.f32.mrf.mxu0
    %v4530 = vadd.f32 %v4516, %v4529
    %v4531 = vpop.f32.mrf.mxu0
    %v4532 = vadd.f32 %v4518, %v4531
    %4533 = vdwg.mxu0
    %4534 = vmatpush.bf16.msra.mxu0 %v4029
    %4535 = vmatpush.bf16.msra.mxu0 %v4026
    %4536 = vmatpush.bf16.msra.mxu0 %v4023
    %4537 = vmatpush.bf16.msra.mxu0 %v4020
    %4538 = vmatpush.bf16.msra.mxu0 %v4017
    %4539 = vmatpush.bf16.msra.mxu0 %v4014
    %4540 = vmatpush.bf16.msra.mxu0 %v4011
    %4541 = vmatpush.bf16.msra.mxu0 %v4008
    %4542 = vmatmul.bf16.gmra.mxu0 %v2537
    %v4543 = vpop.f32.mrf.mxu0
    %v4544 = vadd.f32 %v4530, %v4543
    %v4545 = vpop.f32.mrf.mxu0
    %v4546 = vadd.f32 %v4532, %v4545
    %4547 = vdwg.mxu0
    %4548 = vmatpush.bf16.msra.mxu0 %v4053
    %4549 = vmatpush.bf16.msra.mxu0 %v4050
    %4550 = vmatpush.bf16.msra.mxu0 %v4047
    %4551 = vmatpush.bf16.msra.mxu0 %v4044
    %4552 = vmatpush.bf16.msra.mxu0 %v4041
    %4553 = vmatpush.bf16.msra.mxu0 %v4038
    %4554 = vmatpush.bf16.msra.mxu0 %v4035
    %4555 = vmatpush.bf16.msra.mxu0 %v4032
    %4556 = vmatmul.bf16.gmra.mxu0 %v2538
    %v4557 = vpop.f32.mrf.mxu0
    %v4558 = vadd.f32 %v4544, %v4557
    %v4559 = vpop.f32.mrf.mxu0
    %v4560 = vadd.f32 %v4546, %v4559
    %4561 = vdwg.mxu0
    %4562 = vmatpush.bf16.msra.mxu0 %v4077
    %4563 = vmatpush.bf16.msra.mxu0 %v4074
    %4564 = vmatpush.bf16.msra.mxu0 %v4071
    %4565 = vmatpush.bf16.msra.mxu0 %v4068
    %4566 = vmatpush.bf16.msra.mxu0 %v4065
    %4567 = vmatpush.bf16.msra.mxu0 %v4062
    %4568 = vmatpush.bf16.msra.mxu0 %v4059
    %4569 = vmatpush.bf16.msra.mxu0 %v4056
    %4570 = vmatmul.bf16.gmra.mxu0 %v2539
    %v4571 = vpop.f32.mrf.mxu0
    %v4572 = vadd.f32 %v4558, %v4571
    %v4573 = vpop.f32.mrf.mxu0
    %v4574 = vadd.f32 %v4560, %v4573
    %4575 = vdwg.mxu0
    %4576 = vmatpush.bf16.msra.mxu0 %v4101
    %4577 = vmatpush.bf16.msra.mxu0 %v4098
    %4578 = vmatpush.bf16.msra.mxu0 %v4095
    %4579 = vmatpush.bf16.msra.mxu0 %v4092
    %4580 = vmatpush.bf16.msra.mxu0 %v4089
    %4581 = vmatpush.bf16.msra.mxu0 %v4086
    %4582 = vmatpush.bf16.msra.mxu0 %v4083
    %4583 = vmatpush.bf16.msra.mxu0 %v4080
    %4584 = vmatmul.bf16.gmra.mxu0 %v2540
    %v4585 = vpop.f32.mrf.mxu0
    %v4586 = vadd.f32 %v4572, %v4585
    %v4587 = vpop.f32.mrf.mxu0
    %v4588 = vadd.f32 %v4574, %v4587
    %4589 = vdwg.mxu0
    %4590 = vmatpush.bf16.msra.mxu0 %v4125
    %4591 = vmatpush.bf16.msra.mxu0 %v4122
    %4592 = vmatpush.bf16.msra.mxu0 %v4119
    %4593 = vmatpush.bf16.msra.mxu0 %v4116
    %4594 = vmatpush.bf16.msra.mxu0 %v4113
    %4595 = vmatpush.bf16.msra.mxu0 %v4110
    %4596 = vmatpush.bf16.msra.mxu0 %v4107
    %4597 = vmatpush.bf16.msra.mxu0 %v4104
    %4598 = vmatmul.bf16.gmra.mxu0 %v2541
    %v4599 = vpop.f32.mrf.mxu0
    %v4600 = vadd.f32 %v4586, %v4599
    %v4601 = vpop.f32.mrf.mxu0
    %v4602 = vadd.f32 %v4588, %v4601
    %4603 = vdwg.mxu0
    %4604 = vmatpush.bf16.msra.mxu0 %v4149
    %4605 = vmatpush.bf16.msra.mxu0 %v4146
    %4606 = vmatpush.bf16.msra.mxu0 %v4143
    %4607 = vmatpush.bf16.msra.mxu0 %v4140
    %4608 = vmatpush.bf16.msra.mxu0 %v4137
    %4609 = vmatpush.bf16.msra.mxu0 %v4134
    %4610 = vmatpush.bf16.msra.mxu0 %v4131
    %4611 = vmatpush.bf16.msra.mxu0 %v4128
    %4612 = vmatmul.bf16.gmra.mxu0 %v2542
    %v4613 = vpop.f32.mrf.mxu0
    %v4614 = vadd.f32 %v4600, %v4613
    %v4615 = vpop.f32.mrf.mxu0
    %v4616 = vadd.f32 %v4602, %v4615
    %4617 = vdwg.mxu0
    %4618 = vmatpush.bf16.msra.mxu0 %v4173
    %4619 = vmatpush.bf16.msra.mxu0 %v4170
    %4620 = vmatpush.bf16.msra.mxu0 %v4167
    %4621 = vmatpush.bf16.msra.mxu0 %v4164
    %4622 = vmatpush.bf16.msra.mxu0 %v4161
    %4623 = vmatpush.bf16.msra.mxu0 %v4158
    %4624 = vmatpush.bf16.msra.mxu0 %v4155
    %4625 = vmatpush.bf16.msra.mxu0 %v4152
    %4626 = vmatmul.bf16.gmra.mxu0 %v2543
    %v4627 = vpop.f32.mrf.mxu0
    %v4628 = vadd.f32 %v4614, %v4627
    %v4629 = vpop.f32.mrf.mxu0
    %v4630 = vadd.f32 %v4616, %v4629
    %4631 = vdwg.mxu0
    %4632 = vmatpush.bf16.msra.mxu0 %v3910
    %4633 = vmatpush.bf16.msra.mxu0 %v3907
    %4634 = vmatpush.bf16.msra.mxu0 %v3904
    %4635 = vmatpush.bf16.msra.mxu0 %v3901
    %4636 = vmatpush.bf16.msra.mxu0 %v3898
    %4637 = vmatpush.bf16.msra.mxu0 %v3895
    %4638 = vmatpush.bf16.msra.mxu0 %v3892
    %4639 = vmatpush.bf16.msra.mxu0 %v3889
    %4640 = vmatmul.bf16.gmra.mxu0 %v2532
    %v4641 = vpop.f32.mrf.mxu0
    %v4642 = vadd.f32 0.0, %v4641
    %v4643 = vpop.f32.mrf.mxu0
    %v4644 = vadd.f32 0.0, %v4643
    %4645 = vdwg.mxu0
    %4646 = vmatpush.bf16.msra.mxu0 %v3934
    %4647 = vmatpush.bf16.msra.mxu0 %v3931
    %4648 = vmatpush.bf16.msra.mxu0 %v3928
    %4649 = vmatpush.bf16.msra.mxu0 %v3925
    %4650 = vmatpush.bf16.msra.mxu0 %v3922
    %4651 = vmatpush.bf16.msra.mxu0 %v3919
    %4652 = vmatpush.bf16.msra.mxu0 %v3916
    %4653 = vmatpush.bf16.msra.mxu0 %v3913
    %4654 = vmatmul.bf16.gmra.mxu0 %v2533
    %v4655 = vpop.f32.mrf.mxu0
    %v4656 = vadd.f32 %v4642, %v4655
    %v4657 = vpop.f32.mrf.mxu0
    %v4658 = vadd.f32 %v4644, %v4657
    %4659 = vdwg.mxu0
    %4660 = vmatpush.bf16.msra.mxu0 %v3958
    %4661 = vmatpush.bf16.msra.mxu0 %v3955
    %4662 = vmatpush.bf16.msra.mxu0 %v3952
    %4663 = vmatpush.bf16.msra.mxu0 %v3949
    %4664 = vmatpush.bf16.msra.mxu0 %v3946
    %4665 = vmatpush.bf16.msra.mxu0 %v3943
    %4666 = vmatpush.bf16.msra.mxu0 %v3940
    %4667 = vmatpush.bf16.msra.mxu0 %v3937
    %4668 = vmatmul.bf16.gmra.mxu0 %v2534
    %v4669 = vpop.f32.mrf.mxu0
    %v4670 = vadd.f32 %v4656, %v4669
    %v4671 = vpop.f32.mrf.mxu0
    %v4672 = vadd.f32 %v4658, %v4671
    %4673 = vdwg.mxu0
    %4674 = vmatpush.bf16.msra.mxu0 %v3982
    %4675 = vmatpush.bf16.msra.mxu0 %v3979
    %4676 = vmatpush.bf16.msra.mxu0 %v3976
    %4677 = vmatpush.bf16.msra.mxu0 %v3973
    %4678 = vmatpush.bf16.msra.mxu0 %v3970
    %4679 = vmatpush.bf16.msra.mxu0 %v3967
    %4680 = vmatpush.bf16.msra.mxu0 %v3964
    %4681 = vmatpush.bf16.msra.mxu0 %v3961
    %4682 = vmatmul.bf16.gmra.mxu0 %v2535
    %v4683 = vpop.f32.mrf.mxu0
    %v4684 = vadd.f32 %v4670, %v4683
    %v4685 = vpop.f32.mrf.mxu0
    %v4686 = vadd.f32 %v4672, %v4685
    %4687 = vdwg.mxu0
    %4688 = vmatpush.bf16.msra.mxu0 %v4006
    %4689 = vmatpush.bf16.msra.mxu0 %v4003
    %4690 = vmatpush.bf16.msra.mxu0 %v4000
    %4691 = vmatpush.bf16.msra.mxu0 %v3997
    %4692 = vmatpush.bf16.msra.mxu0 %v3994
    %4693 = vmatpush.bf16.msra.mxu0 %v3991
    %4694 = vmatpush.bf16.msra.mxu0 %v3988
    %4695 = vmatpush.bf16.msra.mxu0 %v3985
    %4696 = vmatmul.bf16.gmra.mxu0 %v2536
    %v4697 = vpop.f32.mrf.mxu0
    %v4698 = vadd.f32 %v4684, %v4697
    %v4699 = vpop.f32.mrf.mxu0
    %v4700 = vadd.f32 %v4686, %v4699
    %4701 = vdwg.mxu0
    %4702 = vmatpush.bf16.msra.mxu0 %v4030
    %4703 = vmatpush.bf16.msra.mxu0 %v4027
    %4704 = vmatpush.bf16.msra.mxu0 %v4024
    %4705 = vmatpush.bf16.msra.mxu0 %v4021
    %4706 = vmatpush.bf16.msra.mxu0 %v4018
    %4707 = vmatpush.bf16.msra.mxu0 %v4015
    %4708 = vmatpush.bf16.msra.mxu0 %v4012
    %4709 = vmatpush.bf16.msra.mxu0 %v4009
    %4710 = vmatmul.bf16.gmra.mxu0 %v2537
    %v4711 = vpop.f32.mrf.mxu0
    %v4712 = vadd.f32 %v4698, %v4711
    %v4713 = vpop.f32.mrf.mxu0
    %v4714 = vadd.f32 %v4700, %v4713
    %4715 = vdwg.mxu0
    %4716 = vmatpush.bf16.msra.mxu0 %v4054
    %4717 = vmatpush.bf16.msra.mxu0 %v4051
    %4718 = vmatpush.bf16.msra.mxu0 %v4048
    %4719 = vmatpush.bf16.msra.mxu0 %v4045
    %4720 = vmatpush.bf16.msra.mxu0 %v4042
    %4721 = vmatpush.bf16.msra.mxu0 %v4039
    %4722 = vmatpush.bf16.msra.mxu0 %v4036
    %4723 = vmatpush.bf16.msra.mxu0 %v4033
    %4724 = vmatmul.bf16.gmra.mxu0 %v2538
    %v4725 = vpop.f32.mrf.mxu0
    %v4726 = vadd.f32 %v4712, %v4725
    %v4727 = vpop.f32.mrf.mxu0
    %v4728 = vadd.f32 %v4714, %v4727
    %4729 = vdwg.mxu0
    %4730 = vmatpush.bf16.msra.mxu0 %v4078
    %4731 = vmatpush.bf16.msra.mxu0 %v4075
    %4732 = vmatpush.bf16.msra.mxu0 %v4072
    %4733 = vmatpush.bf16.msra.mxu0 %v4069
    %4734 = vmatpush.bf16.msra.mxu0 %v4066
    %4735 = vmatpush.bf16.msra.mxu0 %v4063
    %4736 = vmatpush.bf16.msra.mxu0 %v4060
    %4737 = vmatpush.bf16.msra.mxu0 %v4057
    %4738 = vmatmul.bf16.gmra.mxu0 %v2539
    %v4739 = vpop.f32.mrf.mxu0
    %v4740 = vadd.f32 %v4726, %v4739
    %v4741 = vpop.f32.mrf.mxu0
    %v4742 = vadd.f32 %v4728, %v4741
    %4743 = vdwg.mxu0
    %4744 = vmatpush.bf16.msra.mxu0 %v4102
    %4745 = vmatpush.bf16.msra.mxu0 %v4099
    %4746 = vmatpush.bf16.msra.mxu0 %v4096
    %4747 = vmatpush.bf16.msra.mxu0 %v4093
    %4748 = vmatpush.bf16.msra.mxu0 %v4090
    %4749 = vmatpush.bf16.msra.mxu0 %v4087
    %4750 = vmatpush.bf16.msra.mxu0 %v4084
    %4751 = vmatpush.bf16.msra.mxu0 %v4081
    %4752 = vmatmul.bf16.gmra.mxu0 %v2540
    %v4753 = vpop.f32.mrf.mxu0
    %v4754 = vadd.f32 %v4740, %v4753
    %v4755 = vpop.f32.mrf.mxu0
    %v4756 = vadd.f32 %v4742, %v4755
    %4757 = vdwg.mxu0
    %4758 = vmatpush.bf16.msra.mxu0 %v4126
    %4759 = vmatpush.bf16.msra.mxu0 %v4123
    %4760 = vmatpush.bf16.msra.mxu0 %v4120
    %4761 = vmatpush.bf16.msra.mxu0 %v4117
    %4762 = vmatpush.bf16.msra.mxu0 %v4114
    %4763 = vmatpush.bf16.msra.mxu0 %v4111
    %4764 = vmatpush.bf16.msra.mxu0 %v4108
    %4765 = vmatpush.bf16.msra.mxu0 %v4105
    %4766 = vmatmul.bf16.gmra.mxu0 %v2541
    %v4767 = vpop.f32.mrf.mxu0
    %v4768 = vadd.f32 %v4754, %v4767
    %v4769 = vpop.f32.mrf.mxu0
    %v4770 = vadd.f32 %v4756, %v4769
    %4771 = vdwg.mxu0
    %4772 = vmatpush.bf16.msra.mxu0 %v4150
    %4773 = vmatpush.bf16.msra.mxu0 %v4147
    %4774 = vmatpush.bf16.msra.mxu0 %v4144
    %4775 = vmatpush.bf16.msra.mxu0 %v4141
    %4776 = vmatpush.bf16.msra.mxu0 %v4138
    %4777 = vmatpush.bf16.msra.mxu0 %v4135
    %4778 = vmatpush.bf16.msra.mxu0 %v4132
    %4779 = vmatpush.bf16.msra.mxu0 %v4129
    %4780 = vmatmul.bf16.gmra.mxu0 %v2542
    %v4781 = vpop.f32.mrf.mxu0
    %v4782 = vadd.f32 %v4768, %v4781
    %v4783 = vpop.f32.mrf.mxu0
    %v4784 = vadd.f32 %v4770, %v4783
    %4785 = vdwg.mxu0
    %4786 = vmatpush.bf16.msra.mxu0 %v4174
    %4787 = vmatpush.bf16.msra.mxu0 %v4171
    %4788 = vmatpush.bf16.msra.mxu0 %v4168
    %4789 = vmatpush.bf16.msra.mxu0 %v4165
    %4790 = vmatpush.bf16.msra.mxu0 %v4162
    %4791 = vmatpush.bf16.msra.mxu0 %v4159
    %4792 = vmatpush.bf16.msra.mxu0 %v4156
    %4793 = vmatpush.bf16.msra.mxu0 %v4153
    %4794 = vmatmul.bf16.gmra.mxu0 %v2543
    %v4795 = vpop.f32.mrf.mxu0
    %v4796 = vadd.f32 %v4782, %v4795
    %v4797 = vpop.f32.mrf.mxu0
    %v4798 = vadd.f32 %v4784, %v4797
    %4799 = vdwg.mxu0
    %4800 = vmatpush.bf16.msra.mxu0 %v3911
    %4801 = vmatpush.bf16.msra.mxu0 %v3908
    %4802 = vmatpush.bf16.msra.mxu0 %v3905
    %4803 = vmatpush.bf16.msra.mxu0 %v3902
    %4804 = vmatpush.bf16.msra.mxu0 %v3899
    %4805 = vmatpush.bf16.msra.mxu0 %v3896
    %4806 = vmatpush.bf16.msra.mxu0 %v3893
    %4807 = vmatpush.bf16.msra.mxu0 %v3890
    %4808 = vmatmul.bf16.gmra.mxu0 %v2532
    %v4809 = vpop.f32.mrf.mxu0
    %v4810 = vadd.f32 0.0, %v4809
    %v4811 = vpop.f32.mrf.mxu0
    %v4812 = vadd.f32 0.0, %v4811
    %4813 = vdwg.mxu0
    %4814 = vmatpush.bf16.msra.mxu0 %v3935
    %4815 = vmatpush.bf16.msra.mxu0 %v3932
    %4816 = vmatpush.bf16.msra.mxu0 %v3929
    %4817 = vmatpush.bf16.msra.mxu0 %v3926
    %4818 = vmatpush.bf16.msra.mxu0 %v3923
    %4819 = vmatpush.bf16.msra.mxu0 %v3920
    %4820 = vmatpush.bf16.msra.mxu0 %v3917
    %4821 = vmatpush.bf16.msra.mxu0 %v3914
    %4822 = vmatmul.bf16.gmra.mxu0 %v2533
    %v4823 = vpop.f32.mrf.mxu0
    %v4824 = vadd.f32 %v4810, %v4823
    %v4825 = vpop.f32.mrf.mxu0
    %v4826 = vadd.f32 %v4812, %v4825
    %4827 = vdwg.mxu0
    %4828 = vmatpush.bf16.msra.mxu0 %v3959
    %4829 = vmatpush.bf16.msra.mxu0 %v3956
    %4830 = vmatpush.bf16.msra.mxu0 %v3953
    %4831 = vmatpush.bf16.msra.mxu0 %v3950
    %4832 = vmatpush.bf16.msra.mxu0 %v3947
    %4833 = vmatpush.bf16.msra.mxu0 %v3944
    %4834 = vmatpush.bf16.msra.mxu0 %v3941
    %4835 = vmatpush.bf16.msra.mxu0 %v3938
    %4836 = vmatmul.bf16.gmra.mxu0 %v2534
    %v4837 = vpop.f32.mrf.mxu0
    %v4838 = vadd.f32 %v4824, %v4837
    %v4839 = vpop.f32.mrf.mxu0
    %v4840 = vadd.f32 %v4826, %v4839
    %4841 = vdwg.mxu0
    %4842 = vmatpush.bf16.msra.mxu0 %v3983
    %4843 = vmatpush.bf16.msra.mxu0 %v3980
    %4844 = vmatpush.bf16.msra.mxu0 %v3977
    %4845 = vmatpush.bf16.msra.mxu0 %v3974
    %4846 = vmatpush.bf16.msra.mxu0 %v3971
    %4847 = vmatpush.bf16.msra.mxu0 %v3968
    %4848 = vmatpush.bf16.msra.mxu0 %v3965
    %4849 = vmatpush.bf16.msra.mxu0 %v3962
    %4850 = vmatmul.bf16.gmra.mxu0 %v2535
    %v4851 = vpop.f32.mrf.mxu0
    %v4852 = vadd.f32 %v4838, %v4851
    %v4853 = vpop.f32.mrf.mxu0
    %v4854 = vadd.f32 %v4840, %v4853
    %4855 = vdwg.mxu0
    %4856 = vmatpush.bf16.msra.mxu0 %v4007
    %4857 = vmatpush.bf16.msra.mxu0 %v4004
    %4858 = vmatpush.bf16.msra.mxu0 %v4001
    %4859 = vmatpush.bf16.msra.mxu0 %v3998
    %4860 = vmatpush.bf16.msra.mxu0 %v3995
    %4861 = vmatpush.bf16.msra.mxu0 %v3992
    %4862 = vmatpush.bf16.msra.mxu0 %v3989
    %4863 = vmatpush.bf16.msra.mxu0 %v3986
    %4864 = vmatmul.bf16.gmra.mxu0 %v2536
    %v4865 = vpop.f32.mrf.mxu0
    %v4866 = vadd.f32 %v4852, %v4865
    %v4867 = vpop.f32.mrf.mxu0
    %v4868 = vadd.f32 %v4854, %v4867
    %4869 = vdwg.mxu0
    %4870 = vmatpush.bf16.msra.mxu0 %v4031
    %4871 = vmatpush.bf16.msra.mxu0 %v4028
    %4872 = vmatpush.bf16.msra.mxu0 %v4025
    %4873 = vmatpush.bf16.msra.mxu0 %v4022
    %4874 = vmatpush.bf16.msra.mxu0 %v4019
    %4875 = vmatpush.bf16.msra.mxu0 %v4016
    %4876 = vmatpush.bf16.msra.mxu0 %v4013
    %4877 = vmatpush.bf16.msra.mxu0 %v4010
    %4878 = vmatmul.bf16.gmra.mxu0 %v2537
    %v4879 = vpop.f32.mrf.mxu0
    %v4880 = vadd.f32 %v4866, %v4879
    %v4881 = vpop.f32.mrf.mxu0
    %v4882 = vadd.f32 %v4868, %v4881
    %4883 = vdwg.mxu0
    %4884 = vmatpush.bf16.msra.mxu0 %v4055
    %4885 = vmatpush.bf16.msra.mxu0 %v4052
    %4886 = vmatpush.bf16.msra.mxu0 %v4049
    %4887 = vmatpush.bf16.msra.mxu0 %v4046
    %4888 = vmatpush.bf16.msra.mxu0 %v4043
    %4889 = vmatpush.bf16.msra.mxu0 %v4040
    %4890 = vmatpush.bf16.msra.mxu0 %v4037
    %4891 = vmatpush.bf16.msra.mxu0 %v4034
    %4892 = vmatmul.bf16.gmra.mxu0 %v2538
    %v4893 = vpop.f32.mrf.mxu0
    %v4894 = vadd.f32 %v4880, %v4893
    %v4895 = vpop.f32.mrf.mxu0
    %v4896 = vadd.f32 %v4882, %v4895
    %4897 = vdwg.mxu0
    %4898 = vmatpush.bf16.msra.mxu0 %v4079
    %4899 = vmatpush.bf16.msra.mxu0 %v4076
    %4900 = vmatpush.bf16.msra.mxu0 %v4073
    %4901 = vmatpush.bf16.msra.mxu0 %v4070
    %4902 = vmatpush.bf16.msra.mxu0 %v4067
    %4903 = vmatpush.bf16.msra.mxu0 %v4064
    %4904 = vmatpush.bf16.msra.mxu0 %v4061
    %4905 = vmatpush.bf16.msra.mxu0 %v4058
    %4906 = vmatmul.bf16.gmra.mxu0 %v2539
    %v4907 = vpop.f32.mrf.mxu0
    %v4908 = vadd.f32 %v4894, %v4907
    %v4909 = vpop.f32.mrf.mxu0
    %v4910 = vadd.f32 %v4896, %v4909
    %4911 = vdwg.mxu0
    %4912 = vmatpush.bf16.msra.mxu0 %v4103
    %4913 = vmatpush.bf16.msra.mxu0 %v4100
    %4914 = vmatpush.bf16.msra.mxu0 %v4097
    %4915 = vmatpush.bf16.msra.mxu0 %v4094
    %4916 = vmatpush.bf16.msra.mxu0 %v4091
    %4917 = vmatpush.bf16.msra.mxu0 %v4088
    %4918 = vmatpush.bf16.msra.mxu0 %v4085
    %4919 = vmatpush.bf16.msra.mxu0 %v4082
    %4920 = vmatmul.bf16.gmra.mxu0 %v2540
    %v4921 = vpop.f32.mrf.mxu0
    %v4922 = vadd.f32 %v4908, %v4921
    %v4923 = vpop.f32.mrf.mxu0
    %v4924 = vadd.f32 %v4910, %v4923
    %4925 = vdwg.mxu0
    %4926 = vmatpush.bf16.msra.mxu0 %v4127
    %4927 = vmatpush.bf16.msra.mxu0 %v4124
    %4928 = vmatpush.bf16.msra.mxu0 %v4121
    %4929 = vmatpush.bf16.msra.mxu0 %v4118
    %4930 = vmatpush.bf16.msra.mxu0 %v4115
    %4931 = vmatpush.bf16.msra.mxu0 %v4112
    %4932 = vmatpush.bf16.msra.mxu0 %v4109
    %4933 = vmatpush.bf16.msra.mxu0 %v4106
    %4934 = vmatmul.bf16.gmra.mxu0 %v2541
    %v4935 = vpop.f32.mrf.mxu0
    %v4936 = vadd.f32 %v4922, %v4935
    %v4937 = vpop.f32.mrf.mxu0
    %v4938 = vadd.f32 %v4924, %v4937
    %4939 = vdwg.mxu0
    %4940 = vmatpush.bf16.msra.mxu0 %v4151
    %4941 = vmatpush.bf16.msra.mxu0 %v4148
    %4942 = vmatpush.bf16.msra.mxu0 %v4145
    %4943 = vmatpush.bf16.msra.mxu0 %v4142
    %4944 = vmatpush.bf16.msra.mxu0 %v4139
    %4945 = vmatpush.bf16.msra.mxu0 %v4136
    %4946 = vmatpush.bf16.msra.mxu0 %v4133
    %4947 = vmatpush.bf16.msra.mxu0 %v4130
    %4948 = vmatmul.bf16.gmra.mxu0 %v2542
    %v4949 = vpop.f32.mrf.mxu0
    %v4950 = vadd.f32 %v4936, %v4949
    %v4951 = vpop.f32.mrf.mxu0
    %v4952 = vadd.f32 %v4938, %v4951
    %4953 = vdwg.mxu0
    %4954 = vmatpush.bf16.msra.mxu0 %v4175
    %4955 = vmatpush.bf16.msra.mxu0 %v4172
    %4956 = vmatpush.bf16.msra.mxu0 %v4169
    %4957 = vmatpush.bf16.msra.mxu0 %v4166
    %4958 = vmatpush.bf16.msra.mxu0 %v4163
    %4959 = vmatpush.bf16.msra.mxu0 %v4160
    %4960 = vmatpush.bf16.msra.mxu0 %v4157
    %4961 = vmatpush.bf16.msra.mxu0 %v4154
    %4962 = vmatmul.bf16.gmra.mxu0 %v2543
    %v4963 = vpop.f32.mrf.mxu0
    %v4964 = vadd.f32 %v4950, %v4963
    %v4965 = vpop.f32.mrf.mxu0
    %v4966 = vadd.f32 %v4952, %v4965
    %4967 = vdwg.mxu0
    %4968 = vst [vmem:[#allocation10] sm:$0xff] %v4628
    %4969 = vst [vmem:[#allocation10 + $0x8] sm:$0xff] %v4796
    %4970 = vst [vmem:[#allocation10 + $0x10] sm:$0xff] %v4964
    %4971 = vst [vmem:[#allocation10 + $0x18] sm:$0xff] %v4630
    %4972 = vst [vmem:[#allocation10 + $0x20] sm:$0xff] %v4798
    %4973 = vst [vmem:[#allocation10 + $0x28] sm:$0xff] %v4966
    // Predicated region
    $region26: #{tpu_custom_call.1} parent=1 // pred_check
      _
    $region27: #{tpu_custom_call.1} parent=1 // pred_check_branch
      %4975 = sbr.rel (0) target = $region29
    $region28: #{tpu_custom_call.1} parent=1 // pred_region
      %4977 = vsyncadd [#allocation6], 0
      %s4978 = sshll.u32 [#allocation10], 4
      %s4979 = int_to_ptr.vmem [resolvable:$true] %s4978
      %s4980 = sshll.u32 %s4, 4
      %s4981 = int_to_ptr.hbm [resolvable:$true] %s4980
      %4986 = dma.vmem_to_hbm [thread:$0]  %s4979, 768, %s4981, [#allocation6], 384, 384, 24
    $region29: #{tpu_custom_call.1} parent=1 // pred_fallthru
      _
    // Predicated region
    $region30: #{tpu_custom_call.1} parent=1 // pred_check
      _
    $region31: #{tpu_custom_call.1} parent=1 // pred_check_branch
      %4988 = sbr.rel (0) target = $region33
    $region32: #{tpu_custom_call.1} parent=1 // pred_region
      %4990 = dma.done [#allocation6], 768
    $region33: #{tpu_custom_call.1} parent=1 // pred_fallthru
      _
    %4991 = vsyncpa [#allocation5], 1
    %4992 = vsyncpa [#allocation8], 1
    %4993 = vsyncpa [#allocation6], 1

</llo_original>
